<compile_context>
chip_gen: v6e
topology: v6e:2x2x1
jax: 0.10.0
libtpu: 0.0.40
codegen_flags: <defaults>
</compile_context>

<pallas_src>
import jax
import jax.numpy as jnp
from jax import lax
from jax.experimental import pallas as pl
from jax.experimental.pallas import tpu as pltpu

_LANE = 128   # lane width: pooled feature axis is padded to this


# ----------------------------- Pallas kernel ------------------------------- #

def _fused_feature_kernel(x_ref, s_ref, t1_ref, b1_ref, t2_ref, b2_ref,
                          seg_ref, g_ref, o_ref):
    """conv3x3+ReLU -> conv3x3+ReLU -> global-average-pool for the whole batch.

    x_ref  : (B*H, W*Cin)          row-major images, channels in lanes, bf16
    s_ref  : (3, B*H, B*H)         H-shift matrices (zero rows = H pad), bf16
    t1_ref : (3, W*Cin, W*Cmid)    conv1 block-Toeplitz weights (W pad), bf16
    b1_ref : (1, W*Cmid)           conv1 bias tiled over W, f32
    t2_ref : (3, W*Cmid, W*Cfeat)  conv2 block-Toeplitz weights, bf16
    b2_ref : (1, W*Cfeat)          conv2 bias tiled over W, f32
    seg_ref: (B, B*H)              per-image row-sum matrix, f32
    g_ref  : (W*Cfeat, Cpad)       channel-gather / (1/(H*W)) matrix, f32
    o_ref  : (B, Cpad)             pooled representations, f32
    """

    def conv_rows(z, t_ref, b_row):
        # z: (B*H, W*Cin_) bf16 -> relu(conv3x3(z) + b): (B*H, W*Cout_) f32
        acc = None
        for kh in range(3):
            if kh == 1:
                zs = z                                   # S_1 is the identity
            else:
                # S is a 0/1 row selector, so the f32->bf16 round-trip is exact.
                zs = jnp.dot(s_ref[kh], z,
                             preferred_element_type=jnp.float32
                             ).astype(jnp.bfloat16)
            part = jnp.dot(zs, t_ref[kh], preferred_element_type=jnp.float32)
            acc = part if acc is None else acc + part
        return jnp.maximum(acc + b_row, 0.0)

    x = x_ref[...]
    h = conv_rows(x, t1_ref, b1_ref[...]).astype(jnp.bfloat16)   # (B*H, W*Cmid)
    f = conv_rows(h, t2_ref, b2_ref[...])                        # (B*H, W*Cfeat)

    # Global average pool on the (otherwise idle) MXU: per-image row sum,
    # then gather every W-th lane per channel and scale by 1/(H*W).
    col = jnp.dot(seg_ref[...], f, preferred_element_type=jnp.float32)
    o_ref[...] = jnp.dot(col, g_ref[...], preferred_element_type=jnp.float32)


# ------------------------------ pallas_call glue ---------------------------- #

def _block_toeplitz(w, W):
    """(3, 3, Ci, Co) HWIO conv weights -> (3, W*Ci, W*Co) banded matrices.

    T[kh, jin*Ci + ci, jout*Co + co] = w[kh, jin - jout + 1, ci, co] when the
    tap is in range; zero blocks encode the width-direction zero padding.
    """
    Kh, Kw, Ci, Co = w.shape
    jin = jnp.arange(W)[:, None]
    jout = jnp.arange(W)[None, :]
    kw = jin - jout + 1
    valid = (kw >= 0) & (kw < Kw)
    blocks = jnp.where(valid[None, :, :, None, None],
                       w[:, jnp.clip(kw, 0, Kw - 1)], 0.0)   # (Kh, W, W, Ci, Co)
    return jnp.transpose(blocks, (0, 1, 3, 2, 4)).reshape(Kh, W * Ci, W * Co)


def _row_shift_mats(B, H):
    """(3, B*H, B*H) 0/1 matrices: S[kh] @ rows shifts rows by (kh-1) in H,
    with all-zero rows at image boundaries (the height-direction zero pad)."""
    p = jnp.arange(B * H)
    i = p % H
    q = jnp.arange(B * H)
    mats = []
    for kh in range(3):
        valid = (i + (kh - 1) >= 0) & (i + (kh - 1) < H)
        mats.append((q[None, :] == (p + (kh - 1))[:, None]) & valid[:, None])
    return jnp.stack(mats)


def _fused_forward(x_nhwc, w1, b1, w2, b2):
    """x_nhwc: (B, H, W, Cin) -> pooled representations (B, Cfeat)."""
    B, H, W, Cin = x_nhwc.shape
    Cmid = w1.shape[-1]
    Cfeat = w2.shape[-1]
    cpad = ((Cfeat + _LANE - 1) // _LANE) * _LANE

    # Lane-dense bf16 MXU operands, all prepared once in the wrapper.
    x_rows = x_nhwc.reshape(B * H, W * Cin).astype(jnp.bfloat16)
    s_mats = _row_shift_mats(B, H).astype(jnp.bfloat16)
    t1 = _block_toeplitz(w1, W).astype(jnp.bfloat16)
    t2 = _block_toeplitz(w2, W).astype(jnp.bfloat16)
    b1_row = jnp.tile(b1.reshape(1, Cmid), (1, W)).astype(jnp.float32)
    b2_row = jnp.tile(b2.reshape(1, Cfeat), (1, W)).astype(jnp.float32)
    seg = (jnp.arange(B)[:, None] ==
           (jnp.arange(B * H) // H)[None, :]).astype(jnp.float32)
    g = ((jnp.arange(cpad)[None, :] ==
          (jnp.arange(W * Cfeat) % Cfeat)[:, None]).astype(jnp.float32)
         / float(H * W))

    vmem = pl.BlockSpec(memory_space=pltpu.MemorySpace.VMEM)
    out = pl.pallas_call(
        _fused_feature_kernel,
        out_shape=jax.ShapeDtypeStruct((B, cpad), jnp.float32),
        in_specs=[vmem] * 8,
        out_specs=vmem,
    )(x_rows, s_mats, t1, b1_row, t2, b2_row, seg, g)
    return out[:, :Cfeat]


# -------------------------- FeatureExtractor forward ------------------------ #

def init_params(key, cin=4, cmid=32, cfeat=32):
    k1, k2, k3, k4 = jax.random.split(key, 4)
    return {
        "w1": 0.1 * jax.random.normal(k1, (3, 3, cin, cmid), jnp.float32),
        "b1": 0.1 * jax.random.normal(k2, (1, cmid), jnp.float32),
        "w2": 0.1 * jax.random.normal(k3, (3, 3, cmid, cfeat), jnp.float32),
        "b2": 0.1 * jax.random.normal(k4, (1, cfeat), jnp.float32),
    }


@jax.jit
def feature_extractor_forward(x_nchw, params):
    """FeatureExtractor.forward: returns last-hidden-layer representations.

    Args:
        x_nchw: (B, C, H, W) batch of images (PyTorch NCHW convention).
    Returns:
        representations: (B, Cfeat) float32.
    """
    # Eval-only / no-grad semantics of the PyTorch module (torch.no_grad()).
    x = lax.stop_gradient(x_nchw)
    x = jnp.transpose(x, (0, 2, 3, 1)).astype(jnp.float32)   # NCHW -> NHWC
    return _fused_forward(x, params["w1"], params["b1"],
                          params["w2"], params["b2"])


# Pure-JAX reference (same bf16 MXU operands / f32 accumulation as the kernel).
def _reference_forward(x_nchw, params):
    x = jnp.transpose(x_nchw, (0, 2, 3, 1)).astype(jnp.float32)

    def conv_relu(z, w, b):
        y = lax.conv_general_dilated(
            z.astype(jnp.bfloat16), w.astype(jnp.bfloat16),
            window_strides=(1, 1), padding="SAME",
            dimension_numbers=("NHWC", "HWIO", "NHWC"),
            preferred_element_type=jnp.float32)
        return jax.nn.relu(y + b.reshape(1, 1, 1, -1))

    h = conv_relu(x, params["w1"], params["b1"])
    h = conv_relu(h, params["w2"], params["b2"])
    return h.mean(axis=(1, 2))


if __name__ == "__main__":
    key = jax.random.PRNGKey(0)
    k_x, k_p = jax.random.split(key)

    B, C, H, W = 2, 4, 16, 16
    x = jax.random.normal(k_x, (B, C, H, W), jnp.float32)
    params = init_params(k_p, cin=C, cmid=32, cfeat=32)

    reps = feature_extractor_forward(x, params)
    reps = jax.block_until_ready(reps)

    ref = _reference_forward(x, params)
    assert reps.shape == (B, 32), reps.shape
    # bf16 MXU operands with f32 accumulation in both kernel and reference.
    assert jnp.allclose(reps, ref, atol=1e-2, rtol=1e-2), (
        float(jnp.max(jnp.abs(reps - ref))))

    print("KERNEL_OK")
</pallas_src>

<mosaic_0001>
module attributes {stable_mosaic.version = 11 : i64} {
  func.func @_fused_feature_kernel(%arg0: memref<32x64xbf16, #tpu.memory_space<vmem>>, %arg1: memref<3x32x32xbf16, #tpu.memory_space<vmem>>, %arg2: memref<3x64x512xbf16, #tpu.memory_space<vmem>>, %arg3: memref<1x512xf32, #tpu.memory_space<vmem>>, %arg4: memref<3x512x512xbf16, #tpu.memory_space<vmem>>, %arg5: memref<1x512xf32, #tpu.memory_space<vmem>>, %arg6: memref<2x32xf32, #tpu.memory_space<vmem>>, %arg7: memref<512x128xf32, #tpu.memory_space<vmem>>, %arg8: memref<2x128xf32, #tpu.memory_space<vmem>>) attributes {dimension_semantics = [], scalar_prefetch = 0 : i64, scratch_operands = 0 : i64, tpu.core_type = #tpu.core_type<tc>} {
    %c0 = arith.constant 0 : index
    %c0_0 = arith.constant 0 : index
    %0 = vector.load %arg0[%c0, %c0_0] : memref<32x64xbf16, #tpu.memory_space<vmem>>, vector<32x64xbf16>
    %c0_1 = arith.constant 0 : index
    %c0_2 = arith.constant 0 : index
    %1 = vector.load %arg3[%c0_1, %c0_2] : memref<1x512xf32, #tpu.memory_space<vmem>>, vector<1x512xf32>
    %c0_3 = arith.constant 0 : index
    %c0_4 = arith.constant 0 : index
    %c0_5 = arith.constant 0 : index
    %2 = vector.load %arg1[%c0_3, %c0_4, %c0_5] : memref<3x32x32xbf16, #tpu.memory_space<vmem>>, vector<1x32x32xbf16>
    %3 = vector.shape_cast %2 : vector<1x32x32xbf16> to vector<32x32xbf16>
    %cst = arith.constant dense<0.000000e+00> : vector<32x64xf32>
    %4 = tpu.matmul %3, %0, %cst {dimension_numbers = #tpu.dot_dimension_numbers<[1], [0], [0], [1], [0, 0, 1, 1], [], []>} : vector<32x32xbf16>, vector<32x64xbf16>, vector<32x64xf32> -> vector<32x64xf32>
    %5 = arith.truncf %4 : vector<32x64xf32> to vector<32x64xbf16>
    %c0_6 = arith.constant 0 : index
    %c0_7 = arith.constant 0 : index
    %c0_8 = arith.constant 0 : index
    %6 = vector.load %arg2[%c0_6, %c0_7, %c0_8] : memref<3x64x512xbf16, #tpu.memory_space<vmem>>, vector<1x64x512xbf16>
    %7 = vector.shape_cast %6 : vector<1x64x512xbf16> to vector<64x512xbf16>
    %cst_9 = arith.constant dense<0.000000e+00> : vector<32x512xf32>
    %8 = tpu.matmul %5, %7, %cst_9 {dimension_numbers = #tpu.dot_dimension_numbers<[1], [0], [0], [1], [0, 0, 1, 1], [], []>} : vector<32x64xbf16>, vector<64x512xbf16>, vector<32x512xf32> -> vector<32x512xf32>
    %c1 = arith.constant 1 : index
    %c0_10 = arith.constant 0 : index
    %c0_11 = arith.constant 0 : index
    %9 = vector.load %arg2[%c1, %c0_10, %c0_11] : memref<3x64x512xbf16, #tpu.memory_space<vmem>>, vector<1x64x512xbf16>
    %10 = vector.shape_cast %9 : vector<1x64x512xbf16> to vector<64x512xbf16>
    %cst_12 = arith.constant dense<0.000000e+00> : vector<32x512xf32>
    %11 = tpu.matmul %0, %10, %cst_12 {dimension_numbers = #tpu.dot_dimension_numbers<[1], [0], [0], [1], [0, 0, 1, 1], [], []>} : vector<32x64xbf16>, vector<64x512xbf16>, vector<32x512xf32> -> vector<32x512xf32>
    %12 = arith.addf %8, %11 : vector<32x512xf32>
    %c2 = arith.constant 2 : index
    %c0_13 = arith.constant 0 : index
    %c0_14 = arith.constant 0 : index
    %13 = vector.load %arg1[%c2, %c0_13, %c0_14] : memref<3x32x32xbf16, #tpu.memory_space<vmem>>, vector<1x32x32xbf16>
    %14 = vector.shape_cast %13 : vector<1x32x32xbf16> to vector<32x32xbf16>
    %cst_15 = arith.constant dense<0.000000e+00> : vector<32x64xf32>
    %15 = tpu.matmul %14, %0, %cst_15 {dimension_numbers = #tpu.dot_dimension_numbers<[1], [0], [0], [1], [0, 0, 1, 1], [], []>} : vector<32x32xbf16>, vector<32x64xbf16>, vector<32x64xf32> -> vector<32x64xf32>
    %16 = arith.truncf %15 : vector<32x64xf32> to vector<32x64xbf16>
    %c2_16 = arith.constant 2 : index
    %c0_17 = arith.constant 0 : index
    %c0_18 = arith.constant 0 : index
    %17 = vector.load %arg2[%c2_16, %c0_17, %c0_18] : memref<3x64x512xbf16, #tpu.memory_space<vmem>>, vector<1x64x512xbf16>
    %18 = vector.shape_cast %17 : vector<1x64x512xbf16> to vector<64x512xbf16>
    %cst_19 = arith.constant dense<0.000000e+00> : vector<32x512xf32>
    %19 = tpu.matmul %16, %18, %cst_19 {dimension_numbers = #tpu.dot_dimension_numbers<[1], [0], [0], [1], [0, 0, 1, 1], [], []>} : vector<32x64xbf16>, vector<64x512xbf16>, vector<32x512xf32> -> vector<32x512xf32>
    %20 = arith.addf %12, %19 : vector<32x512xf32>
    %21 = vector.broadcast %1 : vector<1x512xf32> to vector<32x512xf32>
    %22 = arith.addf %20, %21 : vector<32x512xf32>
    %cst_20 = arith.constant 0.000000e+00 : f32
    %23 = vector.broadcast %cst_20 : f32 to vector<32x512xf32>
    %24 = arith.maximumf %22, %23 : vector<32x512xf32>
    %25 = arith.truncf %24 : vector<32x512xf32> to vector<32x512xbf16>
    %c0_21 = arith.constant 0 : index
    %c0_22 = arith.constant 0 : index
    %26 = vector.load %arg5[%c0_21, %c0_22] : memref<1x512xf32, #tpu.memory_space<vmem>>, vector<1x512xf32>
    %c0_23 = arith.constant 0 : index
    %c0_24 = arith.constant 0 : index
    %c0_25 = arith.constant 0 : index
    %27 = vector.load %arg1[%c0_23, %c0_24, %c0_25] : memref<3x32x32xbf16, #tpu.memory_space<vmem>>, vector<1x32x32xbf16>
    %28 = vector.shape_cast %27 : vector<1x32x32xbf16> to vector<32x32xbf16>
    %cst_26 = arith.constant dense<0.000000e+00> : vector<32x512xf32>
    %29 = tpu.matmul %28, %25, %cst_26 {dimension_numbers = #tpu.dot_dimension_numbers<[1], [0], [0], [1], [0, 0, 1, 1], [], []>} : vector<32x32xbf16>, vector<32x512xbf16>, vector<32x512xf32> -> vector<32x512xf32>
    %30 = arith.truncf %29 : vector<32x512xf32> to vector<32x512xbf16>
    %c0_27 = arith.constant 0 : index
    %c0_28 = arith.constant 0 : index
    %c0_29 = arith.constant 0 : index
    %31 = vector.load %arg4[%c0_27, %c0_28, %c0_29] : memref<3x512x512xbf16, #tpu.memory_space<vmem>>, vector<1x512x512xbf16>
    %32 = vector.shape_cast %31 : vector<1x512x512xbf16> to vector<512x512xbf16>
    %cst_30 = arith.constant dense<0.000000e+00> : vector<32x512xf32>
    %33 = tpu.matmul %30, %32, %cst_30 {dimension_numbers = #tpu.dot_dimension_numbers<[1], [0], [0], [1], [0, 0, 1, 1], [], []>} : vector<32x512xbf16>, vector<512x512xbf16>, vector<32x512xf32> -> vector<32x512xf32>
    %c1_31 = arith.constant 1 : index
    %c0_32 = arith.constant 0 : index
    %c0_33 = arith.constant 0 : index
    %34 = vector.load %arg4[%c1_31, %c0_32, %c0_33] : memref<3x512x512xbf16, #tpu.memory_space<vmem>>, vector<1x512x512xbf16>
    %35 = vector.shape_cast %34 : vector<1x512x512xbf16> to vector<512x512xbf16>
    %cst_34 = arith.constant dense<0.000000e+00> : vector<32x512xf32>
    %36 = tpu.matmul %25, %35, %cst_34 {dimension_numbers = #tpu.dot_dimension_numbers<[1], [0], [0], [1], [0, 0, 1, 1], [], []>} : vector<32x512xbf16>, vector<512x512xbf16>, vector<32x512xf32> -> vector<32x512xf32>
    %37 = arith.addf %33, %36 : vector<32x512xf32>
    %c2_35 = arith.constant 2 : index
    %c0_36 = arith.constant 0 : index
    %c0_37 = arith.constant 0 : index
    %38 = vector.load %arg1[%c2_35, %c0_36, %c0_37] : memref<3x32x32xbf16, #tpu.memory_space<vmem>>, vector<1x32x32xbf16>
    %39 = vector.shape_cast %38 : vector<1x32x32xbf16> to vector<32x32xbf16>
    %cst_38 = arith.constant dense<0.000000e+00> : vector<32x512xf32>
    %40 = tpu.matmul %39, %25, %cst_38 {dimension_numbers = #tpu.dot_dimension_numbers<[1], [0], [0], [1], [0, 0, 1, 1], [], []>} : vector<32x32xbf16>, vector<32x512xbf16>, vector<32x512xf32> -> vector<32x512xf32>
    %41 = arith.truncf %40 : vector<32x512xf32> to vector<32x512xbf16>
    %c2_39 = arith.constant 2 : index
    %c0_40 = arith.constant 0 : index
    %c0_41 = arith.constant 0 : index
    %42 = vector.load %arg4[%c2_39, %c0_40, %c0_41] : memref<3x512x512xbf16, #tpu.memory_space<vmem>>, vector<1x512x512xbf16>
    %43 = vector.shape_cast %42 : vector<1x512x512xbf16> to vector<512x512xbf16>
    %cst_42 = arith.constant dense<0.000000e+00> : vector<32x512xf32>
    %44 = tpu.matmul %41, %43, %cst_42 {dimension_numbers = #tpu.dot_dimension_numbers<[1], [0], [0], [1], [0, 0, 1, 1], [], []>} : vector<32x512xbf16>, vector<512x512xbf16>, vector<32x512xf32> -> vector<32x512xf32>
    %45 = arith.addf %37, %44 : vector<32x512xf32>
    %46 = vector.broadcast %26 : vector<1x512xf32> to vector<32x512xf32>
    %47 = arith.addf %45, %46 : vector<32x512xf32>
    %cst_43 = arith.constant 0.000000e+00 : f32
    %48 = vector.broadcast %cst_43 : f32 to vector<32x512xf32>
    %49 = arith.maximumf %47, %48 : vector<32x512xf32>
    %c0_44 = arith.constant 0 : index
    %c0_45 = arith.constant 0 : index
    %50 = vector.load %arg6[%c0_44, %c0_45] : memref<2x32xf32, #tpu.memory_space<vmem>>, vector<2x32xf32>
    %cst_46 = arith.constant dense<0.000000e+00> : vector<2x512xf32>
    %51 = tpu.matmul %50, %49, %cst_46 {dimension_numbers = #tpu.dot_dimension_numbers<[1], [0], [0], [1], [0, 0, 1, 1], [], []>} : vector<2x32xf32>, vector<32x512xf32>, vector<2x512xf32> -> vector<2x512xf32>
    %c0_47 = arith.constant 0 : index
    %c0_48 = arith.constant 0 : index
    %52 = vector.load %arg7[%c0_47, %c0_48] : memref<512x128xf32, #tpu.memory_space<vmem>>, vector<512x128xf32>
    %cst_49 = arith.constant dense<0.000000e+00> : vector<2x128xf32>
    %53 = tpu.matmul %51, %52, %cst_49 {dimension_numbers = #tpu.dot_dimension_numbers<[1], [0], [0], [1], [0, 0, 1, 1], [], []>} : vector<2x512xf32>, vector<512x128xf32>, vector<2x128xf32> -> vector<2x128xf32>
    %c0_50 = arith.constant 0 : index
    %c0_51 = arith.constant 0 : index
    %54 = vector.load %arg8[%c0_50, %c0_51] : memref<2x128xf32, #tpu.memory_space<vmem>>, vector<2x128xf32>
    tpu.vector_store %arg8[%c0_50, %c0_51], %53 {strides = array<i32>} : memref<2x128xf32, #tpu.memory_space<vmem>>, vector<2x128xf32>,
    return
  }
}

</mosaic_0001>

<llo_original>
// kernel: feature_extractor_forward.1
$region0: #{feature_extractor_forward.1}
  #allocation0 [shape = 'u32[]', space=smem, size = 0x4, offset = 0x4, fixed_abs, tag = 'smem constant byte address 0x4 - core index']
  #allocation1 [shape = 'u32[144,128]{1,0:T(1,128)}', space=vmem, size = 0x12000, scoped, tag = 'internal scratch']
  %s0 = inlined_call_operand.vmem [shape: bf16[32,64], index: 0, kind: input, shape index: {}]
  %s1 = inlined_call_operand.vmem [shape: bf16[3,32,32], index: 1, kind: input, shape index: {}]
  %s2 = inlined_call_operand.vmem [shape: bf16[3,64,512], index: 2, kind: input, shape index: {}]
  %s3 = inlined_call_operand.vmem [shape: f32[1,512], index: 3, kind: input, shape index: {}]
  %s4 = inlined_call_operand.vmem [shape: bf16[3,512,512], index: 4, kind: input, shape index: {}]
  %s5 = inlined_call_operand.vmem [shape: f32[1,512], index: 5, kind: input, shape index: {}]
  %s6 = inlined_call_operand.vmem [shape: f32[2,32], index: 6, kind: input, shape index: {}]
  %s7 = inlined_call_operand.vmem [shape: f32[512,128], index: 7, kind: input, shape index: {}]
  %s8 = inlined_call_operand.hbm [shape: f32[2,128], index: 8, kind: output, shape index: {}]
  %s9 = sld [smem:[#allocation0]]
  $region42: #{feature_extractor_forward.1} parent=0
    _
  %s11 = ssub.s32 1, %s9
  %s12 = scalar_select 0, %s11, %s9
  $region1: #{feature_extractor_forward.1} parent=0
    #allocation2 [shape = 'u8[1024]{0}', space=vmem, size = 0x400, scoped, tag = 'output window, operand 0, single buffered']
    #allocation3 [shape = 's32[1]{0}', space=sflag, size = 0x4, scoped, tag = 'scoped memory for feature_extractor_forward.1']
    %13 = vsyncpa [#allocation3], 0
    // Predicated region
    $region2: #{feature_extractor_forward.1} parent=1 // pred_check
      _
    $region3: #{feature_extractor_forward.1} parent=1 // pred_check_branch
      %15 = sbr.rel (0) target = $region5
    $region4: #{feature_extractor_forward.1} parent=1 // pred_region
      _
    $region5: #{feature_extractor_forward.1} parent=1 // pred_fallthru
      _
    // Predicated region
    $region6: #{feature_extractor_forward.1} parent=1 // pred_check
      _
    $region7: #{feature_extractor_forward.1} parent=1 // pred_check_branch
      %17 = sbr.rel (0) target = $region9
    $region8: #{feature_extractor_forward.1} parent=1 // pred_region
      _
    $region9: #{feature_extractor_forward.1} parent=1 // pred_fallthru
      _
    // Predicated region
    $region10: #{feature_extractor_forward.1} parent=1 // pred_check
      _
    $region11: #{feature_extractor_forward.1} parent=1 // pred_check_branch
      %19 = sbr.rel (0) target = $region13
    $region12: #{feature_extractor_forward.1} parent=1 // pred_region
      _
    $region13: #{feature_extractor_forward.1} parent=1 // pred_fallthru
      _
    // Predicated region
    $region14: #{feature_extractor_forward.1} parent=1 // pred_check
      _
    $region15: #{feature_extractor_forward.1} parent=1 // pred_check_branch
      %21 = sbr.rel (0) target = $region17
    $region16: #{feature_extractor_forward.1} parent=1 // pred_region
      _
    $region17: #{feature_extractor_forward.1} parent=1 // pred_fallthru
      _
    // Predicated region
    $region18: #{feature_extractor_forward.1} parent=1 // pred_check
      _
    $region19: #{feature_extractor_forward.1} parent=1 // pred_check_branch
      %23 = sbr.rel (0) target = $region21
    $region20: #{feature_extractor_forward.1} parent=1 // pred_region
      _
    $region21: #{feature_extractor_forward.1} parent=1 // pred_fallthru
      _
    // Predicated region
    $region22: #{feature_extractor_forward.1} parent=1 // pred_check
      _
    $region23: #{feature_extractor_forward.1} parent=1 // pred_check_branch
      %25 = sbr.rel (0) target = $region25
    $region24: #{feature_extractor_forward.1} parent=1 // pred_region
      _
    $region25: #{feature_extractor_forward.1} parent=1 // pred_fallthru
      _
    // Predicated region
    $region26: #{feature_extractor_forward.1} parent=1 // pred_check
      _
    $region27: #{feature_extractor_forward.1} parent=1 // pred_check_branch
      %27 = sbr.rel (0) target = $region29
    $region28: #{feature_extractor_forward.1} parent=1 // pred_region
      _
    $region29: #{feature_extractor_forward.1} parent=1 // pred_fallthru
      _
    // Predicated region
    $region30: #{feature_extractor_forward.1} parent=1 // pred_check
      _
    $region31: #{feature_extractor_forward.1} parent=1 // pred_check_branch
      %29 = sbr.rel (0) target = $region33
    $region32: #{feature_extractor_forward.1} parent=1 // pred_region
      _
    $region33: #{feature_extractor_forward.1} parent=1 // pred_fallthru
      _
    %v31 = vld [vmem:[%s0] sm:$0xf]
    %v32 = vld [vmem:[%s0 + $0x4] sm:$0xf]
    %v33 = vld [vmem:[%s0 + $0x8] sm:$0xf]
    %v34 = vld [vmem:[%s0 + $0xc] sm:$0xf]
    %v35 = vld [vmem:[%s3] sm:$0xf]
    %v36 = vld [vmem:[%s1] sm:$0xf]
    %v37 = vld [vmem:[%s1 + $0x4] sm:$0xf]
    %v38 = vld [vmem:[%s1 + $0x8] sm:$0xf]
    %v39 = vld [vmem:[%s1 + $0xc] sm:$0xf]
    %v44 = vunpack.c.l.b16 %v36
    %v45 = vunpack.c.l.b16 %v37
    %v46 = vunpack.c.l.b16 %v38
    %v47 = vunpack.c.l.b16 %v39
    %v48 = vpack.c.b16 %v45, %v44
    %v49 = vpack.c.b16 %v47, %v46
    %v54 = vunpack.c.l.b16 %v31
    %v55 = vunpack.c.l.b16 %v32
    %v56 = vunpack.c.l.b16 %v33
    %v57 = vunpack.c.l.b16 %v34
    %v58 = vpack.c.b16 %v55, %v54
    %v59 = vpack.c.b16 %v57, %v56
    %vm62 = vcmask 261120
    %v64 = vsel %vm62, %v48, 0
    %v67 = vsel %vm62, %v49, 0
    %69 = vmatprep.subr.bf16.mxu0 0
    %70 = vmatpush1.bf16.msra.mxu0 0
    %71 = vmatprep.subr.bf16.mxu0 0
    %72 = vmatpush1.bf16.msra.mxu0 0
    %73 = vmatprep.subr.bf16.mxu0 0
    %74 = vmatpush1.bf16.msra.mxu0 0
    %75 = vmatprep.subr.bf16.mxu0 0
    %76 = vmatpush1.bf16.msra.mxu0 0
    %77 = vmatprep.subr.bf16.mxu0 0
    %78 = vmatpush1.bf16.msra.mxu0 0
    %79 = vmatprep.subr.bf16.mxu0 0
    %80 = vmatpush1.bf16.msra.mxu0 0
    %81 = vmatprep.subr.bf16.mxu0 0
    %82 = vmatpush1.bf16.msra.mxu0 %v59
    %83 = vmatprep.subr.bf16.mxu0 0
    %84 = vmatpush1.bf16.msra.mxu0 %v58
    %85 = vmatprep.subr.bf16.mxu0 0
    %86 = vmatpush2.bf16.msra.mxu0 0
    %87 = vmatprep.subr.bf16.mxu0 0
    %88 = vmatpush2.bf16.msra.mxu0 0
    %89 = vmatprep.subr.bf16.mxu0 0
    %90 = vmatpush2.bf16.msra.mxu0 0
    %91 = vmatprep.subr.bf16.mxu0 0
    %92 = vmatpush2.bf16.msra.mxu0 0
    %93 = vmatprep.subr.bf16.mxu0 0
    %94 = vmatpush2.bf16.msra.mxu0 0
    %95 = vmatprep.subr.bf16.mxu0 0
    %96 = vmatpush2.bf16.msra.mxu0 0
    %97 = vmatprep.subr.bf16.mxu0 0
    %98 = vmatpush2.bf16.msra.mxu0 0
    %99 = vmatprep.subr.bf16.mxu0 0
    %100 = vmatpush2.bf16.msra.mxu0 0
    %101 = vmatprep.mubr.bf16.mxu0 0
    %102 = vmatmul.mubr.bf16.gmra.mxu0 %v64
    %v103 = vpop.f32.mrf.mxu0
    %v104 = vadd.f32 0.0, %v103
    %v105 = vpop.f32.mrf.mxu0
    %v106 = vpop.f32.mrf.mxu0
    %v107 = vadd.f32 0.0, %v106
    %v108 = vpop.f32.mrf.mxu0
    %109 = vmatprep.mubr.bf16.mxu0 0
    %110 = vmatmul.mubr.bf16.gmra.mxu0 %v67
    %v111 = vpop.f32.mrf.mxu0
    %v112 = vadd.f32 0.0, %v111
    %v113 = vpop.f32.mrf.mxu0
    %v114 = vpop.f32.mrf.mxu0
    %v115 = vadd.f32 0.0, %v114
    %v116 = vpop.f32.mrf.mxu0
    %117 = vdwg.mxu0
    %v118 = vpack.c.bf16 %v107, %v104
    %v119 = vpack.c.bf16 %v115, %v112
    %v120 = vld [vmem:[%s2] sm:$0xff]
    %v121 = vld [vmem:[%s2 + $0x8] sm:$0xff]
    %v122 = vld [vmem:[%s2 + $0x10] sm:$0xff]
    %v123 = vld [vmem:[%s2 + $0x18] sm:$0xff]
    %v124 = vld [vmem:[%s2 + $0x20] sm:$0xff]
    %v125 = vld [vmem:[%s2 + $0x28] sm:$0xff]
    %v126 = vld [vmem:[%s2 + $0x30] sm:$0xff]
    %v127 = vld [vmem:[%s2 + $0x38] sm:$0xff]
    %v128 = vld [vmem:[%s2 + $0x40] sm:$0xff]
    %v129 = vld [vmem:[%s2 + $0x48] sm:$0xff]
    %v130 = vld [vmem:[%s2 + $0x50] sm:$0xff]
    %v131 = vld [vmem:[%s2 + $0x58] sm:$0xff]
    %v132 = vld [vmem:[%s2 + $0x60] sm:$0xff]
    %v133 = vld [vmem:[%s2 + $0x68] sm:$0xff]
    %v134 = vld [vmem:[%s2 + $0x70] sm:$0xff]
    %v135 = vld [vmem:[%s2 + $0x78] sm:$0xff]
    %s136 = scalar_lea.vmem %s2, 128
    %v137 = vld [vmem:[%s136] sm:$0xff]
    %v138 = vld [vmem:[%s136 + $0x8] sm:$0xff]
    %v139 = vld [vmem:[%s136 + $0x10] sm:$0xff]
    %v140 = vld [vmem:[%s136 + $0x18] sm:$0xff]
    %v141 = vld [vmem:[%s136 + $0x20] sm:$0xff]
    %v142 = vld [vmem:[%s136 + $0x28] sm:$0xff]
    %v143 = vld [vmem:[%s136 + $0x30] sm:$0xff]
    %v144 = vld [vmem:[%s136 + $0x38] sm:$0xff]
    %v145 = vld [vmem:[%s136 + $0x40] sm:$0xff]
    %v146 = vld [vmem:[%s136 + $0x48] sm:$0xff]
    %v147 = vld [vmem:[%s136 + $0x50] sm:$0xff]
    %v148 = vld [vmem:[%s136 + $0x58] sm:$0xff]
    %v149 = vld [vmem:[%s136 + $0x60] sm:$0xff]
    %v150 = vld [vmem:[%s136 + $0x68] sm:$0xff]
    %v151 = vld [vmem:[%s136 + $0x70] sm:$0xff]
    %v152 = vld [vmem:[%s136 + $0x78] sm:$0xff]
    %v169 = vunpack.c.l.b16 %v137
    %v170 = vunpack.c.h.b16 %v137
    %v171 = vunpack.c.l.b16 %v138
    %v172 = vunpack.c.h.b16 %v138
    %v173 = vunpack.c.l.b16 %v139
    %v174 = vunpack.c.h.b16 %v139
    %v175 = vunpack.c.l.b16 %v140
    %v176 = vunpack.c.h.b16 %v140
    %v177 = vunpack.c.l.b16 %v141
    %v178 = vunpack.c.h.b16 %v141
    %v179 = vunpack.c.l.b16 %v142
    %v180 = vunpack.c.h.b16 %v142
    %v181 = vunpack.c.l.b16 %v143
    %v182 = vunpack.c.h.b16 %v143
    %v183 = vunpack.c.l.b16 %v144
    %v184 = vunpack.c.h.b16 %v144
    %v185 = vunpack.c.l.b16 %v145
    %v186 = vunpack.c.h.b16 %v145
    %v187 = vunpack.c.l.b16 %v146
    %v188 = vunpack.c.h.b16 %v146
    %v189 = vunpack.c.l.b16 %v147
    %v190 = vunpack.c.h.b16 %v147
    %v191 = vunpack.c.l.b16 %v148
    %v192 = vunpack.c.h.b16 %v148
    %v193 = vunpack.c.l.b16 %v149
    %v194 = vunpack.c.h.b16 %v149
    %v195 = vunpack.c.l.b16 %v150
    %v196 = vunpack.c.h.b16 %v150
    %v197 = vunpack.c.l.b16 %v151
    %v198 = vunpack.c.h.b16 %v151
    %v199 = vunpack.c.l.b16 %v152
    %v200 = vunpack.c.h.b16 %v152
    %v201 = vpack.c.b16 %v173, %v169
    %v202 = vpack.c.b16 %v174, %v170
    %v203 = vpack.c.b16 %v175, %v171
    %v204 = vpack.c.b16 %v176, %v172
    %v205 = vpack.c.b16 %v181, %v177
    %v206 = vpack.c.b16 %v182, %v178
    %v207 = vpack.c.b16 %v183, %v179
    %v208 = vpack.c.b16 %v184, %v180
    %v209 = vpack.c.b16 %v189, %v185
    %v210 = vpack.c.b16 %v190, %v186
    %v211 = vpack.c.b16 %v191, %v187
    %v212 = vpack.c.b16 %v192, %v188
    %v213 = vpack.c.b16 %v197, %v193
    %v214 = vpack.c.b16 %v198, %v194
    %v215 = vpack.c.b16 %v199, %v195
    %v216 = vpack.c.b16 %v200, %v196
    %vm233 = vcmask 523264
    %v235 = vsel %vm233, %v58, 0
    %v238 = vsel %vm233, %v59, 0
    %240 = vmatprep.subr.bf16.mxu0 0
    %241 = vmatpush1.bf16.msra.mxu0 0
    %242 = vmatprep.subr.bf16.mxu0 0
    %243 = vmatpush1.bf16.msra.mxu0 0
    %244 = vmatprep.subr.bf16.mxu0 0
    %245 = vmatpush1.bf16.msra.mxu0 0
    %246 = vmatprep.subr.bf16.mxu0 0
    %247 = vmatpush1.bf16.msra.mxu0 0
    %248 = vmatprep.subr.bf16.mxu0 %v214
    %249 = vmatpush1.bf16.msra.mxu0 %v213
    %250 = vmatprep.subr.bf16.mxu0 %v210
    %251 = vmatpush1.bf16.msra.mxu0 %v209
    %252 = vmatprep.subr.bf16.mxu0 %v206
    %253 = vmatpush1.bf16.msra.mxu0 %v205
    %254 = vmatprep.subr.bf16.mxu0 %v202
    %255 = vmatpush1.bf16.msra.mxu0 %v201
    %256 = vmatprep.subr.bf16.mxu0 0
    %257 = vmatpush2.bf16.msra.mxu0 0
    %258 = vmatprep.subr.bf16.mxu0 0
    %259 = vmatpush2.bf16.msra.mxu0 0
    %260 = vmatprep.subr.bf16.mxu0 0
    %261 = vmatpush2.bf16.msra.mxu0 0
    %262 = vmatprep.subr.bf16.mxu0 0
    %263 = vmatpush2.bf16.msra.mxu0 0
    %264 = vmatprep.subr.bf16.mxu0 0
    %265 = vmatpush2.bf16.msra.mxu0 0
    %266 = vmatprep.subr.bf16.mxu0 0
    %267 = vmatpush2.bf16.msra.mxu0 0
    %268 = vmatprep.subr.bf16.mxu0 0
    %269 = vmatpush2.bf16.msra.mxu0 0
    %270 = vmatprep.subr.bf16.mxu0 0
    %271 = vmatpush2.bf16.msra.mxu0 0
    %272 = vmatprep.mubr.bf16.mxu0 0
    %273 = vmatmul.mubr.bf16.gmra.mxu0 %v235
    %v274 = vpop.f32.mrf.mxu0
    %v275 = vadd.f32 0.0, %v274
    %v276 = vpop.f32.mrf.mxu0
    %v277 = vadd.f32 0.0, %v276
    %v278 = vpop.f32.mrf.mxu0
    %v279 = vadd.f32 0.0, %v278
    %v280 = vpop.f32.mrf.mxu0
    %v281 = vadd.f32 0.0, %v280
    %282 = vmatprep.mubr.bf16.mxu0 0
    %283 = vmatmul.mubr.bf16.gmra.mxu0 %v238
    %v284 = vpop.f32.mrf.mxu0
    %v285 = vadd.f32 0.0, %v284
    %v286 = vpop.f32.mrf.mxu0
    %v287 = vadd.f32 0.0, %v286
    %v288 = vpop.f32.mrf.mxu0
    %v289 = vadd.f32 0.0, %v288
    %v290 = vpop.f32.mrf.mxu0
    %v291 = vadd.f32 0.0, %v290
    %292 = vdwg.mxu0
    %293 = vmatprep.subr.bf16.mxu0 0
    %294 = vmatpush1.bf16.msra.mxu0 0
    %295 = vmatprep.subr.bf16.mxu0 0
    %296 = vmatpush1.bf16.msra.mxu0 0
    %297 = vmatprep.subr.bf16.mxu0 0
    %298 = vmatpush1.bf16.msra.mxu0 0
    %299 = vmatprep.subr.bf16.mxu0 0
    %300 = vmatpush1.bf16.msra.mxu0 0
    %301 = vmatprep.subr.bf16.mxu0 %v216
    %302 = vmatpush1.bf16.msra.mxu0 %v215
    %303 = vmatprep.subr.bf16.mxu0 %v212
    %304 = vmatpush1.bf16.msra.mxu0 %v211
    %305 = vmatprep.subr.bf16.mxu0 %v208
    %306 = vmatpush1.bf16.msra.mxu0 %v207
    %307 = vmatprep.subr.bf16.mxu0 %v204
    %308 = vmatpush1.bf16.msra.mxu0 %v203
    %309 = vmatprep.subr.bf16.mxu0 0
    %310 = vmatpush2.bf16.msra.mxu0 0
    %311 = vmatprep.subr.bf16.mxu0 0
    %312 = vmatpush2.bf16.msra.mxu0 0
    %313 = vmatprep.subr.bf16.mxu0 0
    %314 = vmatpush2.bf16.msra.mxu0 0
    %315 = vmatprep.subr.bf16.mxu0 0
    %316 = vmatpush2.bf16.msra.mxu0 0
    %317 = vmatprep.subr.bf16.mxu0 0
    %318 = vmatpush2.bf16.msra.mxu0 0
    %319 = vmatprep.subr.bf16.mxu0 0
    %320 = vmatpush2.bf16.msra.mxu0 0
    %321 = vmatprep.subr.bf16.mxu0 0
    %322 = vmatpush2.bf16.msra.mxu0 0
    %323 = vmatprep.subr.bf16.mxu0 0
    %324 = vmatpush2.bf16.msra.mxu0 0
    %325 = vmatprep.mubr.bf16.mxu0 0
    %326 = vmatmul.mubr.bf16.gmra.mxu0 %v235
    %v327 = vpop.f32.mrf.mxu0
    %v328 = vadd.f32 0.0, %v327
    %v329 = vpop.f32.mrf.mxu0
    %v330 = vadd.f32 0.0, %v329
    %v331 = vpop.f32.mrf.mxu0
    %v332 = vadd.f32 0.0, %v331
    %v333 = vpop.f32.mrf.mxu0
    %v334 = vadd.f32 0.0, %v333
    %335 = vmatprep.mubr.bf16.mxu0 0
    %336 = vmatmul.mubr.bf16.gmra.mxu0 %v238
    %v337 = vpop.f32.mrf.mxu0
    %v338 = vadd.f32 0.0, %v337
    %v339 = vpop.f32.mrf.mxu0
    %v340 = vadd.f32 0.0, %v339
    %v341 = vpop.f32.mrf.mxu0
    %v342 = vadd.f32 0.0, %v341
    %v343 = vpop.f32.mrf.mxu0
    %v344 = vadd.f32 0.0, %v343
    %345 = vdwg.mxu0
    %v362 = vunpack.c.l.b16 %v120
    %v363 = vunpack.c.h.b16 %v120
    %v364 = vunpack.c.l.b16 %v121
    %v365 = vunpack.c.h.b16 %v121
    %v366 = vunpack.c.l.b16 %v122
    %v367 = vunpack.c.h.b16 %v122
    %v368 = vunpack.c.l.b16 %v123
    %v369 = vunpack.c.h.b16 %v123
    %v370 = vunpack.c.l.b16 %v124
    %v371 = vunpack.c.h.b16 %v124
    %v372 = vunpack.c.l.b16 %v125
    %v373 = vunpack.c.h.b16 %v125
    %v374 = vunpack.c.l.b16 %v126
    %v375 = vunpack.c.h.b16 %v126
    %v376 = vunpack.c.l.b16 %v127
    %v377 = vunpack.c.h.b16 %v127
    %v378 = vunpack.c.l.b16 %v128
    %v379 = vunpack.c.h.b16 %v128
    %v380 = vunpack.c.l.b16 %v129
    %v381 = vunpack.c.h.b16 %v129
    %v382 = vunpack.c.l.b16 %v130
    %v383 = vunpack.c.h.b16 %v130
    %v384 = vunpack.c.l.b16 %v131
    %v385 = vunpack.c.h.b16 %v131
    %v386 = vunpack.c.l.b16 %v132
    %v387 = vunpack.c.h.b16 %v132
    %v388 = vunpack.c.l.b16 %v133
    %v389 = vunpack.c.h.b16 %v133
    %v390 = vunpack.c.l.b16 %v134
    %v391 = vunpack.c.h.b16 %v134
    %v392 = vunpack.c.l.b16 %v135
    %v393 = vunpack.c.h.b16 %v135
    %v394 = vpack.c.b16 %v366, %v362
    %v395 = vpack.c.b16 %v367, %v363
    %v396 = vpack.c.b16 %v368, %v364
    %v397 = vpack.c.b16 %v369, %v365
    %v398 = vpack.c.b16 %v374, %v370
    %v399 = vpack.c.b16 %v375, %v371
    %v400 = vpack.c.b16 %v376, %v372
    %v401 = vpack.c.b16 %v377, %v373
    %v402 = vpack.c.b16 %v382, %v378
    %v403 = vpack.c.b16 %v383, %v379
    %v404 = vpack.c.b16 %v384, %v380
    %v405 = vpack.c.b16 %v385, %v381
    %v406 = vpack.c.b16 %v390, %v386
    %v407 = vpack.c.b16 %v391, %v387
    %v408 = vpack.c.b16 %v392, %v388
    %v409 = vpack.c.b16 %v393, %v389
    %v427 = vsel %vm233, %v118, 0
    %v430 = vsel %vm233, %v119, 0
    %432 = vmatprep.subr.bf16.mxu0 0
    %433 = vmatpush1.bf16.msra.mxu0 0
    %434 = vmatprep.subr.bf16.mxu0 0
    %435 = vmatpush1.bf16.msra.mxu0 0
    %436 = vmatprep.subr.bf16.mxu0 0
    %437 = vmatpush1.bf16.msra.mxu0 0
    %438 = vmatprep.subr.bf16.mxu0 0
    %439 = vmatpush1.bf16.msra.mxu0 0
    %440 = vmatprep.subr.bf16.mxu0 %v407
    %441 = vmatpush1.bf16.msra.mxu0 %v406
    %442 = vmatprep.subr.bf16.mxu0 %v403
    %443 = vmatpush1.bf16.msra.mxu0 %v402
    %444 = vmatprep.subr.bf16.mxu0 %v399
    %445 = vmatpush1.bf16.msra.mxu0 %v398
    %446 = vmatprep.subr.bf16.mxu0 %v395
    %447 = vmatpush1.bf16.msra.mxu0 %v394
    %448 = vmatprep.subr.bf16.mxu0 0
    %449 = vmatpush2.bf16.msra.mxu0 0
    %450 = vmatprep.subr.bf16.mxu0 0
    %451 = vmatpush2.bf16.msra.mxu0 0
    %452 = vmatprep.subr.bf16.mxu0 0
    %453 = vmatpush2.bf16.msra.mxu0 0
    %454 = vmatprep.subr.bf16.mxu0 0
    %455 = vmatpush2.bf16.msra.mxu0 0
    %456 = vmatprep.subr.bf16.mxu0 0
    %457 = vmatpush2.bf16.msra.mxu0 0
    %458 = vmatprep.subr.bf16.mxu0 0
    %459 = vmatpush2.bf16.msra.mxu0 0
    %460 = vmatprep.subr.bf16.mxu0 0
    %461 = vmatpush2.bf16.msra.mxu0 0
    %462 = vmatprep.subr.bf16.mxu0 0
    %463 = vmatpush2.bf16.msra.mxu0 0
    %464 = vmatprep.mubr.bf16.mxu0 0
    %465 = vmatmul.mubr.bf16.gmra.mxu0 %v427
    %v466 = vpop.f32.mrf.mxu0
    %v467 = vadd.f32 %v275, %v466
    %v468 = vpop.f32.mrf.mxu0
    %v469 = vadd.f32 %v277, %v468
    %v470 = vpop.f32.mrf.mxu0
    %v471 = vadd.f32 %v279, %v470
    %v472 = vpop.f32.mrf.mxu0
    %v473 = vadd.f32 %v281, %v472
    %474 = vmatprep.mubr.bf16.mxu0 0
    %475 = vmatmul.mubr.bf16.gmra.mxu0 %v430
    %v476 = vpop.f32.mrf.mxu0
    %v477 = vadd.f32 %v285, %v476
    %v478 = vpop.f32.mrf.mxu0
    %v479 = vadd.f32 %v287, %v478
    %v480 = vpop.f32.mrf.mxu0
    %v481 = vadd.f32 %v289, %v480
    %v482 = vpop.f32.mrf.mxu0
    %v483 = vadd.f32 %v291, %v482
    %484 = vdwg.mxu0
    %485 = vmatprep.subr.bf16.mxu0 0
    %486 = vmatpush1.bf16.msra.mxu0 0
    %487 = vmatprep.subr.bf16.mxu0 0
    %488 = vmatpush1.bf16.msra.mxu0 0
    %489 = vmatprep.subr.bf16.mxu0 0
    %490 = vmatpush1.bf16.msra.mxu0 0
    %491 = vmatprep.subr.bf16.mxu0 0
    %492 = vmatpush1.bf16.msra.mxu0 0
    %493 = vmatprep.subr.bf16.mxu0 %v409
    %494 = vmatpush1.bf16.msra.mxu0 %v408
    %495 = vmatprep.subr.bf16.mxu0 %v405
    %496 = vmatpush1.bf16.msra.mxu0 %v404
    %497 = vmatprep.subr.bf16.mxu0 %v401
    %498 = vmatpush1.bf16.msra.mxu0 %v400
    %499 = vmatprep.subr.bf16.mxu0 %v397
    %500 = vmatpush1.bf16.msra.mxu0 %v396
    %501 = vmatprep.subr.bf16.mxu0 0
    %502 = vmatpush2.bf16.msra.mxu0 0
    %503 = vmatprep.subr.bf16.mxu0 0
    %504 = vmatpush2.bf16.msra.mxu0 0
    %505 = vmatprep.subr.bf16.mxu0 0
    %506 = vmatpush2.bf16.msra.mxu0 0
    %507 = vmatprep.subr.bf16.mxu0 0
    %508 = vmatpush2.bf16.msra.mxu0 0
    %509 = vmatprep.subr.bf16.mxu0 0
    %510 = vmatpush2.bf16.msra.mxu0 0
    %511 = vmatprep.subr.bf16.mxu0 0
    %512 = vmatpush2.bf16.msra.mxu0 0
    %513 = vmatprep.subr.bf16.mxu0 0
    %514 = vmatpush2.bf16.msra.mxu0 0
    %515 = vmatprep.subr.bf16.mxu0 0
    %516 = vmatpush2.bf16.msra.mxu0 0
    %517 = vmatprep.mubr.bf16.mxu0 0
    %518 = vmatmul.mubr.bf16.gmra.mxu0 %v427
    %v519 = vpop.f32.mrf.mxu0
    %v520 = vadd.f32 %v328, %v519
    %v521 = vpop.f32.mrf.mxu0
    %v522 = vadd.f32 %v330, %v521
    %v523 = vpop.f32.mrf.mxu0
    %v524 = vadd.f32 %v332, %v523
    %v525 = vpop.f32.mrf.mxu0
    %v526 = vadd.f32 %v334, %v525
    %527 = vmatprep.mubr.bf16.mxu0 0
    %528 = vmatmul.mubr.bf16.gmra.mxu0 %v430
    %v529 = vpop.f32.mrf.mxu0
    %v530 = vadd.f32 %v338, %v529
    %v531 = vpop.f32.mrf.mxu0
    %v532 = vadd.f32 %v340, %v531
    %v533 = vpop.f32.mrf.mxu0
    %v534 = vadd.f32 %v342, %v533
    %v535 = vpop.f32.mrf.mxu0
    %v536 = vadd.f32 %v344, %v535
    %537 = vdwg.mxu0
    %s538 = scalar_lea.vmem %s1, 32
    %v539 = vld [vmem:[%s538] sm:$0xf]
    %v540 = vld [vmem:[%s538 + $0x4] sm:$0xf]
    %v541 = vld [vmem:[%s538 + $0x8] sm:$0xf]
    %v542 = vld [vmem:[%s538 + $0xc] sm:$0xf]
    %v547 = vunpack.c.l.b16 %v539
    %v548 = vunpack.c.l.b16 %v540
    %v549 = vunpack.c.l.b16 %v541
    %v550 = vunpack.c.l.b16 %v542
    %v551 = vpack.c.b16 %v548, %v547
    %v552 = vpack.c.b16 %v550, %v549
    %v554 = vsel %vm62, %v551, 0
    %v557 = vsel %vm62, %v552, 0
    %559 = vmatprep.subr.bf16.mxu0 0
    %560 = vmatpush1.bf16.msra.mxu0 0
    %561 = vmatprep.subr.bf16.mxu0 0
    %562 = vmatpush1.bf16.msra.mxu0 0
    %563 = vmatprep.subr.bf16.mxu0 0
    %564 = vmatpush1.bf16.msra.mxu0 0
    %565 = vmatprep.subr.bf16.mxu0 0
    %566 = vmatpush1.bf16.msra.mxu0 0
    %567 = vmatprep.subr.bf16.mxu0 0
    %568 = vmatpush1.bf16.msra.mxu0 0
    %569 = vmatprep.subr.bf16.mxu0 0
    %570 = vmatpush1.bf16.msra.mxu0 0
    %571 = vmatprep.subr.bf16.mxu0 0
    %572 = vmatpush1.bf16.msra.mxu0 %v59
    %573 = vmatprep.subr.bf16.mxu0 0
    %574 = vmatpush1.bf16.msra.mxu0 %v58
    %575 = vmatprep.subr.bf16.mxu0 0
    %576 = vmatpush2.bf16.msra.mxu0 0
    %577 = vmatprep.subr.bf16.mxu0 0
    %578 = vmatpush2.bf16.msra.mxu0 0
    %579 = vmatprep.subr.bf16.mxu0 0
    %580 = vmatpush2.bf16.msra.mxu0 0
    %581 = vmatprep.subr.bf16.mxu0 0
    %582 = vmatpush2.bf16.msra.mxu0 0
    %583 = vmatprep.subr.bf16.mxu0 0
    %584 = vmatpush2.bf16.msra.mxu0 0
    %585 = vmatprep.subr.bf16.mxu0 0
    %586 = vmatpush2.bf16.msra.mxu0 0
    %587 = vmatprep.subr.bf16.mxu0 0
    %588 = vmatpush2.bf16.msra.mxu0 0
    %589 = vmatprep.subr.bf16.mxu0 0
    %590 = vmatpush2.bf16.msra.mxu0 0
    %591 = vmatprep.mubr.bf16.mxu0 0
    %592 = vmatmul.mubr.bf16.gmra.mxu0 %v554
    %v593 = vpop.f32.mrf.mxu0
    %v594 = vadd.f32 0.0, %v593
    %v595 = vpop.f32.mrf.mxu0
    %v596 = vpop.f32.mrf.mxu0
    %v597 = vadd.f32 0.0, %v596
    %v598 = vpop.f32.mrf.mxu0
    %599 = vmatprep.mubr.bf16.mxu0 0
    %600 = vmatmul.mubr.bf16.gmra.mxu0 %v557
    %v601 = vpop.f32.mrf.mxu0
    %v602 = vadd.f32 0.0, %v601
    %v603 = vpop.f32.mrf.mxu0
    %v604 = vpop.f32.mrf.mxu0
    %v605 = vadd.f32 0.0, %v604
    %v606 = vpop.f32.mrf.mxu0
    %607 = vdwg.mxu0
    %v608 = vpack.c.bf16 %v597, %v594
    %v609 = vpack.c.bf16 %v605, %v602
    %s610 = scalar_lea.vmem %s2, 256
    %v611 = vld [vmem:[%s610] sm:$0xff]
    %v612 = vld [vmem:[%s610 + $0x8] sm:$0xff]
    %v613 = vld [vmem:[%s610 + $0x10] sm:$0xff]
    %v614 = vld [vmem:[%s610 + $0x18] sm:$0xff]
    %v615 = vld [vmem:[%s610 + $0x20] sm:$0xff]
    %v616 = vld [vmem:[%s610 + $0x28] sm:$0xff]
    %v617 = vld [vmem:[%s610 + $0x30] sm:$0xff]
    %v618 = vld [vmem:[%s610 + $0x38] sm:$0xff]
    %v619 = vld [vmem:[%s610 + $0x40] sm:$0xff]
    %v620 = vld [vmem:[%s610 + $0x48] sm:$0xff]
    %v621 = vld [vmem:[%s610 + $0x50] sm:$0xff]
    %v622 = vld [vmem:[%s610 + $0x58] sm:$0xff]
    %v623 = vld [vmem:[%s610 + $0x60] sm:$0xff]
    %v624 = vld [vmem:[%s610 + $0x68] sm:$0xff]
    %v625 = vld [vmem:[%s610 + $0x70] sm:$0xff]
    %v626 = vld [vmem:[%s610 + $0x78] sm:$0xff]
    %v643 = vunpack.c.l.b16 %v611
    %v644 = vunpack.c.h.b16 %v611
    %v645 = vunpack.c.l.b16 %v612
    %v646 = vunpack.c.h.b16 %v612
    %v647 = vunpack.c.l.b16 %v613
    %v648 = vunpack.c.h.b16 %v613
    %v649 = vunpack.c.l.b16 %v614
    %v650 = vunpack.c.h.b16 %v614
    %v651 = vunpack.c.l.b16 %v615
    %v652 = vunpack.c.h.b16 %v615
    %v653 = vunpack.c.l.b16 %v616
    %v654 = vunpack.c.h.b16 %v616
    %v655 = vunpack.c.l.b16 %v617
    %v656 = vunpack.c.h.b16 %v617
    %v657 = vunpack.c.l.b16 %v618
    %v658 = vunpack.c.h.b16 %v618
    %v659 = vunpack.c.l.b16 %v619
    %v660 = vunpack.c.h.b16 %v619
    %v661 = vunpack.c.l.b16 %v620
    %v662 = vunpack.c.h.b16 %v620
    %v663 = vunpack.c.l.b16 %v621
    %v664 = vunpack.c.h.b16 %v621
    %v665 = vunpack.c.l.b16 %v622
    %v666 = vunpack.c.h.b16 %v622
    %v667 = vunpack.c.l.b16 %v623
    %v668 = vunpack.c.h.b16 %v623
    %v669 = vunpack.c.l.b16 %v624
    %v670 = vunpack.c.h.b16 %v624
    %v671 = vunpack.c.l.b16 %v625
    %v672 = vunpack.c.h.b16 %v625
    %v673 = vunpack.c.l.b16 %v626
    %v674 = vunpack.c.h.b16 %v626
    %v675 = vpack.c.b16 %v647, %v643
    %v676 = vpack.c.b16 %v648, %v644
    %v677 = vpack.c.b16 %v649, %v645
    %v678 = vpack.c.b16 %v650, %v646
    %v679 = vpack.c.b16 %v655, %v651
    %v680 = vpack.c.b16 %v656, %v652
    %v681 = vpack.c.b16 %v657, %v653
    %v682 = vpack.c.b16 %v658, %v654
    %v683 = vpack.c.b16 %v663, %v659
    %v684 = vpack.c.b16 %v664, %v660
    %v685 = vpack.c.b16 %v665, %v661
    %v686 = vpack.c.b16 %v666, %v662
    %v687 = vpack.c.b16 %v671, %v667
    %v688 = vpack.c.b16 %v672, %v668
    %v689 = vpack.c.b16 %v673, %v669
    %v690 = vpack.c.b16 %v674, %v670
    %v708 = vsel %vm233, %v608, 0
    %v711 = vsel %vm233, %v609, 0
    %713 = vmatprep.subr.bf16.mxu0 0
    %714 = vmatpush1.bf16.msra.mxu0 0
    %715 = vmatprep.subr.bf16.mxu0 0
    %716 = vmatpush1.bf16.msra.mxu0 0
    %717 = vmatprep.subr.bf16.mxu0 0
    %718 = vmatpush1.bf16.msra.mxu0 0
    %719 = vmatprep.subr.bf16.mxu0 0
    %720 = vmatpush1.bf16.msra.mxu0 0
    %721 = vmatprep.subr.bf16.mxu0 %v688
    %722 = vmatpush1.bf16.msra.mxu0 %v687
    %723 = vmatprep.subr.bf16.mxu0 %v684
    %724 = vmatpush1.bf16.msra.mxu0 %v683
    %725 = vmatprep.subr.bf16.mxu0 %v680
    %726 = vmatpush1.bf16.msra.mxu0 %v679
    %727 = vmatprep.subr.bf16.mxu0 %v676
    %728 = vmatpush1.bf16.msra.mxu0 %v675
    %729 = vmatprep.subr.bf16.mxu0 0
    %730 = vmatpush2.bf16.msra.mxu0 0
    %731 = vmatprep.subr.bf16.mxu0 0
    %732 = vmatpush2.bf16.msra.mxu0 0
    %733 = vmatprep.subr.bf16.mxu0 0
    %734 = vmatpush2.bf16.msra.mxu0 0
    %735 = vmatprep.subr.bf16.mxu0 0
    %736 = vmatpush2.bf16.msra.mxu0 0
    %737 = vmatprep.subr.bf16.mxu0 0
    %738 = vmatpush2.bf16.msra.mxu0 0
    %739 = vmatprep.subr.bf16.mxu0 0
    %740 = vmatpush2.bf16.msra.mxu0 0
    %741 = vmatprep.subr.bf16.mxu0 0
    %742 = vmatpush2.bf16.msra.mxu0 0
    %743 = vmatprep.subr.bf16.mxu0 0
    %744 = vmatpush2.bf16.msra.mxu0 0
    %745 = vmatprep.mubr.bf16.mxu0 0
    %746 = vmatmul.mubr.bf16.gmra.mxu0 %v708
    %v747 = vpop.f32.mrf.mxu0
    %v748 = vadd.f32 0.0, %v747
    %v749 = vpop.f32.mrf.mxu0
    %v750 = vadd.f32 0.0, %v749
    %v751 = vpop.f32.mrf.mxu0
    %v752 = vadd.f32 0.0, %v751
    %v753 = vpop.f32.mrf.mxu0
    %v754 = vadd.f32 0.0, %v753
    %755 = vmatprep.mubr.bf16.mxu0 0
    %756 = vmatmul.mubr.bf16.gmra.mxu0 %v711
    %v757 = vpop.f32.mrf.mxu0
    %v758 = vadd.f32 0.0, %v757
    %v759 = vpop.f32.mrf.mxu0
    %v760 = vadd.f32 0.0, %v759
    %v761 = vpop.f32.mrf.mxu0
    %v762 = vadd.f32 0.0, %v761
    %v763 = vpop.f32.mrf.mxu0
    %v764 = vadd.f32 0.0, %v763
    %765 = vdwg.mxu0
    %766 = vmatprep.subr.bf16.mxu0 0
    %767 = vmatpush1.bf16.msra.mxu0 0
    %768 = vmatprep.subr.bf16.mxu0 0
    %769 = vmatpush1.bf16.msra.mxu0 0
    %770 = vmatprep.subr.bf16.mxu0 0
    %771 = vmatpush1.bf16.msra.mxu0 0
    %772 = vmatprep.subr.bf16.mxu0 0
    %773 = vmatpush1.bf16.msra.mxu0 0
    %774 = vmatprep.subr.bf16.mxu0 %v690
    %775 = vmatpush1.bf16.msra.mxu0 %v689
    %776 = vmatprep.subr.bf16.mxu0 %v686
    %777 = vmatpush1.bf16.msra.mxu0 %v685
    %778 = vmatprep.subr.bf16.mxu0 %v682
    %779 = vmatpush1.bf16.msra.mxu0 %v681
    %780 = vmatprep.subr.bf16.mxu0 %v678
    %781 = vmatpush1.bf16.msra.mxu0 %v677
    %782 = vmatprep.subr.bf16.mxu0 0
    %783 = vmatpush2.bf16.msra.mxu0 0
    %784 = vmatprep.subr.bf16.mxu0 0
    %785 = vmatpush2.bf16.msra.mxu0 0
    %786 = vmatprep.subr.bf16.mxu0 0
    %787 = vmatpush2.bf16.msra.mxu0 0
    %788 = vmatprep.subr.bf16.mxu0 0
    %789 = vmatpush2.bf16.msra.mxu0 0
    %790 = vmatprep.subr.bf16.mxu0 0
    %791 = vmatpush2.bf16.msra.mxu0 0
    %792 = vmatprep.subr.bf16.mxu0 0
    %793 = vmatpush2.bf16.msra.mxu0 0
    %794 = vmatprep.subr.bf16.mxu0 0
    %795 = vmatpush2.bf16.msra.mxu0 0
    %796 = vmatprep.subr.bf16.mxu0 0
    %797 = vmatpush2.bf16.msra.mxu0 0
    %798 = vmatprep.mubr.bf16.mxu0 0
    %799 = vmatmul.mubr.bf16.gmra.mxu0 %v708
    %v800 = vpop.f32.mrf.mxu0
    %v801 = vadd.f32 0.0, %v800
    %v802 = vpop.f32.mrf.mxu0
    %v803 = vadd.f32 0.0, %v802
    %v804 = vpop.f32.mrf.mxu0
    %v805 = vadd.f32 0.0, %v804
    %v806 = vpop.f32.mrf.mxu0
    %v807 = vadd.f32 0.0, %v806
    %808 = vmatprep.mubr.bf16.mxu0 0
    %809 = vmatmul.mubr.bf16.gmra.mxu0 %v711
    %v810 = vpop.f32.mrf.mxu0
    %v811 = vadd.f32 0.0, %v810
    %v812 = vpop.f32.mrf.mxu0
    %v813 = vadd.f32 0.0, %v812
    %v814 = vpop.f32.mrf.mxu0
    %v815 = vadd.f32 0.0, %v814
    %v816 = vpop.f32.mrf.mxu0
    %v817 = vadd.f32 0.0, %v816
    %818 = vdwg.mxu0
    %v819 = vadd.f32 %v467, %v748
    %v820 = vadd.f32 %v469, %v750
    %v821 = vadd.f32 %v520, %v801
    %v822 = vadd.f32 %v522, %v803
    %v823 = vadd.f32 %v471, %v752
    %v824 = vadd.f32 %v473, %v754
    %v825 = vadd.f32 %v524, %v805
    %v826 = vadd.f32 %v526, %v807
    %v827 = vadd.f32 %v477, %v758
    %v828 = vadd.f32 %v479, %v760
    %v829 = vadd.f32 %v530, %v811
    %v830 = vadd.f32 %v532, %v813
    %v831 = vadd.f32 %v481, %v762
    %v832 = vadd.f32 %v483, %v764
    %v833 = vadd.f32 %v534, %v815
    %v834 = vadd.f32 %v536, %v817
    %v836 = vlaneseq
    %v837 = vshrl.u32 %v836, 7
    %v838 = vsub.s32 0, %v837
    %v839 = vrot.slane %v35, %v838
    %v840 = vlaneseq
    %v841 = vshrl.u32 %v840, 7
    %v842 = vsub.s32 1, %v841
    %v843 = vrot.slane %v35, %v842
    %v844 = vlaneseq
    %v845 = vshrl.u32 %v844, 7
    %v846 = vsub.s32 2, %v845
    %v847 = vrot.slane %v35, %v846
    %v848 = vlaneseq
    %v849 = vshrl.u32 %v848, 7
    %v850 = vsub.s32 3, %v849
    %v851 = vrot.slane %v35, %v850
    %v856 = vadd.f32 %v819, %v839
    %v857 = vadd.f32 %v820, %v843
    %v858 = vadd.f32 %v821, %v847
    %v859 = vadd.f32 %v822, %v851
    %v860 = vadd.f32 %v823, %v839
    %v861 = vadd.f32 %v824, %v843
    %v862 = vadd.f32 %v825, %v847
    %v863 = vadd.f32 %v826, %v851
    %v864 = vadd.f32 %v827, %v839
    %v865 = vadd.f32 %v828, %v843
    %v866 = vadd.f32 %v829, %v847
    %v867 = vadd.f32 %v830, %v851
    %v868 = vadd.f32 %v831, %v839
    %v869 = vadd.f32 %v832, %v843
    %v870 = vadd.f32 %v833, %v847
    %v871 = vadd.f32 %v834, %v851
    %v872 = vmax.f32 %v856, 0.0
    %v873 = vmax.f32 %v857, 0.0
    %v874 = vmax.f32 %v858, 0.0
    %v875 = vmax.f32 %v859, 0.0
    %v876 = vmax.f32 %v860, 0.0
    %v877 = vmax.f32 %v861, 0.0
    %v878 = vmax.f32 %v862, 0.0
    %v879 = vmax.f32 %v863, 0.0
    %v880 = vmax.f32 %v864, 0.0
    %v881 = vmax.f32 %v865, 0.0
    %v882 = vmax.f32 %v866, 0.0
    %v883 = vmax.f32 %v867, 0.0
    %v884 = vmax.f32 %v868, 0.0
    %v885 = vmax.f32 %v869, 0.0
    %v886 = vmax.f32 %v870, 0.0
    %v887 = vmax.f32 %v871, 0.0
    %v888 = vpack.c.bf16 %v876, %v872
    %v889 = vpack.c.bf16 %v877, %v873
    %v890 = vpack.c.bf16 %v878, %v874
    %v891 = vpack.c.bf16 %v879, %v875
    %v892 = vpack.c.bf16 %v884, %v880
    %v893 = vpack.c.bf16 %v885, %v881
    %v894 = vpack.c.bf16 %v886, %v882
    %v895 = vpack.c.bf16 %v887, %v883
    %v896 = vld [vmem:[%s5] sm:$0xf]
    %897 = vmatprep.subr.bf16.mxu0 0
    %898 = vmatpush1.bf16.msra.mxu0 0
    %899 = vmatprep.subr.bf16.mxu0 0
    %900 = vmatpush1.bf16.msra.mxu0 0
    %901 = vmatprep.subr.bf16.mxu0 0
    %902 = vmatpush1.bf16.msra.mxu0 0
    %903 = vmatprep.subr.bf16.mxu0 0
    %904 = vmatpush1.bf16.msra.mxu0 0
    %905 = vmatprep.subr.bf16.mxu0 0
    %906 = vmatpush1.bf16.msra.mxu0 0
    %907 = vmatprep.subr.bf16.mxu0 0
    %908 = vmatpush1.bf16.msra.mxu0 0
    %909 = vmatprep.subr.bf16.mxu0 %v893
    %910 = vmatpush1.bf16.msra.mxu0 %v892
    %911 = vmatprep.subr.bf16.mxu0 %v889
    %912 = vmatpush1.bf16.msra.mxu0 %v888
    %913 = vmatprep.subr.bf16.mxu0 0
    %914 = vmatpush2.bf16.msra.mxu0 0
    %915 = vmatprep.subr.bf16.mxu0 0
    %916 = vmatpush2.bf16.msra.mxu0 0
    %917 = vmatprep.subr.bf16.mxu0 0
    %918 = vmatpush2.bf16.msra.mxu0 0
    %919 = vmatprep.subr.bf16.mxu0 0
    %920 = vmatpush2.bf16.msra.mxu0 0
    %921 = vmatprep.subr.bf16.mxu0 0
    %922 = vmatpush2.bf16.msra.mxu0 0
    %923 = vmatprep.subr.bf16.mxu0 0
    %924 = vmatpush2.bf16.msra.mxu0 0
    %925 = vmatprep.subr.bf16.mxu0 0
    %926 = vmatpush2.bf16.msra.mxu0 0
    %927 = vmatprep.subr.bf16.mxu0 0
    %928 = vmatpush2.bf16.msra.mxu0 0
    %929 = vmatprep.mubr.bf16.mxu0 0
    %930 = vmatmul.mubr.bf16.gmra.mxu0 %v64
    %v931 = vpop.f32.mrf.mxu0
    %v932 = vadd.f32 0.0, %v931
    %v933 = vpop.f32.mrf.mxu0
    %v934 = vadd.f32 0.0, %v933
    %v935 = vpop.f32.mrf.mxu0
    %v936 = vadd.f32 0.0, %v935
    %v937 = vpop.f32.mrf.mxu0
    %v938 = vadd.f32 0.0, %v937
    %939 = vmatprep.mubr.bf16.mxu0 0
    %940 = vmatmul.mubr.bf16.gmra.mxu0 %v67
    %v941 = vpop.f32.mrf.mxu0
    %v942 = vadd.f32 0.0, %v941
    %v943 = vpop.f32.mrf.mxu0
    %v944 = vadd.f32 0.0, %v943
    %v945 = vpop.f32.mrf.mxu0
    %v946 = vadd.f32 0.0, %v945
    %v947 = vpop.f32.mrf.mxu0
    %v948 = vadd.f32 0.0, %v947
    %949 = vdwg.mxu0
    %950 = vmatprep.subr.bf16.mxu0 0
    %951 = vmatpush1.bf16.msra.mxu0 0
    %952 = vmatprep.subr.bf16.mxu0 0
    %953 = vmatpush1.bf16.msra.mxu0 0
    %954 = vmatprep.subr.bf16.mxu0 0
    %955 = vmatpush1.bf16.msra.mxu0 0
    %956 = vmatprep.subr.bf16.mxu0 0
    %957 = vmatpush1.bf16.msra.mxu0 0
    %958 = vmatprep.subr.bf16.mxu0 0
    %959 = vmatpush1.bf16.msra.mxu0 0
    %960 = vmatprep.subr.bf16.mxu0 0
    %961 = vmatpush1.bf16.msra.mxu0 0
    %962 = vmatprep.subr.bf16.mxu0 %v895
    %963 = vmatpush1.bf16.msra.mxu0 %v894
    %964 = vmatprep.subr.bf16.mxu0 %v891
    %965 = vmatpush1.bf16.msra.mxu0 %v890
    %966 = vmatprep.subr.bf16.mxu0 0
    %967 = vmatpush2.bf16.msra.mxu0 0
    %968 = vmatprep.subr.bf16.mxu0 0
    %969 = vmatpush2.bf16.msra.mxu0 0
    %970 = vmatprep.subr.bf16.mxu0 0
    %971 = vmatpush2.bf16.msra.mxu0 0
    %972 = vmatprep.subr.bf16.mxu0 0
    %973 = vmatpush2.bf16.msra.mxu0 0
    %974 = vmatprep.subr.bf16.mxu0 0
    %975 = vmatpush2.bf16.msra.mxu0 0
    %976 = vmatprep.subr.bf16.mxu0 0
    %977 = vmatpush2.bf16.msra.mxu0 0
    %978 = vmatprep.subr.bf16.mxu0 0
    %979 = vmatpush2.bf16.msra.mxu0 0
    %980 = vmatprep.subr.bf16.mxu0 0
    %981 = vmatpush2.bf16.msra.mxu0 0
    %982 = vmatprep.mubr.bf16.mxu0 0
    %983 = vmatmul.mubr.bf16.gmra.mxu0 %v64
    %v984 = vpop.f32.mrf.mxu0
    %v985 = vadd.f32 0.0, %v984
    %v986 = vpop.f32.mrf.mxu0
    %v987 = vadd.f32 0.0, %v986
    %v988 = vpop.f32.mrf.mxu0
    %v989 = vadd.f32 0.0, %v988
    %v990 = vpop.f32.mrf.mxu0
    %v991 = vadd.f32 0.0, %v990
    %992 = vmatprep.mubr.bf16.mxu0 0
    %993 = vmatmul.mubr.bf16.gmra.mxu0 %v67
    %v994 = vpop.f32.mrf.mxu0
    %v995 = vadd.f32 0.0, %v994
    %v996 = vpop.f32.mrf.mxu0
    %v997 = vadd.f32 0.0, %v996
    %v998 = vpop.f32.mrf.mxu0
    %v999 = vadd.f32 0.0, %v998
    %v1000 = vpop.f32.mrf.mxu0
    %v1001 = vadd.f32 0.0, %v1000
    %1002 = vdwg.mxu0
    %v1003 = vpack.c.bf16 %v936, %v932
    %v1004 = vpack.c.bf16 %v938, %v934
    %v1005 = vpack.c.bf16 %v989, %v985
    %v1006 = vpack.c.bf16 %v991, %v987
    %v1007 = vpack.c.bf16 %v946, %v942
    %v1008 = vpack.c.bf16 %v948, %v944
    %v1009 = vpack.c.bf16 %v999, %v995
    %v1010 = vpack.c.bf16 %v1001, %v997
    %v1011 = vld [vmem:[%s4] sm:$0xff]
    %v1012 = vld [vmem:[%s4 + $0x8] sm:$0xff]
    %v1013 = vld [vmem:[%s4 + $0x10] sm:$0xff]
    %v1014 = vld [vmem:[%s4 + $0x18] sm:$0xff]
    %v1015 = vld [vmem:[%s4 + $0x20] sm:$0xff]
    %v1016 = vld [vmem:[%s4 + $0x28] sm:$0xff]
    %v1017 = vld [vmem:[%s4 + $0x30] sm:$0xff]
    %v1018 = vld [vmem:[%s4 + $0x38] sm:$0xff]
    %v1019 = vld [vmem:[%s4 + $0x40] sm:$0xff]
    %v1020 = vld [vmem:[%s4 + $0x48] sm:$0xff]
    %v1021 = vld [vmem:[%s4 + $0x50] sm:$0xff]
    %v1022 = vld [vmem:[%s4 + $0x58] sm:$0xff]
    %v1023 = vld [vmem:[%s4 + $0x60] sm:$0xff]
    %v1024 = vld [vmem:[%s4 + $0x68] sm:$0xff]
    %v1025 = vld [vmem:[%s4 + $0x70] sm:$0xff]
    %v1026 = vld [vmem:[%s4 + $0x78] sm:$0xff]
    %v1027 = vld [vmem:[%s4 + $0x80] sm:$0xff]
    %v1028 = vld [vmem:[%s4 + $0x88] sm:$0xff]
    %v1029 = vld [vmem:[%s4 + $0x90] sm:$0xff]
    %v1030 = vld [vmem:[%s4 + $0x98] sm:$0xff]
    %v1031 = vld [vmem:[%s4 + $0xa0] sm:$0xff]
    %v1032 = vld [vmem:[%s4 + $0xa8] sm:$0xff]
    %v1033 = vld [vmem:[%s4 + $0xb0] sm:$0xff]
    %v1034 = vld [vmem:[%s4 + $0xb8] sm:$0xff]
    %v1035 = vld [vmem:[%s4 + $0xc0] sm:$0xff]
    %v1036 = vld [vmem:[%s4 + $0xc8] sm:$0xff]
    %v1037 = vld [vmem:[%s4 + $0xd0] sm:$0xff]
    %v1038 = vld [vmem:[%s4 + $0xd8] sm:$0xff]
    %v1039 = vld [vmem:[%s4 + $0xe0] sm:$0xff]
    %v1040 = vld [vmem:[%s4 + $0xe8] sm:$0xff]
    %v1041 = vld [vmem:[%s4 + $0xf0] sm:$0xff]
    %v1042 = vld [vmem:[%s4 + $0xf8] sm:$0xff]
    %v1043 = vld [vmem:[%s4 + $0x100] sm:$0xff]
    %v1044 = vld [vmem:[%s4 + $0x108] sm:$0xff]
    %v1045 = vld [vmem:[%s4 + $0x110] sm:$0xff]
    %v1046 = vld [vmem:[%s4 + $0x118] sm:$0xff]
    %v1047 = vld [vmem:[%s4 + $0x120] sm:$0xff]
    %v1048 = vld [vmem:[%s4 + $0x128] sm:$0xff]
    %v1049 = vld [vmem:[%s4 + $0x130] sm:$0xff]
    %v1050 = vld [vmem:[%s4 + $0x138] sm:$0xff]
    %v1051 = vld [vmem:[%s4 + $0x140] sm:$0xff]
    %v1052 = vld [vmem:[%s4 + $0x148] sm:$0xff]
    %v1053 = vld [vmem:[%s4 + $0x150] sm:$0xff]
    %v1054 = vld [vmem:[%s4 + $0x158] sm:$0xff]
    %v1055 = vld [vmem:[%s4 + $0x160] sm:$0xff]
    %v1056 = vld [vmem:[%s4 + $0x168] sm:$0xff]
    %v1057 = vld [vmem:[%s4 + $0x170] sm:$0xff]
    %v1058 = vld [vmem:[%s4 + $0x178] sm:$0xff]
    %v1059 = vld [vmem:[%s4 + $0x180] sm:$0xff]
    %v1060 = vld [vmem:[%s4 + $0x188] sm:$0xff]
    %v1061 = vld [vmem:[%s4 + $0x190] sm:$0xff]
    %v1062 = vld [vmem:[%s4 + $0x198] sm:$0xff]
    %v1063 = vld [vmem:[%s4 + $0x1a0] sm:$0xff]
    %v1064 = vld [vmem:[%s4 + $0x1a8] sm:$0xff]
    %v1065 = vld [vmem:[%s4 + $0x1b0] sm:$0xff]
    %v1066 = vld [vmem:[%s4 + $0x1b8] sm:$0xff]
    %v1067 = vld [vmem:[%s4 + $0x1c0] sm:$0xff]
    %v1068 = vld [vmem:[%s4 + $0x1c8] sm:$0xff]
    %v1069 = vld [vmem:[%s4 + $0x1d0] sm:$0xff]
    %v1070 = vld [vmem:[%s4 + $0x1d8] sm:$0xff]
    %v1071 = vld [vmem:[%s4 + $0x1e0] sm:$0xff]
    %v1072 = vld [vmem:[%s4 + $0x1e8] sm:$0xff]
    %v1073 = vld [vmem:[%s4 + $0x1f0] sm:$0xff]
    %v1074 = vld [vmem:[%s4 + $0x1f8] sm:$0xff]
    %v1075 = vld [vmem:[%s4 + $0x200] sm:$0xff]
    %v1076 = vld [vmem:[%s4 + $0x208] sm:$0xff]
    %v1077 = vld [vmem:[%s4 + $0x210] sm:$0xff]
    %v1078 = vld [vmem:[%s4 + $0x218] sm:$0xff]
    %v1079 = vld [vmem:[%s4 + $0x220] sm:$0xff]
    %v1080 = vld [vmem:[%s4 + $0x228] sm:$0xff]
    %v1081 = vld [vmem:[%s4 + $0x230] sm:$0xff]
    %v1082 = vld [vmem:[%s4 + $0x238] sm:$0xff]
    %v1083 = vld [vmem:[%s4 + $0x240] sm:$0xff]
    %v1084 = vld [vmem:[%s4 + $0x248] sm:$0xff]
    %v1085 = vld [vmem:[%s4 + $0x250] sm:$0xff]
    %v1086 = vld [vmem:[%s4 + $0x258] sm:$0xff]
    %v1087 = vld [vmem:[%s4 + $0x260] sm:$0xff]
    %v1088 = vld [vmem:[%s4 + $0x268] sm:$0xff]
    %v1089 = vld [vmem:[%s4 + $0x270] sm:$0xff]
    %v1090 = vld [vmem:[%s4 + $0x278] sm:$0xff]
    %v1091 = vld [vmem:[%s4 + $0x280] sm:$0xff]
    %v1092 = vld [vmem:[%s4 + $0x288] sm:$0xff]
    %v1093 = vld [vmem:[%s4 + $0x290] sm:$0xff]
    %v1094 = vld [vmem:[%s4 + $0x298] sm:$0xff]
    %v1095 = vld [vmem:[%s4 + $0x2a0] sm:$0xff]
    %v1096 = vld [vmem:[%s4 + $0x2a8] sm:$0xff]
    %v1097 = vld [vmem:[%s4 + $0x2b0] sm:$0xff]
    %v1098 = vld [vmem:[%s4 + $0x2b8] sm:$0xff]
    %v1099 = vld [vmem:[%s4 + $0x2c0] sm:$0xff]
    %v1100 = vld [vmem:[%s4 + $0x2c8] sm:$0xff]
    %v1101 = vld [vmem:[%s4 + $0x2d0] sm:$0xff]
    %v1102 = vld [vmem:[%s4 + $0x2d8] sm:$0xff]
    %v1103 = vld [vmem:[%s4 + $0x2e0] sm:$0xff]
    %v1104 = vld [vmem:[%s4 + $0x2e8] sm:$0xff]
    %v1105 = vld [vmem:[%s4 + $0x2f0] sm:$0xff]
    %v1106 = vld [vmem:[%s4 + $0x2f8] sm:$0xff]
    %v1107 = vld [vmem:[%s4 + $0x300] sm:$0xff]
    %v1108 = vld [vmem:[%s4 + $0x308] sm:$0xff]
    %v1109 = vld [vmem:[%s4 + $0x310] sm:$0xff]
    %v1110 = vld [vmem:[%s4 + $0x318] sm:$0xff]
    %v1111 = vld [vmem:[%s4 + $0x320] sm:$0xff]
    %v1112 = vld [vmem:[%s4 + $0x328] sm:$0xff]
    %v1113 = vld [vmem:[%s4 + $0x330] sm:$0xff]
    %v1114 = vld [vmem:[%s4 + $0x338] sm:$0xff]
    %v1115 = vld [vmem:[%s4 + $0x340] sm:$0xff]
    %v1116 = vld [vmem:[%s4 + $0x348] sm:$0xff]
    %v1117 = vld [vmem:[%s4 + $0x350] sm:$0xff]
    %v1118 = vld [vmem:[%s4 + $0x358] sm:$0xff]
    %v1119 = vld [vmem:[%s4 + $0x360] sm:$0xff]
    %v1120 = vld [vmem:[%s4 + $0x368] sm:$0xff]
    %v1121 = vld [vmem:[%s4 + $0x370] sm:$0xff]
    %v1122 = vld [vmem:[%s4 + $0x378] sm:$0xff]
    %v1123 = vld [vmem:[%s4 + $0x380] sm:$0xff]
    %v1124 = vld [vmem:[%s4 + $0x388] sm:$0xff]
    %v1125 = vld [vmem:[%s4 + $0x390] sm:$0xff]
    %v1126 = vld [vmem:[%s4 + $0x398] sm:$0xff]
    %v1127 = vld [vmem:[%s4 + $0x3a0] sm:$0xff]
    %v1128 = vld [vmem:[%s4 + $0x3a8] sm:$0xff]
    %v1129 = vld [vmem:[%s4 + $0x3b0] sm:$0xff]
    %v1130 = vld [vmem:[%s4 + $0x3b8] sm:$0xff]
    %v1131 = vld [vmem:[%s4 + $0x3c0] sm:$0xff]
    %v1132 = vld [vmem:[%s4 + $0x3c8] sm:$0xff]
    %v1133 = vld [vmem:[%s4 + $0x3d0] sm:$0xff]
    %v1134 = vld [vmem:[%s4 + $0x3d8] sm:$0xff]
    %v1135 = vld [vmem:[%s4 + $0x3e0] sm:$0xff]
    %v1136 = vld [vmem:[%s4 + $0x3e8] sm:$0xff]
    %v1137 = vld [vmem:[%s4 + $0x3f0] sm:$0xff]
    %v1138 = vld [vmem:[%s4 + $0x3f8] sm:$0xff]
    %s1139 = scalar_lea.vmem %s4, 1024
    %v1140 = vld [vmem:[%s1139] sm:$0xff]
    %v1141 = vld [vmem:[%s1139 + $0x8] sm:$0xff]
    %v1142 = vld [vmem:[%s1139 + $0x10] sm:$0xff]
    %v1143 = vld [vmem:[%s1139 + $0x18] sm:$0xff]
    %v1144 = vld [vmem:[%s1139 + $0x20] sm:$0xff]
    %v1145 = vld [vmem:[%s1139 + $0x28] sm:$0xff]
    %v1146 = vld [vmem:[%s1139 + $0x30] sm:$0xff]
    %v1147 = vld [vmem:[%s1139 + $0x38] sm:$0xff]
    %v1148 = vld [vmem:[%s1139 + $0x40] sm:$0xff]
    %v1149 = vld [vmem:[%s1139 + $0x48] sm:$0xff]
    %v1150 = vld [vmem:[%s1139 + $0x50] sm:$0xff]
    %v1151 = vld [vmem:[%s1139 + $0x58] sm:$0xff]
    %v1152 = vld [vmem:[%s1139 + $0x60] sm:$0xff]
    %v1153 = vld [vmem:[%s1139 + $0x68] sm:$0xff]
    %v1154 = vld [vmem:[%s1139 + $0x70] sm:$0xff]
    %v1155 = vld [vmem:[%s1139 + $0x78] sm:$0xff]
    %v1156 = vld [vmem:[%s1139 + $0x80] sm:$0xff]
    %v1157 = vld [vmem:[%s1139 + $0x88] sm:$0xff]
    %v1158 = vld [vmem:[%s1139 + $0x90] sm:$0xff]
    %v1159 = vld [vmem:[%s1139 + $0x98] sm:$0xff]
    %v1160 = vld [vmem:[%s1139 + $0xa0] sm:$0xff]
    %v1161 = vld [vmem:[%s1139 + $0xa8] sm:$0xff]
    %v1162 = vld [vmem:[%s1139 + $0xb0] sm:$0xff]
    %v1163 = vld [vmem:[%s1139 + $0xb8] sm:$0xff]
    %v1164 = vld [vmem:[%s1139 + $0xc0] sm:$0xff]
    %v1165 = vld [vmem:[%s1139 + $0xc8] sm:$0xff]
    %v1166 = vld [vmem:[%s1139 + $0xd0] sm:$0xff]
    %v1167 = vld [vmem:[%s1139 + $0xd8] sm:$0xff]
    %v1168 = vld [vmem:[%s1139 + $0xe0] sm:$0xff]
    %v1169 = vld [vmem:[%s1139 + $0xe8] sm:$0xff]
    %v1170 = vld [vmem:[%s1139 + $0xf0] sm:$0xff]
    %v1171 = vld [vmem:[%s1139 + $0xf8] sm:$0xff]
    %v1172 = vld [vmem:[%s1139 + $0x100] sm:$0xff]
    %v1173 = vld [vmem:[%s1139 + $0x108] sm:$0xff]
    %v1174 = vld [vmem:[%s1139 + $0x110] sm:$0xff]
    %v1175 = vld [vmem:[%s1139 + $0x118] sm:$0xff]
    %v1176 = vld [vmem:[%s1139 + $0x120] sm:$0xff]
    %v1177 = vld [vmem:[%s1139 + $0x128] sm:$0xff]
    %v1178 = vld [vmem:[%s1139 + $0x130] sm:$0xff]
    %v1179 = vld [vmem:[%s1139 + $0x138] sm:$0xff]
    %v1180 = vld [vmem:[%s1139 + $0x140] sm:$0xff]
    %v1181 = vld [vmem:[%s1139 + $0x148] sm:$0xff]
    %v1182 = vld [vmem:[%s1139 + $0x150] sm:$0xff]
    %v1183 = vld [vmem:[%s1139 + $0x158] sm:$0xff]
    %v1184 = vld [vmem:[%s1139 + $0x160] sm:$0xff]
    %v1185 = vld [vmem:[%s1139 + $0x168] sm:$0xff]
    %v1186 = vld [vmem:[%s1139 + $0x170] sm:$0xff]
    %v1187 = vld [vmem:[%s1139 + $0x178] sm:$0xff]
    %v1188 = vld [vmem:[%s1139 + $0x180] sm:$0xff]
    %v1189 = vld [vmem:[%s1139 + $0x188] sm:$0xff]
    %v1190 = vld [vmem:[%s1139 + $0x190] sm:$0xff]
    %v1191 = vld [vmem:[%s1139 + $0x198] sm:$0xff]
    %v1192 = vld [vmem:[%s1139 + $0x1a0] sm:$0xff]
    %v1193 = vld [vmem:[%s1139 + $0x1a8] sm:$0xff]
    %v1194 = vld [vmem:[%s1139 + $0x1b0] sm:$0xff]
    %v1195 = vld [vmem:[%s1139 + $0x1b8] sm:$0xff]
    %v1196 = vld [vmem:[%s1139 + $0x1c0] sm:$0xff]
    %v1197 = vld [vmem:[%s1139 + $0x1c8] sm:$0xff]
    %v1198 = vld [vmem:[%s1139 + $0x1d0] sm:$0xff]
    %v1199 = vld [vmem:[%s1139 + $0x1d8] sm:$0xff]
    %v1200 = vld [vmem:[%s1139 + $0x1e0] sm:$0xff]
    %v1201 = vld [vmem:[%s1139 + $0x1e8] sm:$0xff]
    %v1202 = vld [vmem:[%s1139 + $0x1f0] sm:$0xff]
    %v1203 = vld [vmem:[%s1139 + $0x1f8] sm:$0xff]
    %v1204 = vld [vmem:[%s1139 + $0x200] sm:$0xff]
    %v1205 = vld [vmem:[%s1139 + $0x208] sm:$0xff]
    %v1206 = vld [vmem:[%s1139 + $0x210] sm:$0xff]
    %v1207 = vld [vmem:[%s1139 + $0x218] sm:$0xff]
    %v1208 = vld [vmem:[%s1139 + $0x220] sm:$0xff]
    %v1209 = vld [vmem:[%s1139 + $0x228] sm:$0xff]
    %v1210 = vld [vmem:[%s1139 + $0x230] sm:$0xff]
    %v1211 = vld [vmem:[%s1139 + $0x238] sm:$0xff]
    %v1212 = vld [vmem:[%s1139 + $0x240] sm:$0xff]
    %v1213 = vld [vmem:[%s1139 + $0x248] sm:$0xff]
    %v1214 = vld [vmem:[%s1139 + $0x250] sm:$0xff]
    %v1215 = vld [vmem:[%s1139 + $0x258] sm:$0xff]
    %v1216 = vld [vmem:[%s1139 + $0x260] sm:$0xff]
    %v1217 = vld [vmem:[%s1139 + $0x268] sm:$0xff]
    %v1218 = vld [vmem:[%s1139 + $0x270] sm:$0xff]
    %v1219 = vld [vmem:[%s1139 + $0x278] sm:$0xff]
    %v1220 = vld [vmem:[%s1139 + $0x280] sm:$0xff]
    %v1221 = vld [vmem:[%s1139 + $0x288] sm:$0xff]
    %v1222 = vld [vmem:[%s1139 + $0x290] sm:$0xff]
    %v1223 = vld [vmem:[%s1139 + $0x298] sm:$0xff]
    %v1224 = vld [vmem:[%s1139 + $0x2a0] sm:$0xff]
    %v1225 = vld [vmem:[%s1139 + $0x2a8] sm:$0xff]
    %v1226 = vld [vmem:[%s1139 + $0x2b0] sm:$0xff]
    %v1227 = vld [vmem:[%s1139 + $0x2b8] sm:$0xff]
    %v1228 = vld [vmem:[%s1139 + $0x2c0] sm:$0xff]
    %v1229 = vld [vmem:[%s1139 + $0x2c8] sm:$0xff]
    %v1230 = vld [vmem:[%s1139 + $0x2d0] sm:$0xff]
    %v1231 = vld [vmem:[%s1139 + $0x2d8] sm:$0xff]
    %v1232 = vld [vmem:[%s1139 + $0x2e0] sm:$0xff]
    %v1233 = vld [vmem:[%s1139 + $0x2e8] sm:$0xff]
    %v1234 = vld [vmem:[%s1139 + $0x2f0] sm:$0xff]
    %v1235 = vld [vmem:[%s1139 + $0x2f8] sm:$0xff]
    %v1236 = vld [vmem:[%s1139 + $0x300] sm:$0xff]
    %v1237 = vld [vmem:[%s1139 + $0x308] sm:$0xff]
    %v1238 = vld [vmem:[%s1139 + $0x310] sm:$0xff]
    %v1239 = vld [vmem:[%s1139 + $0x318] sm:$0xff]
    %v1240 = vld [vmem:[%s1139 + $0x320] sm:$0xff]
    %v1241 = vld [vmem:[%s1139 + $0x328] sm:$0xff]
    %v1242 = vld [vmem:[%s1139 + $0x330] sm:$0xff]
    %v1243 = vld [vmem:[%s1139 + $0x338] sm:$0xff]
    %v1244 = vld [vmem:[%s1139 + $0x340] sm:$0xff]
    %v1245 = vld [vmem:[%s1139 + $0x348] sm:$0xff]
    %v1246 = vld [vmem:[%s1139 + $0x350] sm:$0xff]
    %v1247 = vld [vmem:[%s1139 + $0x358] sm:$0xff]
    %v1248 = vld [vmem:[%s1139 + $0x360] sm:$0xff]
    %v1249 = vld [vmem:[%s1139 + $0x368] sm:$0xff]
    %v1250 = vld [vmem:[%s1139 + $0x370] sm:$0xff]
    %v1251 = vld [vmem:[%s1139 + $0x378] sm:$0xff]
    %v1252 = vld [vmem:[%s1139 + $0x380] sm:$0xff]
    %v1253 = vld [vmem:[%s1139 + $0x388] sm:$0xff]
    %v1254 = vld [vmem:[%s1139 + $0x390] sm:$0xff]
    %v1255 = vld [vmem:[%s1139 + $0x398] sm:$0xff]
    %v1256 = vld [vmem:[%s1139 + $0x3a0] sm:$0xff]
    %v1257 = vld [vmem:[%s1139 + $0x3a8] sm:$0xff]
    %v1258 = vld [vmem:[%s1139 + $0x3b0] sm:$0xff]
    %v1259 = vld [vmem:[%s1139 + $0x3b8] sm:$0xff]
    %v1260 = vld [vmem:[%s1139 + $0x3c0] sm:$0xff]
    %v1261 = vld [vmem:[%s1139 + $0x3c8] sm:$0xff]
    %v1262 = vld [vmem:[%s1139 + $0x3d0] sm:$0xff]
    %v1263 = vld [vmem:[%s1139 + $0x3d8] sm:$0xff]
    %v1264 = vld [vmem:[%s1139 + $0x3e0] sm:$0xff]
    %v1265 = vld [vmem:[%s1139 + $0x3e8] sm:$0xff]
    %v1266 = vld [vmem:[%s1139 + $0x3f0] sm:$0xff]
    %v1267 = vld [vmem:[%s1139 + $0x3f8] sm:$0xff]
    %v1396 = vunpack.c.l.b16 %v1140
    %v1397 = vunpack.c.h.b16 %v1140
    %v1398 = vunpack.c.l.b16 %v1141
    %v1399 = vunpack.c.h.b16 %v1141
    %v1400 = vunpack.c.l.b16 %v1142
    %v1401 = vunpack.c.h.b16 %v1142
    %v1402 = vunpack.c.l.b16 %v1143
    %v1403 = vunpack.c.h.b16 %v1143
    %v1404 = vunpack.c.l.b16 %v1144
    %v1405 = vunpack.c.h.b16 %v1144
    %v1406 = vunpack.c.l.b16 %v1145
    %v1407 = vunpack.c.h.b16 %v1145
    %v1408 = vunpack.c.l.b16 %v1146
    %v1409 = vunpack.c.h.b16 %v1146
    %v1410 = vunpack.c.l.b16 %v1147
    %v1411 = vunpack.c.h.b16 %v1147
    %v1412 = vunpack.c.l.b16 %v1148
    %v1413 = vunpack.c.h.b16 %v1148
    %v1414 = vunpack.c.l.b16 %v1149
    %v1415 = vunpack.c.h.b16 %v1149
    %v1416 = vunpack.c.l.b16 %v1150
    %v1417 = vunpack.c.h.b16 %v1150
    %v1418 = vunpack.c.l.b16 %v1151
    %v1419 = vunpack.c.h.b16 %v1151
    %v1420 = vunpack.c.l.b16 %v1152
    %v1421 = vunpack.c.h.b16 %v1152
    %v1422 = vunpack.c.l.b16 %v1153
    %v1423 = vunpack.c.h.b16 %v1153
    %v1424 = vunpack.c.l.b16 %v1154
    %v1425 = vunpack.c.h.b16 %v1154
    %v1426 = vunpack.c.l.b16 %v1155
    %v1427 = vunpack.c.h.b16 %v1155
    %v1428 = vunpack.c.l.b16 %v1156
    %v1429 = vunpack.c.h.b16 %v1156
    %v1430 = vunpack.c.l.b16 %v1157
    %v1431 = vunpack.c.h.b16 %v1157
    %v1432 = vunpack.c.l.b16 %v1158
    %v1433 = vunpack.c.h.b16 %v1158
    %v1434 = vunpack.c.l.b16 %v1159
    %v1435 = vunpack.c.h.b16 %v1159
    %v1436 = vunpack.c.l.b16 %v1160
    %v1437 = vunpack.c.h.b16 %v1160
    %v1438 = vunpack.c.l.b16 %v1161
    %v1439 = vunpack.c.h.b16 %v1161
    %v1440 = vunpack.c.l.b16 %v1162
    %v1441 = vunpack.c.h.b16 %v1162
    %v1442 = vunpack.c.l.b16 %v1163
    %v1443 = vunpack.c.h.b16 %v1163
    %v1444 = vunpack.c.l.b16 %v1164
    %v1445 = vunpack.c.h.b16 %v1164
    %v1446 = vunpack.c.l.b16 %v1165
    %v1447 = vunpack.c.h.b16 %v1165
    %v1448 = vunpack.c.l.b16 %v1166
    %v1449 = vunpack.c.h.b16 %v1166
    %v1450 = vunpack.c.l.b16 %v1167
    %v1451 = vunpack.c.h.b16 %v1167
    %v1452 = vunpack.c.l.b16 %v1168
    %v1453 = vunpack.c.h.b16 %v1168
    %v1454 = vunpack.c.l.b16 %v1169
    %v1455 = vunpack.c.h.b16 %v1169
    %v1456 = vunpack.c.l.b16 %v1170
    %v1457 = vunpack.c.h.b16 %v1170
    %v1458 = vunpack.c.l.b16 %v1171
    %v1459 = vunpack.c.h.b16 %v1171
    %v1460 = vunpack.c.l.b16 %v1172
    %v1461 = vunpack.c.h.b16 %v1172
    %v1462 = vunpack.c.l.b16 %v1173
    %v1463 = vunpack.c.h.b16 %v1173
    %v1464 = vunpack.c.l.b16 %v1174
    %v1465 = vunpack.c.h.b16 %v1174
    %v1466 = vunpack.c.l.b16 %v1175
    %v1467 = vunpack.c.h.b16 %v1175
    %v1468 = vunpack.c.l.b16 %v1176
    %v1469 = vunpack.c.h.b16 %v1176
    %v1470 = vunpack.c.l.b16 %v1177
    %v1471 = vunpack.c.h.b16 %v1177
    %v1472 = vunpack.c.l.b16 %v1178
    %v1473 = vunpack.c.h.b16 %v1178
    %v1474 = vunpack.c.l.b16 %v1179
    %v1475 = vunpack.c.h.b16 %v1179
    %v1476 = vunpack.c.l.b16 %v1180
    %v1477 = vunpack.c.h.b16 %v1180
    %v1478 = vunpack.c.l.b16 %v1181
    %v1479 = vunpack.c.h.b16 %v1181
    %v1480 = vunpack.c.l.b16 %v1182
    %v1481 = vunpack.c.h.b16 %v1182
    %v1482 = vunpack.c.l.b16 %v1183
    %v1483 = vunpack.c.h.b16 %v1183
    %v1484 = vunpack.c.l.b16 %v1184
    %v1485 = vunpack.c.h.b16 %v1184
    %v1486 = vunpack.c.l.b16 %v1185
    %v1487 = vunpack.c.h.b16 %v1185
    %v1488 = vunpack.c.l.b16 %v1186
    %v1489 = vunpack.c.h.b16 %v1186
    %v1490 = vunpack.c.l.b16 %v1187
    %v1491 = vunpack.c.h.b16 %v1187
    %v1492 = vunpack.c.l.b16 %v1188
    %v1493 = vunpack.c.h.b16 %v1188
    %v1494 = vunpack.c.l.b16 %v1189
    %v1495 = vunpack.c.h.b16 %v1189
    %v1496 = vunpack.c.l.b16 %v1190
    %v1497 = vunpack.c.h.b16 %v1190
    %v1498 = vunpack.c.l.b16 %v1191
    %v1499 = vunpack.c.h.b16 %v1191
    %v1500 = vunpack.c.l.b16 %v1192
    %v1501 = vunpack.c.h.b16 %v1192
    %v1502 = vunpack.c.l.b16 %v1193
    %v1503 = vunpack.c.h.b16 %v1193
    %v1504 = vunpack.c.l.b16 %v1194
    %v1505 = vunpack.c.h.b16 %v1194
    %v1506 = vunpack.c.l.b16 %v1195
    %v1507 = vunpack.c.h.b16 %v1195
    %v1508 = vunpack.c.l.b16 %v1196
    %v1509 = vunpack.c.h.b16 %v1196
    %v1510 = vunpack.c.l.b16 %v1197
    %v1511 = vunpack.c.h.b16 %v1197
    %v1512 = vunpack.c.l.b16 %v1198
    %v1513 = vunpack.c.h.b16 %v1198
    %v1514 = vunpack.c.l.b16 %v1199
    %v1515 = vunpack.c.h.b16 %v1199
    %v1516 = vunpack.c.l.b16 %v1200
    %v1517 = vunpack.c.h.b16 %v1200
    %v1518 = vunpack.c.l.b16 %v1201
    %v1519 = vunpack.c.h.b16 %v1201
    %v1520 = vunpack.c.l.b16 %v1202
    %v1521 = vunpack.c.h.b16 %v1202
    %v1522 = vunpack.c.l.b16 %v1203
    %v1523 = vunpack.c.h.b16 %v1203
    %v1524 = vunpack.c.l.b16 %v1204
    %v1525 = vunpack.c.h.b16 %v1204
    %v1526 = vunpack.c.l.b16 %v1205
    %v1527 = vunpack.c.h.b16 %v1205
    %v1528 = vunpack.c.l.b16 %v1206
    %v1529 = vunpack.c.h.b16 %v1206
    %v1530 = vunpack.c.l.b16 %v1207
    %v1531 = vunpack.c.h.b16 %v1207
    %v1532 = vunpack.c.l.b16 %v1208
    %v1533 = vunpack.c.h.b16 %v1208
    %v1534 = vunpack.c.l.b16 %v1209
    %v1535 = vunpack.c.h.b16 %v1209
    %v1536 = vunpack.c.l.b16 %v1210
    %v1537 = vunpack.c.h.b16 %v1210
    %v1538 = vunpack.c.l.b16 %v1211
    %v1539 = vunpack.c.h.b16 %v1211
    %v1540 = vunpack.c.l.b16 %v1212
    %v1541 = vunpack.c.h.b16 %v1212
    %v1542 = vunpack.c.l.b16 %v1213
    %v1543 = vunpack.c.h.b16 %v1213
    %v1544 = vunpack.c.l.b16 %v1214
    %v1545 = vunpack.c.h.b16 %v1214
    %v1546 = vunpack.c.l.b16 %v1215
    %v1547 = vunpack.c.h.b16 %v1215
    %v1548 = vunpack.c.l.b16 %v1216
    %v1549 = vunpack.c.h.b16 %v1216
    %v1550 = vunpack.c.l.b16 %v1217
    %v1551 = vunpack.c.h.b16 %v1217
    %v1552 = vunpack.c.l.b16 %v1218
    %v1553 = vunpack.c.h.b16 %v1218
    %v1554 = vunpack.c.l.b16 %v1219
    %v1555 = vunpack.c.h.b16 %v1219
    %v1556 = vunpack.c.l.b16 %v1220
    %v1557 = vunpack.c.h.b16 %v1220
    %v1558 = vunpack.c.l.b16 %v1221
    %v1559 = vunpack.c.h.b16 %v1221
    %v1560 = vunpack.c.l.b16 %v1222
    %v1561 = vunpack.c.h.b16 %v1222
    %v1562 = vunpack.c.l.b16 %v1223
    %v1563 = vunpack.c.h.b16 %v1223
    %v1564 = vunpack.c.l.b16 %v1224
    %v1565 = vunpack.c.h.b16 %v1224
    %v1566 = vunpack.c.l.b16 %v1225
    %v1567 = vunpack.c.h.b16 %v1225
    %v1568 = vunpack.c.l.b16 %v1226
    %v1569 = vunpack.c.h.b16 %v1226
    %v1570 = vunpack.c.l.b16 %v1227
    %v1571 = vunpack.c.h.b16 %v1227
    %v1572 = vunpack.c.l.b16 %v1228
    %v1573 = vunpack.c.h.b16 %v1228
    %v1574 = vunpack.c.l.b16 %v1229
    %v1575 = vunpack.c.h.b16 %v1229
    %v1576 = vunpack.c.l.b16 %v1230
    %v1577 = vunpack.c.h.b16 %v1230
    %v1578 = vunpack.c.l.b16 %v1231
    %v1579 = vunpack.c.h.b16 %v1231
    %v1580 = vunpack.c.l.b16 %v1232
    %v1581 = vunpack.c.h.b16 %v1232
    %v1582 = vunpack.c.l.b16 %v1233
    %v1583 = vunpack.c.h.b16 %v1233
    %v1584 = vunpack.c.l.b16 %v1234
    %v1585 = vunpack.c.h.b16 %v1234
    %v1586 = vunpack.c.l.b16 %v1235
    %v1587 = vunpack.c.h.b16 %v1235
    %v1588 = vunpack.c.l.b16 %v1236
    %v1589 = vunpack.c.h.b16 %v1236
    %v1590 = vunpack.c.l.b16 %v1237
    %v1591 = vunpack.c.h.b16 %v1237
    %v1592 = vunpack.c.l.b16 %v1238
    %v1593 = vunpack.c.h.b16 %v1238
    %v1594 = vunpack.c.l.b16 %v1239
    %v1595 = vunpack.c.h.b16 %v1239
    %v1596 = vunpack.c.l.b16 %v1240
    %v1597 = vunpack.c.h.b16 %v1240
    %v1598 = vunpack.c.l.b16 %v1241
    %v1599 = vunpack.c.h.b16 %v1241
    %v1600 = vunpack.c.l.b16 %v1242
    %v1601 = vunpack.c.h.b16 %v1242
    %v1602 = vunpack.c.l.b16 %v1243
    %v1603 = vunpack.c.h.b16 %v1243
    %v1604 = vunpack.c.l.b16 %v1244
    %v1605 = vunpack.c.h.b16 %v1244
    %v1606 = vunpack.c.l.b16 %v1245
    %v1607 = vunpack.c.h.b16 %v1245
    %v1608 = vunpack.c.l.b16 %v1246
    %v1609 = vunpack.c.h.b16 %v1246
    %v1610 = vunpack.c.l.b16 %v1247
    %v1611 = vunpack.c.h.b16 %v1247
    %v1612 = vunpack.c.l.b16 %v1248
    %v1613 = vunpack.c.h.b16 %v1248
    %v1614 = vunpack.c.l.b16 %v1249
    %v1615 = vunpack.c.h.b16 %v1249
    %v1616 = vunpack.c.l.b16 %v1250
    %v1617 = vunpack.c.h.b16 %v1250
    %v1618 = vunpack.c.l.b16 %v1251
    %v1619 = vunpack.c.h.b16 %v1251
    %v1620 = vunpack.c.l.b16 %v1252
    %v1621 = vunpack.c.h.b16 %v1252
    %v1622 = vunpack.c.l.b16 %v1253
    %v1623 = vunpack.c.h.b16 %v1253
    %v1624 = vunpack.c.l.b16 %v1254
    %v1625 = vunpack.c.h.b16 %v1254
    %v1626 = vunpack.c.l.b16 %v1255
    %v1627 = vunpack.c.h.b16 %v1255
    %v1628 = vunpack.c.l.b16 %v1256
    %v1629 = vunpack.c.h.b16 %v1256
    %v1630 = vunpack.c.l.b16 %v1257
    %v1631 = vunpack.c.h.b16 %v1257
    %v1632 = vunpack.c.l.b16 %v1258
    %v1633 = vunpack.c.h.b16 %v1258
    %v1634 = vunpack.c.l.b16 %v1259
    %v1635 = vunpack.c.h.b16 %v1259
    %v1636 = vunpack.c.l.b16 %v1260
    %v1637 = vunpack.c.h.b16 %v1260
    %v1638 = vunpack.c.l.b16 %v1261
    %v1639 = vunpack.c.h.b16 %v1261
    %v1640 = vunpack.c.l.b16 %v1262
    %v1641 = vunpack.c.h.b16 %v1262
    %v1642 = vunpack.c.l.b16 %v1263
    %v1643 = vunpack.c.h.b16 %v1263
    %v1644 = vunpack.c.l.b16 %v1264
    %v1645 = vunpack.c.h.b16 %v1264
    %v1646 = vunpack.c.l.b16 %v1265
    %v1647 = vunpack.c.h.b16 %v1265
    %v1648 = vunpack.c.l.b16 %v1266
    %v1649 = vunpack.c.h.b16 %v1266
    %v1650 = vunpack.c.l.b16 %v1267
    %v1651 = vunpack.c.h.b16 %v1267
    %v1652 = vpack.c.b16 %v1400, %v1396
    %v1653 = vpack.c.b16 %v1401, %v1397
    %v1654 = vpack.c.b16 %v1402, %v1398
    %v1655 = vpack.c.b16 %v1403, %v1399
    %v1656 = vpack.c.b16 %v1408, %v1404
    %v1657 = vpack.c.b16 %v1409, %v1405
    %v1658 = vpack.c.b16 %v1410, %v1406
    %v1659 = vpack.c.b16 %v1411, %v1407
    %v1660 = vpack.c.b16 %v1416, %v1412
    %v1661 = vpack.c.b16 %v1417, %v1413
    %v1662 = vpack.c.b16 %v1418, %v1414
    %v1663 = vpack.c.b16 %v1419, %v1415
    %v1664 = vpack.c.b16 %v1424, %v1420
    %v1665 = vpack.c.b16 %v1425, %v1421
    %v1666 = vpack.c.b16 %v1426, %v1422
    %v1667 = vpack.c.b16 %v1427, %v1423
    %v1668 = vpack.c.b16 %v1432, %v1428
    %v1669 = vpack.c.b16 %v1433, %v1429
    %v1670 = vpack.c.b16 %v1434, %v1430
    %v1671 = vpack.c.b16 %v1435, %v1431
    %v1672 = vpack.c.b16 %v1440, %v1436
    %v1673 = vpack.c.b16 %v1441, %v1437
    %v1674 = vpack.c.b16 %v1442, %v1438
    %v1675 = vpack.c.b16 %v1443, %v1439
    %v1676 = vpack.c.b16 %v1448, %v1444
    %v1677 = vpack.c.b16 %v1449, %v1445
    %v1678 = vpack.c.b16 %v1450, %v1446
    %v1679 = vpack.c.b16 %v1451, %v1447
    %v1680 = vpack.c.b16 %v1456, %v1452
    %v1681 = vpack.c.b16 %v1457, %v1453
    %v1682 = vpack.c.b16 %v1458, %v1454
    %v1683 = vpack.c.b16 %v1459, %v1455
    %v1684 = vpack.c.b16 %v1464, %v1460
    %v1685 = vpack.c.b16 %v1465, %v1461
    %v1686 = vpack.c.b16 %v1466, %v1462
    %v1687 = vpack.c.b16 %v1467, %v1463
    %v1688 = vpack.c.b16 %v1472, %v1468
    %v1689 = vpack.c.b16 %v1473, %v1469
    %v1690 = vpack.c.b16 %v1474, %v1470
    %v1691 = vpack.c.b16 %v1475, %v1471
    %v1692 = vpack.c.b16 %v1480, %v1476
    %v1693 = vpack.c.b16 %v1481, %v1477
    %v1694 = vpack.c.b16 %v1482, %v1478
    %v1695 = vpack.c.b16 %v1483, %v1479
    %v1696 = vpack.c.b16 %v1488, %v1484
    %v1697 = vpack.c.b16 %v1489, %v1485
    %v1698 = vpack.c.b16 %v1490, %v1486
    %v1699 = vpack.c.b16 %v1491, %v1487
    %v1700 = vpack.c.b16 %v1496, %v1492
    %v1701 = vpack.c.b16 %v1497, %v1493
    %v1702 = vpack.c.b16 %v1498, %v1494
    %v1703 = vpack.c.b16 %v1499, %v1495
    %v1704 = vpack.c.b16 %v1504, %v1500
    %v1705 = vpack.c.b16 %v1505, %v1501
    %v1706 = vpack.c.b16 %v1506, %v1502
    %v1707 = vpack.c.b16 %v1507, %v1503
    %v1708 = vpack.c.b16 %v1512, %v1508
    %v1709 = vpack.c.b16 %v1513, %v1509
    %v1710 = vpack.c.b16 %v1514, %v1510
    %v1711 = vpack.c.b16 %v1515, %v1511
    %v1712 = vpack.c.b16 %v1520, %v1516
    %v1713 = vpack.c.b16 %v1521, %v1517
    %v1714 = vpack.c.b16 %v1522, %v1518
    %v1715 = vpack.c.b16 %v1523, %v1519
    %v1716 = vpack.c.b16 %v1528, %v1524
    %v1717 = vpack.c.b16 %v1529, %v1525
    %v1718 = vpack.c.b16 %v1530, %v1526
    %v1719 = vpack.c.b16 %v1531, %v1527
    %v1720 = vpack.c.b16 %v1536, %v1532
    %v1721 = vpack.c.b16 %v1537, %v1533
    %v1722 = vpack.c.b16 %v1538, %v1534
    %v1723 = vpack.c.b16 %v1539, %v1535
    %v1724 = vpack.c.b16 %v1544, %v1540
    %v1725 = vpack.c.b16 %v1545, %v1541
    %v1726 = vpack.c.b16 %v1546, %v1542
    %v1727 = vpack.c.b16 %v1547, %v1543
    %v1728 = vpack.c.b16 %v1552, %v1548
    %v1729 = vpack.c.b16 %v1553, %v1549
    %v1730 = vpack.c.b16 %v1554, %v1550
    %v1731 = vpack.c.b16 %v1555, %v1551
    %v1732 = vpack.c.b16 %v1560, %v1556
    %v1733 = vpack.c.b16 %v1561, %v1557
    %v1734 = vpack.c.b16 %v1562, %v1558
    %v1735 = vpack.c.b16 %v1563, %v1559
    %v1736 = vpack.c.b16 %v1568, %v1564
    %v1737 = vpack.c.b16 %v1569, %v1565
    %v1738 = vpack.c.b16 %v1570, %v1566
    %v1739 = vpack.c.b16 %v1571, %v1567
    %v1740 = vpack.c.b16 %v1576, %v1572
    %v1741 = vpack.c.b16 %v1577, %v1573
    %v1742 = vpack.c.b16 %v1578, %v1574
    %v1743 = vpack.c.b16 %v1579, %v1575
    %v1744 = vpack.c.b16 %v1584, %v1580
    %v1745 = vpack.c.b16 %v1585, %v1581
    %v1746 = vpack.c.b16 %v1586, %v1582
    %v1747 = vpack.c.b16 %v1587, %v1583
    %v1748 = vpack.c.b16 %v1592, %v1588
    %v1749 = vpack.c.b16 %v1593, %v1589
    %v1750 = vpack.c.b16 %v1594, %v1590
    %v1751 = vpack.c.b16 %v1595, %v1591
    %v1752 = vpack.c.b16 %v1600, %v1596
    %v1753 = vpack.c.b16 %v1601, %v1597
    %v1754 = vpack.c.b16 %v1602, %v1598
    %v1755 = vpack.c.b16 %v1603, %v1599
    %v1756 = vpack.c.b16 %v1608, %v1604
    %v1757 = vpack.c.b16 %v1609, %v1605
    %v1758 = vpack.c.b16 %v1610, %v1606
    %v1759 = vpack.c.b16 %v1611, %v1607
    %v1760 = vpack.c.b16 %v1616, %v1612
    %v1761 = vpack.c.b16 %v1617, %v1613
    %v1762 = vpack.c.b16 %v1618, %v1614
    %v1763 = vpack.c.b16 %v1619, %v1615
    %v1764 = vpack.c.b16 %v1624, %v1620
    %v1765 = vpack.c.b16 %v1625, %v1621
    %v1766 = vpack.c.b16 %v1626, %v1622
    %v1767 = vpack.c.b16 %v1627, %v1623
    %v1768 = vpack.c.b16 %v1632, %v1628
    %v1769 = vpack.c.b16 %v1633, %v1629
    %v1770 = vpack.c.b16 %v1634, %v1630
    %v1771 = vpack.c.b16 %v1635, %v1631
    %v1772 = vpack.c.b16 %v1640, %v1636
    %v1773 = vpack.c.b16 %v1641, %v1637
    %v1774 = vpack.c.b16 %v1642, %v1638
    %v1775 = vpack.c.b16 %v1643, %v1639
    %v1776 = vpack.c.b16 %v1648, %v1644
    %v1777 = vpack.c.b16 %v1649, %v1645
    %v1778 = vpack.c.b16 %v1650, %v1646
    %v1779 = vpack.c.b16 %v1651, %v1647
    %1908 = vmatprep.subr.bf16.mxu0 %v1681
    %1909 = vmatpush1.bf16.msra.mxu0 %v1680
    %1910 = vmatprep.subr.bf16.mxu0 %v1677
    %1911 = vmatpush1.bf16.msra.mxu0 %v1676
    %1912 = vmatprep.subr.bf16.mxu0 %v1673
    %1913 = vmatpush1.bf16.msra.mxu0 %v1672
    %1914 = vmatprep.subr.bf16.mxu0 %v1669
    %1915 = vmatpush1.bf16.msra.mxu0 %v1668
    %1916 = vmatprep.subr.bf16.mxu0 %v1665
    %1917 = vmatpush1.bf16.msra.mxu0 %v1664
    %1918 = vmatprep.subr.bf16.mxu0 %v1661
    %1919 = vmatpush1.bf16.msra.mxu0 %v1660
    %1920 = vmatprep.subr.bf16.mxu0 %v1657
    %1921 = vmatpush1.bf16.msra.mxu0 %v1656
    %1922 = vmatprep.subr.bf16.mxu0 %v1653
    %1923 = vmatpush1.bf16.msra.mxu0 %v1652
    %1924 = vmatprep.subr.bf16.mxu0 %v1713
    %1925 = vmatpush2.bf16.msra.mxu0 %v1712
    %1926 = vmatprep.subr.bf16.mxu0 %v1709
    %1927 = vmatpush2.bf16.msra.mxu0 %v1708
    %1928 = vmatprep.subr.bf16.mxu0 %v1705
    %1929 = vmatpush2.bf16.msra.mxu0 %v1704
    %1930 = vmatprep.subr.bf16.mxu0 %v1701
    %1931 = vmatpush2.bf16.msra.mxu0 %v1700
    %1932 = vmatprep.subr.bf16.mxu0 %v1697
    %1933 = vmatpush2.bf16.msra.mxu0 %v1696
    %1934 = vmatprep.subr.bf16.mxu0 %v1693
    %1935 = vmatpush2.bf16.msra.mxu0 %v1692
    %1936 = vmatprep.subr.bf16.mxu0 %v1689
    %1937 = vmatpush2.bf16.msra.mxu0 %v1688
    %1938 = vmatprep.subr.bf16.mxu0 %v1685
    %1939 = vmatpush2.bf16.msra.mxu0 %v1684
    %1940 = vmatprep.mubr.bf16.mxu0 %v889
    %1941 = vmatmul.mubr.bf16.gmra.mxu0 %v888
    %v1942 = vpop.f32.mrf.mxu0
    %v1943 = vadd.f32 0.0, %v1942
    %v1944 = vpop.f32.mrf.mxu0
    %v1945 = vadd.f32 0.0, %v1944
    %v1946 = vpop.f32.mrf.mxu0
    %v1947 = vadd.f32 0.0, %v1946
    %v1948 = vpop.f32.mrf.mxu0
    %v1949 = vadd.f32 0.0, %v1948
    %1950 = vmatprep.mubr.bf16.mxu0 %v893
    %1951 = vmatmul.mubr.bf16.gmra.mxu0 %v892
    %v1952 = vpop.f32.mrf.mxu0
    %v1953 = vadd.f32 0.0, %v1952
    %v1954 = vpop.f32.mrf.mxu0
    %v1955 = vadd.f32 0.0, %v1954
    %v1956 = vpop.f32.mrf.mxu0
    %v1957 = vadd.f32 0.0, %v1956
    %v1958 = vpop.f32.mrf.mxu0
    %v1959 = vadd.f32 0.0, %v1958
    %1960 = vdwg.mxu0
    %1961 = vmatprep.subr.bf16.mxu0 %v1745
    %1962 = vmatpush1.bf16.msra.mxu0 %v1744
    %1963 = vmatprep.subr.bf16.mxu0 %v1741
    %1964 = vmatpush1.bf16.msra.mxu0 %v1740
    %1965 = vmatprep.subr.bf16.mxu0 %v1737
    %1966 = vmatpush1.bf16.msra.mxu0 %v1736
    %1967 = vmatprep.subr.bf16.mxu0 %v1733
    %1968 = vmatpush1.bf16.msra.mxu0 %v1732
    %1969 = vmatprep.subr.bf16.mxu0 %v1729
    %1970 = vmatpush1.bf16.msra.mxu0 %v1728
    %1971 = vmatprep.subr.bf16.mxu0 %v1725
    %1972 = vmatpush1.bf16.msra.mxu0 %v1724
    %1973 = vmatprep.subr.bf16.mxu0 %v1721
    %1974 = vmatpush1.bf16.msra.mxu0 %v1720
    %1975 = vmatprep.subr.bf16.mxu0 %v1717
    %1976 = vmatpush1.bf16.msra.mxu0 %v1716
    %1977 = vmatprep.subr.bf16.mxu0 %v1777
    %1978 = vmatpush2.bf16.msra.mxu0 %v1776
    %1979 = vmatprep.subr.bf16.mxu0 %v1773
    %1980 = vmatpush2.bf16.msra.mxu0 %v1772
    %1981 = vmatprep.subr.bf16.mxu0 %v1769
    %1982 = vmatpush2.bf16.msra.mxu0 %v1768
    %1983 = vmatprep.subr.bf16.mxu0 %v1765
    %1984 = vmatpush2.bf16.msra.mxu0 %v1764
    %1985 = vmatprep.subr.bf16.mxu0 %v1761
    %1986 = vmatpush2.bf16.msra.mxu0 %v1760
    %1987 = vmatprep.subr.bf16.mxu0 %v1757
    %1988 = vmatpush2.bf16.msra.mxu0 %v1756
    %1989 = vmatprep.subr.bf16.mxu0 %v1753
    %1990 = vmatpush2.bf16.msra.mxu0 %v1752
    %1991 = vmatprep.subr.bf16.mxu0 %v1749
    %1992 = vmatpush2.bf16.msra.mxu0 %v1748
    %1993 = vmatprep.mubr.bf16.mxu0 %v891
    %1994 = vmatmul.mubr.bf16.gmra.mxu0 %v890
    %v1995 = vpop.f32.mrf.mxu0
    %v1996 = vadd.f32 %v1943, %v1995
    %v1997 = vpop.f32.mrf.mxu0
    %v1998 = vadd.f32 %v1945, %v1997
    %v1999 = vpop.f32.mrf.mxu0
    %v2000 = vadd.f32 %v1947, %v1999
    %v2001 = vpop.f32.mrf.mxu0
    %v2002 = vadd.f32 %v1949, %v2001
    %2003 = vmatprep.mubr.bf16.mxu0 %v895
    %2004 = vmatmul.mubr.bf16.gmra.mxu0 %v894
    %v2005 = vpop.f32.mrf.mxu0
    %v2006 = vadd.f32 %v1953, %v2005
    %v2007 = vpop.f32.mrf.mxu0
    %v2008 = vadd.f32 %v1955, %v2007
    %v2009 = vpop.f32.mrf.mxu0
    %v2010 = vadd.f32 %v1957, %v2009
    %v2011 = vpop.f32.mrf.mxu0
    %v2012 = vadd.f32 %v1959, %v2011
    %2013 = vdwg.mxu0
    %2014 = vmatprep.subr.bf16.mxu0 %v1683
    %2015 = vmatpush1.bf16.msra.mxu0 %v1682
    %2016 = vmatprep.subr.bf16.mxu0 %v1679
    %2017 = vmatpush1.bf16.msra.mxu0 %v1678
    %2018 = vmatprep.subr.bf16.mxu0 %v1675
    %2019 = vmatpush1.bf16.msra.mxu0 %v1674
    %2020 = vmatprep.subr.bf16.mxu0 %v1671
    %2021 = vmatpush1.bf16.msra.mxu0 %v1670
    %2022 = vmatprep.subr.bf16.mxu0 %v1667
    %2023 = vmatpush1.bf16.msra.mxu0 %v1666
    %2024 = vmatprep.subr.bf16.mxu0 %v1663
    %2025 = vmatpush1.bf16.msra.mxu0 %v1662
    %2026 = vmatprep.subr.bf16.mxu0 %v1659
    %2027 = vmatpush1.bf16.msra.mxu0 %v1658
    %2028 = vmatprep.subr.bf16.mxu0 %v1655
    %2029 = vmatpush1.bf16.msra.mxu0 %v1654
    %2030 = vmatprep.subr.bf16.mxu0 %v1715
    %2031 = vmatpush2.bf16.msra.mxu0 %v1714
    %2032 = vmatprep.subr.bf16.mxu0 %v1711
    %2033 = vmatpush2.bf16.msra.mxu0 %v1710
    %2034 = vmatprep.subr.bf16.mxu0 %v1707
    %2035 = vmatpush2.bf16.msra.mxu0 %v1706
    %2036 = vmatprep.subr.bf16.mxu0 %v1703
    %2037 = vmatpush2.bf16.msra.mxu0 %v1702
    %2038 = vmatprep.subr.bf16.mxu0 %v1699
    %2039 = vmatpush2.bf16.msra.mxu0 %v1698
    %2040 = vmatprep.subr.bf16.mxu0 %v1695
    %2041 = vmatpush2.bf16.msra.mxu0 %v1694
    %2042 = vmatprep.subr.bf16.mxu0 %v1691
    %2043 = vmatpush2.bf16.msra.mxu0 %v1690
    %2044 = vmatprep.subr.bf16.mxu0 %v1687
    %2045 = vmatpush2.bf16.msra.mxu0 %v1686
    %2046 = vmatprep.mubr.bf16.mxu0 %v889
    %2047 = vmatmul.mubr.bf16.gmra.mxu0 %v888
    %v2048 = vpop.f32.mrf.mxu0
    %v2049 = vadd.f32 0.0, %v2048
    %v2050 = vpop.f32.mrf.mxu0
    %v2051 = vadd.f32 0.0, %v2050
    %v2052 = vpop.f32.mrf.mxu0
    %v2053 = vadd.f32 0.0, %v2052
    %v2054 = vpop.f32.mrf.mxu0
    %v2055 = vadd.f32 0.0, %v2054
    %2056 = vmatprep.mubr.bf16.mxu0 %v893
    %2057 = vmatmul.mubr.bf16.gmra.mxu0 %v892
    %v2058 = vpop.f32.mrf.mxu0
    %v2059 = vadd.f32 0.0, %v2058
    %v2060 = vpop.f32.mrf.mxu0
    %v2061 = vadd.f32 0.0, %v2060
    %v2062 = vpop.f32.mrf.mxu0
    %v2063 = vadd.f32 0.0, %v2062
    %v2064 = vpop.f32.mrf.mxu0
    %v2065 = vadd.f32 0.0, %v2064
    %2066 = vdwg.mxu0
    %2067 = vmatprep.subr.bf16.mxu0 %v1747
    %2068 = vmatpush1.bf16.msra.mxu0 %v1746
    %2069 = vmatprep.subr.bf16.mxu0 %v1743
    %2070 = vmatpush1.bf16.msra.mxu0 %v1742
    %2071 = vmatprep.subr.bf16.mxu0 %v1739
    %2072 = vmatpush1.bf16.msra.mxu0 %v1738
    %2073 = vmatprep.subr.bf16.mxu0 %v1735
    %2074 = vmatpush1.bf16.msra.mxu0 %v1734
    %2075 = vmatprep.subr.bf16.mxu0 %v1731
    %2076 = vmatpush1.bf16.msra.mxu0 %v1730
    %2077 = vmatprep.subr.bf16.mxu0 %v1727
    %2078 = vmatpush1.bf16.msra.mxu0 %v1726
    %2079 = vmatprep.subr.bf16.mxu0 %v1723
    %2080 = vmatpush1.bf16.msra.mxu0 %v1722
    %2081 = vmatprep.subr.bf16.mxu0 %v1719
    %2082 = vmatpush1.bf16.msra.mxu0 %v1718
    %2083 = vmatprep.subr.bf16.mxu0 %v1779
    %2084 = vmatpush2.bf16.msra.mxu0 %v1778
    %2085 = vmatprep.subr.bf16.mxu0 %v1775
    %2086 = vmatpush2.bf16.msra.mxu0 %v1774
    %2087 = vmatprep.subr.bf16.mxu0 %v1771
    %2088 = vmatpush2.bf16.msra.mxu0 %v1770
    %2089 = vmatprep.subr.bf16.mxu0 %v1767
    %2090 = vmatpush2.bf16.msra.mxu0 %v1766
    %2091 = vmatprep.subr.bf16.mxu0 %v1763
    %2092 = vmatpush2.bf16.msra.mxu0 %v1762
    %2093 = vmatprep.subr.bf16.mxu0 %v1759
    %2094 = vmatpush2.bf16.msra.mxu0 %v1758
    %2095 = vmatprep.subr.bf16.mxu0 %v1755
    %2096 = vmatpush2.bf16.msra.mxu0 %v1754
    %2097 = vmatprep.subr.bf16.mxu0 %v1751
    %2098 = vmatpush2.bf16.msra.mxu0 %v1750
    %2099 = vmatprep.mubr.bf16.mxu0 %v891
    %2100 = vmatmul.mubr.bf16.gmra.mxu0 %v890
    %v2101 = vpop.f32.mrf.mxu0
    %v2102 = vadd.f32 %v2049, %v2101
    %v2103 = vpop.f32.mrf.mxu0
    %v2104 = vadd.f32 %v2051, %v2103
    %v2105 = vpop.f32.mrf.mxu0
    %v2106 = vadd.f32 %v2053, %v2105
    %v2107 = vpop.f32.mrf.mxu0
    %v2108 = vadd.f32 %v2055, %v2107
    %2109 = vmatprep.mubr.bf16.mxu0 %v895
    %2110 = vmatmul.mubr.bf16.gmra.mxu0 %v894
    %v2111 = vpop.f32.mrf.mxu0
    %v2112 = vadd.f32 %v2059, %v2111
    %v2113 = vpop.f32.mrf.mxu0
    %v2114 = vadd.f32 %v2061, %v2113
    %v2115 = vpop.f32.mrf.mxu0
    %v2116 = vadd.f32 %v2063, %v2115
    %v2117 = vpop.f32.mrf.mxu0
    %v2118 = vadd.f32 %v2065, %v2117
    %2119 = vdwg.mxu0
    %v2248 = vunpack.c.l.b16 %v1011
    %v2249 = vunpack.c.h.b16 %v1011
    %v2250 = vunpack.c.l.b16 %v1012
    %v2251 = vunpack.c.h.b16 %v1012
    %v2252 = vunpack.c.l.b16 %v1013
    %v2253 = vunpack.c.h.b16 %v1013
    %v2254 = vunpack.c.l.b16 %v1014
    %v2255 = vunpack.c.h.b16 %v1014
    %v2256 = vunpack.c.l.b16 %v1015
    %v2257 = vunpack.c.h.b16 %v1015
    %v2258 = vunpack.c.l.b16 %v1016
    %v2259 = vunpack.c.h.b16 %v1016
    %v2260 = vunpack.c.l.b16 %v1017
    %v2261 = vunpack.c.h.b16 %v1017
    %v2262 = vunpack.c.l.b16 %v1018
    %v2263 = vunpack.c.h.b16 %v1018
    %v2264 = vunpack.c.l.b16 %v1019
    %v2265 = vunpack.c.h.b16 %v1019
    %v2266 = vunpack.c.l.b16 %v1020
    %v2267 = vunpack.c.h.b16 %v1020
    %v2268 = vunpack.c.l.b16 %v1021
    %v2269 = vunpack.c.h.b16 %v1021
    %v2270 = vunpack.c.l.b16 %v1022
    %v2271 = vunpack.c.h.b16 %v1022
    %v2272 = vunpack.c.l.b16 %v1023
    %v2273 = vunpack.c.h.b16 %v1023
    %v2274 = vunpack.c.l.b16 %v1024
    %v2275 = vunpack.c.h.b16 %v1024
    %v2276 = vunpack.c.l.b16 %v1025
    %v2277 = vunpack.c.h.b16 %v1025
    %v2278 = vunpack.c.l.b16 %v1026
    %v2279 = vunpack.c.h.b16 %v1026
    %v2280 = vunpack.c.l.b16 %v1027
    %v2281 = vunpack.c.h.b16 %v1027
    %v2282 = vunpack.c.l.b16 %v1028
    %v2283 = vunpack.c.h.b16 %v1028
    %v2284 = vunpack.c.l.b16 %v1029
    %v2285 = vunpack.c.h.b16 %v1029
    %v2286 = vunpack.c.l.b16 %v1030
    %v2287 = vunpack.c.h.b16 %v1030
    %v2288 = vunpack.c.l.b16 %v1031
    %v2289 = vunpack.c.h.b16 %v1031
    %v2290 = vunpack.c.l.b16 %v1032
    %v2291 = vunpack.c.h.b16 %v1032
    %v2292 = vunpack.c.l.b16 %v1033
    %v2293 = vunpack.c.h.b16 %v1033
    %v2294 = vunpack.c.l.b16 %v1034
    %v2295 = vunpack.c.h.b16 %v1034
    %v2296 = vunpack.c.l.b16 %v1035
    %v2297 = vunpack.c.h.b16 %v1035
    %v2298 = vunpack.c.l.b16 %v1036
    %v2299 = vunpack.c.h.b16 %v1036
    %v2300 = vunpack.c.l.b16 %v1037
    %v2301 = vunpack.c.h.b16 %v1037
    %v2302 = vunpack.c.l.b16 %v1038
    %v2303 = vunpack.c.h.b16 %v1038
    %v2304 = vunpack.c.l.b16 %v1039
    %v2305 = vunpack.c.h.b16 %v1039
    %v2306 = vunpack.c.l.b16 %v1040
    %v2307 = vunpack.c.h.b16 %v1040
    %v2308 = vunpack.c.l.b16 %v1041
    %v2309 = vunpack.c.h.b16 %v1041
    %v2310 = vunpack.c.l.b16 %v1042
    %v2311 = vunpack.c.h.b16 %v1042
    %v2312 = vunpack.c.l.b16 %v1043
    %v2313 = vunpack.c.h.b16 %v1043
    %v2314 = vunpack.c.l.b16 %v1044
    %v2315 = vunpack.c.h.b16 %v1044
    %v2316 = vunpack.c.l.b16 %v1045
    %v2317 = vunpack.c.h.b16 %v1045
    %v2318 = vunpack.c.l.b16 %v1046
    %v2319 = vunpack.c.h.b16 %v1046
    %v2320 = vunpack.c.l.b16 %v1047
    %v2321 = vunpack.c.h.b16 %v1047
    %v2322 = vunpack.c.l.b16 %v1048
    %v2323 = vunpack.c.h.b16 %v1048
    %v2324 = vunpack.c.l.b16 %v1049
    %v2325 = vunpack.c.h.b16 %v1049
    %v2326 = vunpack.c.l.b16 %v1050
    %v2327 = vunpack.c.h.b16 %v1050
    %v2328 = vunpack.c.l.b16 %v1051
    %v2329 = vunpack.c.h.b16 %v1051
    %v2330 = vunpack.c.l.b16 %v1052
    %v2331 = vunpack.c.h.b16 %v1052
    %v2332 = vunpack.c.l.b16 %v1053
    %v2333 = vunpack.c.h.b16 %v1053
    %v2334 = vunpack.c.l.b16 %v1054
    %v2335 = vunpack.c.h.b16 %v1054
    %v2336 = vunpack.c.l.b16 %v1055
    %v2337 = vunpack.c.h.b16 %v1055
    %v2338 = vunpack.c.l.b16 %v1056
    %v2339 = vunpack.c.h.b16 %v1056
    %v2340 = vunpack.c.l.b16 %v1057
    %v2341 = vunpack.c.h.b16 %v1057
    %v2342 = vunpack.c.l.b16 %v1058
    %v2343 = vunpack.c.h.b16 %v1058
    %v2344 = vunpack.c.l.b16 %v1059
    %v2345 = vunpack.c.h.b16 %v1059
    %v2346 = vunpack.c.l.b16 %v1060
    %v2347 = vunpack.c.h.b16 %v1060
    %v2348 = vunpack.c.l.b16 %v1061
    %v2349 = vunpack.c.h.b16 %v1061
    %v2350 = vunpack.c.l.b16 %v1062
    %v2351 = vunpack.c.h.b16 %v1062
    %v2352 = vunpack.c.l.b16 %v1063
    %v2353 = vunpack.c.h.b16 %v1063
    %v2354 = vunpack.c.l.b16 %v1064
    %v2355 = vunpack.c.h.b16 %v1064
    %v2356 = vunpack.c.l.b16 %v1065
    %v2357 = vunpack.c.h.b16 %v1065
    %v2358 = vunpack.c.l.b16 %v1066
    %v2359 = vunpack.c.h.b16 %v1066
    %v2360 = vunpack.c.l.b16 %v1067
    %v2361 = vunpack.c.h.b16 %v1067
    %v2362 = vunpack.c.l.b16 %v1068
    %v2363 = vunpack.c.h.b16 %v1068
    %v2364 = vunpack.c.l.b16 %v1069
    %v2365 = vunpack.c.h.b16 %v1069
    %v2366 = vunpack.c.l.b16 %v1070
    %v2367 = vunpack.c.h.b16 %v1070
    %v2368 = vunpack.c.l.b16 %v1071
    %v2369 = vunpack.c.h.b16 %v1071
    %v2370 = vunpack.c.l.b16 %v1072
    %v2371 = vunpack.c.h.b16 %v1072
    %v2372 = vunpack.c.l.b16 %v1073
    %v2373 = vunpack.c.h.b16 %v1073
    %v2374 = vunpack.c.l.b16 %v1074
    %v2375 = vunpack.c.h.b16 %v1074
    %v2376 = vunpack.c.l.b16 %v1075
    %v2377 = vunpack.c.h.b16 %v1075
    %v2378 = vunpack.c.l.b16 %v1076
    %v2379 = vunpack.c.h.b16 %v1076
    %v2380 = vunpack.c.l.b16 %v1077
    %v2381 = vunpack.c.h.b16 %v1077
    %v2382 = vunpack.c.l.b16 %v1078
    %v2383 = vunpack.c.h.b16 %v1078
    %v2384 = vunpack.c.l.b16 %v1079
    %v2385 = vunpack.c.h.b16 %v1079
    %v2386 = vunpack.c.l.b16 %v1080
    %v2387 = vunpack.c.h.b16 %v1080
    %v2388 = vunpack.c.l.b16 %v1081
    %v2389 = vunpack.c.h.b16 %v1081
    %v2390 = vunpack.c.l.b16 %v1082
    %v2391 = vunpack.c.h.b16 %v1082
    %v2392 = vunpack.c.l.b16 %v1083
    %v2393 = vunpack.c.h.b16 %v1083
    %v2394 = vunpack.c.l.b16 %v1084
    %v2395 = vunpack.c.h.b16 %v1084
    %v2396 = vunpack.c.l.b16 %v1085
    %v2397 = vunpack.c.h.b16 %v1085
    %v2398 = vunpack.c.l.b16 %v1086
    %v2399 = vunpack.c.h.b16 %v1086
    %v2400 = vunpack.c.l.b16 %v1087
    %v2401 = vunpack.c.h.b16 %v1087
    %v2402 = vunpack.c.l.b16 %v1088
    %v2403 = vunpack.c.h.b16 %v1088
    %v2404 = vunpack.c.l.b16 %v1089
    %v2405 = vunpack.c.h.b16 %v1089
    %v2406 = vunpack.c.l.b16 %v1090
    %v2407 = vunpack.c.h.b16 %v1090
    %v2408 = vunpack.c.l.b16 %v1091
    %v2409 = vunpack.c.h.b16 %v1091
    %v2410 = vunpack.c.l.b16 %v1092
    %v2411 = vunpack.c.h.b16 %v1092
    %v2412 = vunpack.c.l.b16 %v1093
    %v2413 = vunpack.c.h.b16 %v1093
    %v2414 = vunpack.c.l.b16 %v1094
    %v2415 = vunpack.c.h.b16 %v1094
    %v2416 = vunpack.c.l.b16 %v1095
    %v2417 = vunpack.c.h.b16 %v1095
    %v2418 = vunpack.c.l.b16 %v1096
    %v2419 = vunpack.c.h.b16 %v1096
    %v2420 = vunpack.c.l.b16 %v1097
    %v2421 = vunpack.c.h.b16 %v1097
    %v2422 = vunpack.c.l.b16 %v1098
    %v2423 = vunpack.c.h.b16 %v1098
    %v2424 = vunpack.c.l.b16 %v1099
    %v2425 = vunpack.c.h.b16 %v1099
    %v2426 = vunpack.c.l.b16 %v1100
    %v2427 = vunpack.c.h.b16 %v1100
    %v2428 = vunpack.c.l.b16 %v1101
    %v2429 = vunpack.c.h.b16 %v1101
    %v2430 = vunpack.c.l.b16 %v1102
    %v2431 = vunpack.c.h.b16 %v1102
    %v2432 = vunpack.c.l.b16 %v1103
    %v2433 = vunpack.c.h.b16 %v1103
    %v2434 = vunpack.c.l.b16 %v1104
    %v2435 = vunpack.c.h.b16 %v1104
    %v2436 = vunpack.c.l.b16 %v1105
    %v2437 = vunpack.c.h.b16 %v1105
    %v2438 = vunpack.c.l.b16 %v1106
    %v2439 = vunpack.c.h.b16 %v1106
    %v2440 = vunpack.c.l.b16 %v1107
    %v2441 = vunpack.c.h.b16 %v1107
    %v2442 = vunpack.c.l.b16 %v1108
    %v2443 = vunpack.c.h.b16 %v1108
    %v2444 = vunpack.c.l.b16 %v1109
    %v2445 = vunpack.c.h.b16 %v1109
    %v2446 = vunpack.c.l.b16 %v1110
    %v2447 = vunpack.c.h.b16 %v1110
    %v2448 = vunpack.c.l.b16 %v1111
    %v2449 = vunpack.c.h.b16 %v1111
    %v2450 = vunpack.c.l.b16 %v1112
    %v2451 = vunpack.c.h.b16 %v1112
    %v2452 = vunpack.c.l.b16 %v1113
    %v2453 = vunpack.c.h.b16 %v1113
    %v2454 = vunpack.c.l.b16 %v1114
    %v2455 = vunpack.c.h.b16 %v1114
    %v2456 = vunpack.c.l.b16 %v1115
    %v2457 = vunpack.c.h.b16 %v1115
    %v2458 = vunpack.c.l.b16 %v1116
    %v2459 = vunpack.c.h.b16 %v1116
    %v2460 = vunpack.c.l.b16 %v1117
    %v2461 = vunpack.c.h.b16 %v1117
    %v2462 = vunpack.c.l.b16 %v1118
    %v2463 = vunpack.c.h.b16 %v1118
    %v2464 = vunpack.c.l.b16 %v1119
    %v2465 = vunpack.c.h.b16 %v1119
    %v2466 = vunpack.c.l.b16 %v1120
    %v2467 = vunpack.c.h.b16 %v1120
    %v2468 = vunpack.c.l.b16 %v1121
    %v2469 = vunpack.c.h.b16 %v1121
    %v2470 = vunpack.c.l.b16 %v1122
    %v2471 = vunpack.c.h.b16 %v1122
    %v2472 = vunpack.c.l.b16 %v1123
    %v2473 = vunpack.c.h.b16 %v1123
    %v2474 = vunpack.c.l.b16 %v1124
    %v2475 = vunpack.c.h.b16 %v1124
    %v2476 = vunpack.c.l.b16 %v1125
    %v2477 = vunpack.c.h.b16 %v1125
    %v2478 = vunpack.c.l.b16 %v1126
    %v2479 = vunpack.c.h.b16 %v1126
    %v2480 = vunpack.c.l.b16 %v1127
    %v2481 = vunpack.c.h.b16 %v1127
    %v2482 = vunpack.c.l.b16 %v1128
    %v2483 = vunpack.c.h.b16 %v1128
    %v2484 = vunpack.c.l.b16 %v1129
    %v2485 = vunpack.c.h.b16 %v1129
    %v2486 = vunpack.c.l.b16 %v1130
    %v2487 = vunpack.c.h.b16 %v1130
    %v2488 = vunpack.c.l.b16 %v1131
    %v2489 = vunpack.c.h.b16 %v1131
    %v2490 = vunpack.c.l.b16 %v1132
    %v2491 = vunpack.c.h.b16 %v1132
    %v2492 = vunpack.c.l.b16 %v1133
    %v2493 = vunpack.c.h.b16 %v1133
    %v2494 = vunpack.c.l.b16 %v1134
    %v2495 = vunpack.c.h.b16 %v1134
    %v2496 = vunpack.c.l.b16 %v1135
    %v2497 = vunpack.c.h.b16 %v1135
    %v2498 = vunpack.c.l.b16 %v1136
    %v2499 = vunpack.c.h.b16 %v1136
    %v2500 = vunpack.c.l.b16 %v1137
    %v2501 = vunpack.c.h.b16 %v1137
    %v2502 = vunpack.c.l.b16 %v1138
    %v2503 = vunpack.c.h.b16 %v1138
    %v2504 = vpack.c.b16 %v2252, %v2248
    %v2505 = vpack.c.b16 %v2253, %v2249
    %v2506 = vpack.c.b16 %v2254, %v2250
    %v2507 = vpack.c.b16 %v2255, %v2251
    %v2508 = vpack.c.b16 %v2260, %v2256
    %v2509 = vpack.c.b16 %v2261, %v2257
    %v2510 = vpack.c.b16 %v2262, %v2258
    %v2511 = vpack.c.b16 %v2263, %v2259
    %v2512 = vpack.c.b16 %v2268, %v2264
    %v2513 = vpack.c.b16 %v2269, %v2265
    %v2514 = vpack.c.b16 %v2270, %v2266
    %v2515 = vpack.c.b16 %v2271, %v2267
    %v2516 = vpack.c.b16 %v2276, %v2272
    %v2517 = vpack.c.b16 %v2277, %v2273
    %v2518 = vpack.c.b16 %v2278, %v2274
    %v2519 = vpack.c.b16 %v2279, %v2275
    %v2520 = vpack.c.b16 %v2284, %v2280
    %v2521 = vpack.c.b16 %v2285, %v2281
    %v2522 = vpack.c.b16 %v2286, %v2282
    %v2523 = vpack.c.b16 %v2287, %v2283
    %v2524 = vpack.c.b16 %v2292, %v2288
    %v2525 = vpack.c.b16 %v2293, %v2289
    %v2526 = vpack.c.b16 %v2294, %v2290
    %v2527 = vpack.c.b16 %v2295, %v2291
    %v2528 = vpack.c.b16 %v2300, %v2296
    %v2529 = vpack.c.b16 %v2301, %v2297
    %v2530 = vpack.c.b16 %v2302, %v2298
    %v2531 = vpack.c.b16 %v2303, %v2299
    %v2532 = vpack.c.b16 %v2308, %v2304
    %v2533 = vpack.c.b16 %v2309, %v2305
    %v2534 = vpack.c.b16 %v2310, %v2306
    %v2535 = vpack.c.b16 %v2311, %v2307
    %v2536 = vpack.c.b16 %v2316, %v2312
    %v2537 = vpack.c.b16 %v2317, %v2313
    %v2538 = vpack.c.b16 %v2318, %v2314
    %v2539 = vpack.c.b16 %v2319, %v2315
    %v2540 = vpack.c.b16 %v2324, %v2320
    %v2541 = vpack.c.b16 %v2325, %v2321
    %v2542 = vpack.c.b16 %v2326, %v2322
    %v2543 = vpack.c.b16 %v2327, %v2323
    %v2544 = vpack.c.b16 %v2332, %v2328
    %v2545 = vpack.c.b16 %v2333, %v2329
    %v2546 = vpack.c.b16 %v2334, %v2330
    %v2547 = vpack.c.b16 %v2335, %v2331
    %v2548 = vpack.c.b16 %v2340, %v2336
    %v2549 = vpack.c.b16 %v2341, %v2337
    %v2550 = vpack.c.b16 %v2342, %v2338
    %v2551 = vpack.c.b16 %v2343, %v2339
    %v2552 = vpack.c.b16 %v2348, %v2344
    %v2553 = vpack.c.b16 %v2349, %v2345
    %v2554 = vpack.c.b16 %v2350, %v2346
    %v2555 = vpack.c.b16 %v2351, %v2347
    %v2556 = vpack.c.b16 %v2356, %v2352
    %v2557 = vpack.c.b16 %v2357, %v2353
    %v2558 = vpack.c.b16 %v2358, %v2354
    %v2559 = vpack.c.b16 %v2359, %v2355
    %v2560 = vpack.c.b16 %v2364, %v2360
    %v2561 = vpack.c.b16 %v2365, %v2361
    %v2562 = vpack.c.b16 %v2366, %v2362
    %v2563 = vpack.c.b16 %v2367, %v2363
    %v2564 = vpack.c.b16 %v2372, %v2368
    %v2565 = vpack.c.b16 %v2373, %v2369
    %v2566 = vpack.c.b16 %v2374, %v2370
    %v2567 = vpack.c.b16 %v2375, %v2371
    %v2568 = vpack.c.b16 %v2380, %v2376
    %v2569 = vpack.c.b16 %v2381, %v2377
    %v2570 = vpack.c.b16 %v2382, %v2378
    %v2571 = vpack.c.b16 %v2383, %v2379
    %v2572 = vpack.c.b16 %v2388, %v2384
    %v2573 = vpack.c.b16 %v2389, %v2385
    %v2574 = vpack.c.b16 %v2390, %v2386
    %v2575 = vpack.c.b16 %v2391, %v2387
    %v2576 = vpack.c.b16 %v2396, %v2392
    %v2577 = vpack.c.b16 %v2397, %v2393
    %v2578 = vpack.c.b16 %v2398, %v2394
    %v2579 = vpack.c.b16 %v2399, %v2395
    %v2580 = vpack.c.b16 %v2404, %v2400
    %v2581 = vpack.c.b16 %v2405, %v2401
    %v2582 = vpack.c.b16 %v2406, %v2402
    %v2583 = vpack.c.b16 %v2407, %v2403
    %v2584 = vpack.c.b16 %v2412, %v2408
    %v2585 = vpack.c.b16 %v2413, %v2409
    %v2586 = vpack.c.b16 %v2414, %v2410
    %v2587 = vpack.c.b16 %v2415, %v2411
    %v2588 = vpack.c.b16 %v2420, %v2416
    %v2589 = vpack.c.b16 %v2421, %v2417
    %v2590 = vpack.c.b16 %v2422, %v2418
    %v2591 = vpack.c.b16 %v2423, %v2419
    %v2592 = vpack.c.b16 %v2428, %v2424
    %v2593 = vpack.c.b16 %v2429, %v2425
    %v2594 = vpack.c.b16 %v2430, %v2426
    %v2595 = vpack.c.b16 %v2431, %v2427
    %v2596 = vpack.c.b16 %v2436, %v2432
    %v2597 = vpack.c.b16 %v2437, %v2433
    %v2598 = vpack.c.b16 %v2438, %v2434
    %v2599 = vpack.c.b16 %v2439, %v2435
    %v2600 = vpack.c.b16 %v2444, %v2440
    %v2601 = vpack.c.b16 %v2445, %v2441
    %v2602 = vpack.c.b16 %v2446, %v2442
    %v2603 = vpack.c.b16 %v2447, %v2443
    %v2604 = vpack.c.b16 %v2452, %v2448
    %v2605 = vpack.c.b16 %v2453, %v2449
    %v2606 = vpack.c.b16 %v2454, %v2450
    %v2607 = vpack.c.b16 %v2455, %v2451
    %v2608 = vpack.c.b16 %v2460, %v2456
    %v2609 = vpack.c.b16 %v2461, %v2457
    %v2610 = vpack.c.b16 %v2462, %v2458
    %v2611 = vpack.c.b16 %v2463, %v2459
    %v2612 = vpack.c.b16 %v2468, %v2464
    %v2613 = vpack.c.b16 %v2469, %v2465
    %v2614 = vpack.c.b16 %v2470, %v2466
    %v2615 = vpack.c.b16 %v2471, %v2467
    %v2616 = vpack.c.b16 %v2476, %v2472
    %v2617 = vpack.c.b16 %v2477, %v2473
    %v2618 = vpack.c.b16 %v2478, %v2474
    %v2619 = vpack.c.b16 %v2479, %v2475
    %v2620 = vpack.c.b16 %v2484, %v2480
    %v2621 = vpack.c.b16 %v2485, %v2481
    %v2622 = vpack.c.b16 %v2486, %v2482
    %v2623 = vpack.c.b16 %v2487, %v2483
    %v2624 = vpack.c.b16 %v2492, %v2488
    %v2625 = vpack.c.b16 %v2493, %v2489
    %v2626 = vpack.c.b16 %v2494, %v2490
    %v2627 = vpack.c.b16 %v2495, %v2491
    %v2628 = vpack.c.b16 %v2500, %v2496
    %v2629 = vpack.c.b16 %v2501, %v2497
    %v2630 = vpack.c.b16 %v2502, %v2498
    %v2631 = vpack.c.b16 %v2503, %v2499
    %2760 = vmatprep.subr.bf16.mxu0 %v2533
    %2761 = vmatpush1.bf16.msra.mxu0 %v2532
    %2762 = vmatprep.subr.bf16.mxu0 %v2529
    %2763 = vmatpush1.bf16.msra.mxu0 %v2528
    %2764 = vmatprep.subr.bf16.mxu0 %v2525
    %2765 = vmatpush1.bf16.msra.mxu0 %v2524
    %2766 = vmatprep.subr.bf16.mxu0 %v2521
    %2767 = vmatpush1.bf16.msra.mxu0 %v2520
    %2768 = vmatprep.subr.bf16.mxu0 %v2517
    %2769 = vmatpush1.bf16.msra.mxu0 %v2516
    %2770 = vmatprep.subr.bf16.mxu0 %v2513
    %2771 = vmatpush1.bf16.msra.mxu0 %v2512
    %2772 = vmatprep.subr.bf16.mxu0 %v2509
    %2773 = vmatpush1.bf16.msra.mxu0 %v2508
    %2774 = vmatprep.subr.bf16.mxu0 %v2505
    %2775 = vmatpush1.bf16.msra.mxu0 %v2504
    %2776 = vmatprep.subr.bf16.mxu0 %v2565
    %2777 = vmatpush2.bf16.msra.mxu0 %v2564
    %2778 = vmatprep.subr.bf16.mxu0 %v2561
    %2779 = vmatpush2.bf16.msra.mxu0 %v2560
    %2780 = vmatprep.subr.bf16.mxu0 %v2557
    %2781 = vmatpush2.bf16.msra.mxu0 %v2556
    %2782 = vmatprep.subr.bf16.mxu0 %v2553
    %2783 = vmatpush2.bf16.msra.mxu0 %v2552
    %2784 = vmatprep.subr.bf16.mxu0 %v2549
    %2785 = vmatpush2.bf16.msra.mxu0 %v2548
    %2786 = vmatprep.subr.bf16.mxu0 %v2545
    %2787 = vmatpush2.bf16.msra.mxu0 %v2544
    %2788 = vmatprep.subr.bf16.mxu0 %v2541
    %2789 = vmatpush2.bf16.msra.mxu0 %v2540
    %2790 = vmatprep.subr.bf16.mxu0 %v2537
    %2791 = vmatpush2.bf16.msra.mxu0 %v2536
    %2792 = vmatprep.mubr.bf16.mxu0 %v1004
    %2793 = vmatmul.mubr.bf16.gmra.mxu0 %v1003
    %v2794 = vpop.f32.mrf.mxu0
    %v2795 = vadd.f32 %v1996, %v2794
    %v2796 = vpop.f32.mrf.mxu0
    %v2797 = vadd.f32 %v1998, %v2796
    %v2798 = vpop.f32.mrf.mxu0
    %v2799 = vadd.f32 %v2000, %v2798
    %v2800 = vpop.f32.mrf.mxu0
    %v2801 = vadd.f32 %v2002, %v2800
    %2802 = vmatprep.mubr.bf16.mxu0 %v1008
    %2803 = vmatmul.mubr.bf16.gmra.mxu0 %v1007
    %v2804 = vpop.f32.mrf.mxu0
    %v2805 = vadd.f32 %v2006, %v2804
    %v2806 = vpop.f32.mrf.mxu0
    %v2807 = vadd.f32 %v2008, %v2806
    %v2808 = vpop.f32.mrf.mxu0
    %v2809 = vadd.f32 %v2010, %v2808
    %v2810 = vpop.f32.mrf.mxu0
    %v2811 = vadd.f32 %v2012, %v2810
    %2812 = vdwg.mxu0
    %2813 = vmatprep.subr.bf16.mxu0 %v2597
    %2814 = vmatpush1.bf16.msra.mxu0 %v2596
    %2815 = vmatprep.subr.bf16.mxu0 %v2593
    %2816 = vmatpush1.bf16.msra.mxu0 %v2592
    %2817 = vmatprep.subr.bf16.mxu0 %v2589
    %2818 = vmatpush1.bf16.msra.mxu0 %v2588
    %2819 = vmatprep.subr.bf16.mxu0 %v2585
    %2820 = vmatpush1.bf16.msra.mxu0 %v2584
    %2821 = vmatprep.subr.bf16.mxu0 %v2581
    %2822 = vmatpush1.bf16.msra.mxu0 %v2580
    %2823 = vmatprep.subr.bf16.mxu0 %v2577
    %2824 = vmatpush1.bf16.msra.mxu0 %v2576
    %2825 = vmatprep.subr.bf16.mxu0 %v2573
    %2826 = vmatpush1.bf16.msra.mxu0 %v2572
    %2827 = vmatprep.subr.bf16.mxu0 %v2569
    %2828 = vmatpush1.bf16.msra.mxu0 %v2568
    %2829 = vmatprep.subr.bf16.mxu0 %v2629
    %2830 = vmatpush2.bf16.msra.mxu0 %v2628
    %2831 = vmatprep.subr.bf16.mxu0 %v2625
    %2832 = vmatpush2.bf16.msra.mxu0 %v2624
    %2833 = vmatprep.subr.bf16.mxu0 %v2621
    %2834 = vmatpush2.bf16.msra.mxu0 %v2620
    %2835 = vmatprep.subr.bf16.mxu0 %v2617
    %2836 = vmatpush2.bf16.msra.mxu0 %v2616
    %2837 = vmatprep.subr.bf16.mxu0 %v2613
    %2838 = vmatpush2.bf16.msra.mxu0 %v2612
    %2839 = vmatprep.subr.bf16.mxu0 %v2609
    %2840 = vmatpush2.bf16.msra.mxu0 %v2608
    %2841 = vmatprep.subr.bf16.mxu0 %v2605
    %2842 = vmatpush2.bf16.msra.mxu0 %v2604
    %2843 = vmatprep.subr.bf16.mxu0 %v2601
    %2844 = vmatpush2.bf16.msra.mxu0 %v2600
    %2845 = vmatprep.mubr.bf16.mxu0 %v1006
    %2846 = vmatmul.mubr.bf16.gmra.mxu0 %v1005
    %v2847 = vpop.f32.mrf.mxu0
    %v2848 = vadd.f32 %v2795, %v2847
    %v2849 = vpop.f32.mrf.mxu0
    %v2850 = vadd.f32 %v2797, %v2849
    %v2851 = vpop.f32.mrf.mxu0
    %v2852 = vadd.f32 %v2799, %v2851
    %v2853 = vpop.f32.mrf.mxu0
    %v2854 = vadd.f32 %v2801, %v2853
    %2855 = vmatprep.mubr.bf16.mxu0 %v1010
    %2856 = vmatmul.mubr.bf16.gmra.mxu0 %v1009
    %v2857 = vpop.f32.mrf.mxu0
    %v2858 = vadd.f32 %v2805, %v2857
    %v2859 = vpop.f32.mrf.mxu0
    %v2860 = vadd.f32 %v2807, %v2859
    %v2861 = vpop.f32.mrf.mxu0
    %v2862 = vadd.f32 %v2809, %v2861
    %v2863 = vpop.f32.mrf.mxu0
    %v2864 = vadd.f32 %v2811, %v2863
    %2865 = vdwg.mxu0
    %2866 = vmatprep.subr.bf16.mxu0 %v2535
    %2867 = vmatpush1.bf16.msra.mxu0 %v2534
    %2868 = vmatprep.subr.bf16.mxu0 %v2531
    %2869 = vmatpush1.bf16.msra.mxu0 %v2530
    %2870 = vmatprep.subr.bf16.mxu0 %v2527
    %2871 = vmatpush1.bf16.msra.mxu0 %v2526
    %2872 = vmatprep.subr.bf16.mxu0 %v2523
    %2873 = vmatpush1.bf16.msra.mxu0 %v2522
    %2874 = vmatprep.subr.bf16.mxu0 %v2519
    %2875 = vmatpush1.bf16.msra.mxu0 %v2518
    %2876 = vmatprep.subr.bf16.mxu0 %v2515
    %2877 = vmatpush1.bf16.msra.mxu0 %v2514
    %2878 = vmatprep.subr.bf16.mxu0 %v2511
    %2879 = vmatpush1.bf16.msra.mxu0 %v2510
    %2880 = vmatprep.subr.bf16.mxu0 %v2507
    %2881 = vmatpush1.bf16.msra.mxu0 %v2506
    %2882 = vmatprep.subr.bf16.mxu0 %v2567
    %2883 = vmatpush2.bf16.msra.mxu0 %v2566
    %2884 = vmatprep.subr.bf16.mxu0 %v2563
    %2885 = vmatpush2.bf16.msra.mxu0 %v2562
    %2886 = vmatprep.subr.bf16.mxu0 %v2559
    %2887 = vmatpush2.bf16.msra.mxu0 %v2558
    %2888 = vmatprep.subr.bf16.mxu0 %v2555
    %2889 = vmatpush2.bf16.msra.mxu0 %v2554
    %2890 = vmatprep.subr.bf16.mxu0 %v2551
    %2891 = vmatpush2.bf16.msra.mxu0 %v2550
    %2892 = vmatprep.subr.bf16.mxu0 %v2547
    %2893 = vmatpush2.bf16.msra.mxu0 %v2546
    %2894 = vmatprep.subr.bf16.mxu0 %v2543
    %2895 = vmatpush2.bf16.msra.mxu0 %v2542
    %2896 = vmatprep.subr.bf16.mxu0 %v2539
    %2897 = vmatpush2.bf16.msra.mxu0 %v2538
    %2898 = vmatprep.mubr.bf16.mxu0 %v1004
    %2899 = vmatmul.mubr.bf16.gmra.mxu0 %v1003
    %v2900 = vpop.f32.mrf.mxu0
    %v2901 = vadd.f32 %v2102, %v2900
    %v2902 = vpop.f32.mrf.mxu0
    %v2903 = vadd.f32 %v2104, %v2902
    %v2904 = vpop.f32.mrf.mxu0
    %v2905 = vadd.f32 %v2106, %v2904
    %v2906 = vpop.f32.mrf.mxu0
    %v2907 = vadd.f32 %v2108, %v2906
    %2908 = vmatprep.mubr.bf16.mxu0 %v1008
    %2909 = vmatmul.mubr.bf16.gmra.mxu0 %v1007
    %v2910 = vpop.f32.mrf.mxu0
    %v2911 = vadd.f32 %v2112, %v2910
    %v2912 = vpop.f32.mrf.mxu0
    %v2913 = vadd.f32 %v2114, %v2912
    %v2914 = vpop.f32.mrf.mxu0
    %v2915 = vadd.f32 %v2116, %v2914
    %v2916 = vpop.f32.mrf.mxu0
    %v2917 = vadd.f32 %v2118, %v2916
    %2918 = vdwg.mxu0
    %2919 = vmatprep.subr.bf16.mxu0 %v2599
    %2920 = vmatpush1.bf16.msra.mxu0 %v2598
    %2921 = vmatprep.subr.bf16.mxu0 %v2595
    %2922 = vmatpush1.bf16.msra.mxu0 %v2594
    %2923 = vmatprep.subr.bf16.mxu0 %v2591
    %2924 = vmatpush1.bf16.msra.mxu0 %v2590
    %2925 = vmatprep.subr.bf16.mxu0 %v2587
    %2926 = vmatpush1.bf16.msra.mxu0 %v2586
    %2927 = vmatprep.subr.bf16.mxu0 %v2583
    %2928 = vmatpush1.bf16.msra.mxu0 %v2582
    %2929 = vmatprep.subr.bf16.mxu0 %v2579
    %2930 = vmatpush1.bf16.msra.mxu0 %v2578
    %2931 = vmatprep.subr.bf16.mxu0 %v2575
    %2932 = vmatpush1.bf16.msra.mxu0 %v2574
    %2933 = vmatprep.subr.bf16.mxu0 %v2571
    %2934 = vmatpush1.bf16.msra.mxu0 %v2570
    %2935 = vmatprep.subr.bf16.mxu0 %v2631
    %2936 = vmatpush2.bf16.msra.mxu0 %v2630
    %2937 = vmatprep.subr.bf16.mxu0 %v2627
    %2938 = vmatpush2.bf16.msra.mxu0 %v2626
    %2939 = vmatprep.subr.bf16.mxu0 %v2623
    %2940 = vmatpush2.bf16.msra.mxu0 %v2622
    %2941 = vmatprep.subr.bf16.mxu0 %v2619
    %2942 = vmatpush2.bf16.msra.mxu0 %v2618
    %2943 = vmatprep.subr.bf16.mxu0 %v2615
    %2944 = vmatpush2.bf16.msra.mxu0 %v2614
    %2945 = vmatprep.subr.bf16.mxu0 %v2611
    %2946 = vmatpush2.bf16.msra.mxu0 %v2610
    %2947 = vmatprep.subr.bf16.mxu0 %v2607
    %2948 = vmatpush2.bf16.msra.mxu0 %v2606
    %2949 = vmatprep.subr.bf16.mxu0 %v2603
    %2950 = vmatpush2.bf16.msra.mxu0 %v2602
    %2951 = vmatprep.mubr.bf16.mxu0 %v1006
    %2952 = vmatmul.mubr.bf16.gmra.mxu0 %v1005
    %v2953 = vpop.f32.mrf.mxu0
    %v2954 = vadd.f32 %v2901, %v2953
    %v2955 = vpop.f32.mrf.mxu0
    %v2956 = vadd.f32 %v2903, %v2955
    %v2957 = vpop.f32.mrf.mxu0
    %v2958 = vadd.f32 %v2905, %v2957
    %v2959 = vpop.f32.mrf.mxu0
    %v2960 = vadd.f32 %v2907, %v2959
    %2961 = vmatprep.mubr.bf16.mxu0 %v1010
    %2962 = vmatmul.mubr.bf16.gmra.mxu0 %v1009
    %v2963 = vpop.f32.mrf.mxu0
    %v2964 = vadd.f32 %v2911, %v2963
    %v2965 = vpop.f32.mrf.mxu0
    %v2966 = vadd.f32 %v2913, %v2965
    %v2967 = vpop.f32.mrf.mxu0
    %v2968 = vadd.f32 %v2915, %v2967
    %v2969 = vpop.f32.mrf.mxu0
    %v2970 = vadd.f32 %v2917, %v2969
    %2971 = vdwg.mxu0
    %2972 = vmatprep.subr.bf16.mxu0 0
    %2973 = vmatpush1.bf16.msra.mxu0 0
    %2974 = vmatprep.subr.bf16.mxu0 0
    %2975 = vmatpush1.bf16.msra.mxu0 0
    %2976 = vmatprep.subr.bf16.mxu0 0
    %2977 = vmatpush1.bf16.msra.mxu0 0
    %2978 = vmatprep.subr.bf16.mxu0 0
    %2979 = vmatpush1.bf16.msra.mxu0 0
    %2980 = vmatprep.subr.bf16.mxu0 0
    %2981 = vmatpush1.bf16.msra.mxu0 0
    %2982 = vmatprep.subr.bf16.mxu0 0
    %2983 = vmatpush1.bf16.msra.mxu0 0
    %2984 = vmatprep.subr.bf16.mxu0 %v893
    %2985 = vmatpush1.bf16.msra.mxu0 %v892
    %2986 = vmatprep.subr.bf16.mxu0 %v889
    %2987 = vmatpush1.bf16.msra.mxu0 %v888
    %2988 = vmatprep.subr.bf16.mxu0 0
    %2989 = vmatpush2.bf16.msra.mxu0 0
    %2990 = vmatprep.subr.bf16.mxu0 0
    %2991 = vmatpush2.bf16.msra.mxu0 0
    %2992 = vmatprep.subr.bf16.mxu0 0
    %2993 = vmatpush2.bf16.msra.mxu0 0
    %2994 = vmatprep.subr.bf16.mxu0 0
    %2995 = vmatpush2.bf16.msra.mxu0 0
    %2996 = vmatprep.subr.bf16.mxu0 0
    %2997 = vmatpush2.bf16.msra.mxu0 0
    %2998 = vmatprep.subr.bf16.mxu0 0
    %2999 = vmatpush2.bf16.msra.mxu0 0
    %3000 = vmatprep.subr.bf16.mxu0 0
    %3001 = vmatpush2.bf16.msra.mxu0 0
    %3002 = vmatprep.subr.bf16.mxu0 0
    %3003 = vmatpush2.bf16.msra.mxu0 0
    %3004 = vmatprep.mubr.bf16.mxu0 0
    %3005 = vmatmul.mubr.bf16.gmra.mxu0 %v554
    %v3006 = vpop.f32.mrf.mxu0
    %v3007 = vadd.f32 0.0, %v3006
    %v3008 = vpop.f32.mrf.mxu0
    %v3009 = vadd.f32 0.0, %v3008
    %v3010 = vpop.f32.mrf.mxu0
    %v3011 = vadd.f32 0.0, %v3010
    %v3012 = vpop.f32.mrf.mxu0
    %v3013 = vadd.f32 0.0, %v3012
    %3014 = vmatprep.mubr.bf16.mxu0 0
    %3015 = vmatmul.mubr.bf16.gmra.mxu0 %v557
    %v3016 = vpop.f32.mrf.mxu0
    %v3017 = vadd.f32 0.0, %v3016
    %v3018 = vpop.f32.mrf.mxu0
    %v3019 = vadd.f32 0.0, %v3018
    %v3020 = vpop.f32.mrf.mxu0
    %v3021 = vadd.f32 0.0, %v3020
    %v3022 = vpop.f32.mrf.mxu0
    %v3023 = vadd.f32 0.0, %v3022
    %3024 = vdwg.mxu0
    %3025 = vmatprep.subr.bf16.mxu0 0
    %3026 = vmatpush1.bf16.msra.mxu0 0
    %3027 = vmatprep.subr.bf16.mxu0 0
    %3028 = vmatpush1.bf16.msra.mxu0 0
    %3029 = vmatprep.subr.bf16.mxu0 0
    %3030 = vmatpush1.bf16.msra.mxu0 0
    %3031 = vmatprep.subr.bf16.mxu0 0
    %3032 = vmatpush1.bf16.msra.mxu0 0
    %3033 = vmatprep.subr.bf16.mxu0 0
    %3034 = vmatpush1.bf16.msra.mxu0 0
    %3035 = vmatprep.subr.bf16.mxu0 0
    %3036 = vmatpush1.bf16.msra.mxu0 0
    %3037 = vmatprep.subr.bf16.mxu0 %v895
    %3038 = vmatpush1.bf16.msra.mxu0 %v894
    %3039 = vmatprep.subr.bf16.mxu0 %v891
    %3040 = vmatpush1.bf16.msra.mxu0 %v890
    %3041 = vmatprep.subr.bf16.mxu0 0
    %3042 = vmatpush2.bf16.msra.mxu0 0
    %3043 = vmatprep.subr.bf16.mxu0 0
    %3044 = vmatpush2.bf16.msra.mxu0 0
    %3045 = vmatprep.subr.bf16.mxu0 0
    %3046 = vmatpush2.bf16.msra.mxu0 0
    %3047 = vmatprep.subr.bf16.mxu0 0
    %3048 = vmatpush2.bf16.msra.mxu0 0
    %3049 = vmatprep.subr.bf16.mxu0 0
    %3050 = vmatpush2.bf16.msra.mxu0 0
    %3051 = vmatprep.subr.bf16.mxu0 0
    %3052 = vmatpush2.bf16.msra.mxu0 0
    %3053 = vmatprep.subr.bf16.mxu0 0
    %3054 = vmatpush2.bf16.msra.mxu0 0
    %3055 = vmatprep.subr.bf16.mxu0 0
    %3056 = vmatpush2.bf16.msra.mxu0 0
    %3057 = vmatprep.mubr.bf16.mxu0 0
    %3058 = vmatmul.mubr.bf16.gmra.mxu0 %v554
    %v3059 = vpop.f32.mrf.mxu0
    %v3060 = vadd.f32 0.0, %v3059
    %v3061 = vpop.f32.mrf.mxu0
    %v3062 = vadd.f32 0.0, %v3061
    %v3063 = vpop.f32.mrf.mxu0
    %v3064 = vadd.f32 0.0, %v3063
    %v3065 = vpop.f32.mrf.mxu0
    %v3066 = vadd.f32 0.0, %v3065
    %3067 = vmatprep.mubr.bf16.mxu0 0
    %3068 = vmatmul.mubr.bf16.gmra.mxu0 %v557
    %v3069 = vpop.f32.mrf.mxu0
    %v3070 = vadd.f32 0.0, %v3069
    %v3071 = vpop.f32.mrf.mxu0
    %v3072 = vadd.f32 0.0, %v3071
    %v3073 = vpop.f32.mrf.mxu0
    %v3074 = vadd.f32 0.0, %v3073
    %v3075 = vpop.f32.mrf.mxu0
    %v3076 = vadd.f32 0.0, %v3075
    %3077 = vdwg.mxu0
    %v3078 = vpack.c.bf16 %v3011, %v3007
    %v3079 = vpack.c.bf16 %v3013, %v3009
    %v3080 = vpack.c.bf16 %v3064, %v3060
    %v3081 = vpack.c.bf16 %v3066, %v3062
    %v3082 = vpack.c.bf16 %v3021, %v3017
    %v3083 = vpack.c.bf16 %v3023, %v3019
    %v3084 = vpack.c.bf16 %v3074, %v3070
    %v3085 = vpack.c.bf16 %v3076, %v3072
    %s3086 = scalar_lea.vmem %s4, 2048
    %v3087 = vld [vmem:[%s3086] sm:$0xff]
    %v3088 = vld [vmem:[%s3086 + $0x8] sm:$0xff]
    %v3089 = vld [vmem:[%s3086 + $0x10] sm:$0xff]
    %v3090 = vld [vmem:[%s3086 + $0x18] sm:$0xff]
    %v3091 = vld [vmem:[%s3086 + $0x20] sm:$0xff]
    %v3092 = vld [vmem:[%s3086 + $0x28] sm:$0xff]
    %v3093 = vld [vmem:[%s3086 + $0x30] sm:$0xff]
    %v3094 = vld [vmem:[%s3086 + $0x38] sm:$0xff]
    %v3095 = vld [vmem:[%s3086 + $0x40] sm:$0xff]
    %v3096 = vld [vmem:[%s3086 + $0x48] sm:$0xff]
    %v3097 = vld [vmem:[%s3086 + $0x50] sm:$0xff]
    %v3098 = vld [vmem:[%s3086 + $0x58] sm:$0xff]
    %v3099 = vld [vmem:[%s3086 + $0x60] sm:$0xff]
    %v3100 = vld [vmem:[%s3086 + $0x68] sm:$0xff]
    %v3101 = vld [vmem:[%s3086 + $0x70] sm:$0xff]
    %v3102 = vld [vmem:[%s3086 + $0x78] sm:$0xff]
    %v3103 = vld [vmem:[%s3086 + $0x80] sm:$0xff]
    %v3104 = vld [vmem:[%s3086 + $0x88] sm:$0xff]
    %v3105 = vld [vmem:[%s3086 + $0x90] sm:$0xff]
    %v3106 = vld [vmem:[%s3086 + $0x98] sm:$0xff]
    %v3107 = vld [vmem:[%s3086 + $0xa0] sm:$0xff]
    %v3108 = vld [vmem:[%s3086 + $0xa8] sm:$0xff]
    %v3109 = vld [vmem:[%s3086 + $0xb0] sm:$0xff]
    %v3110 = vld [vmem:[%s3086 + $0xb8] sm:$0xff]
    %v3111 = vld [vmem:[%s3086 + $0xc0] sm:$0xff]
    %v3112 = vld [vmem:[%s3086 + $0xc8] sm:$0xff]
    %v3113 = vld [vmem:[%s3086 + $0xd0] sm:$0xff]
    %v3114 = vld [vmem:[%s3086 + $0xd8] sm:$0xff]
    %v3115 = vld [vmem:[%s3086 + $0xe0] sm:$0xff]
    %v3116 = vld [vmem:[%s3086 + $0xe8] sm:$0xff]
    %v3117 = vld [vmem:[%s3086 + $0xf0] sm:$0xff]
    %v3118 = vld [vmem:[%s3086 + $0xf8] sm:$0xff]
    %v3119 = vld [vmem:[%s3086 + $0x100] sm:$0xff]
    %v3120 = vld [vmem:[%s3086 + $0x108] sm:$0xff]
    %v3121 = vld [vmem:[%s3086 + $0x110] sm:$0xff]
    %v3122 = vld [vmem:[%s3086 + $0x118] sm:$0xff]
    %v3123 = vld [vmem:[%s3086 + $0x120] sm:$0xff]
    %v3124 = vld [vmem:[%s3086 + $0x128] sm:$0xff]
    %v3125 = vld [vmem:[%s3086 + $0x130] sm:$0xff]
    %v3126 = vld [vmem:[%s3086 + $0x138] sm:$0xff]
    %v3127 = vld [vmem:[%s3086 + $0x140] sm:$0xff]
    %v3128 = vld [vmem:[%s3086 + $0x148] sm:$0xff]
    %v3129 = vld [vmem:[%s3086 + $0x150] sm:$0xff]
    %v3130 = vld [vmem:[%s3086 + $0x158] sm:$0xff]
    %v3131 = vld [vmem:[%s3086 + $0x160] sm:$0xff]
    %v3132 = vld [vmem:[%s3086 + $0x168] sm:$0xff]
    %v3133 = vld [vmem:[%s3086 + $0x170] sm:$0xff]
    %v3134 = vld [vmem:[%s3086 + $0x178] sm:$0xff]
    %v3135 = vld [vmem:[%s3086 + $0x180] sm:$0xff]
    %v3136 = vld [vmem:[%s3086 + $0x188] sm:$0xff]
    %v3137 = vld [vmem:[%s3086 + $0x190] sm:$0xff]
    %v3138 = vld [vmem:[%s3086 + $0x198] sm:$0xff]
    %v3139 = vld [vmem:[%s3086 + $0x1a0] sm:$0xff]
    %v3140 = vld [vmem:[%s3086 + $0x1a8] sm:$0xff]
    %v3141 = vld [vmem:[%s3086 + $0x1b0] sm:$0xff]
    %v3142 = vld [vmem:[%s3086 + $0x1b8] sm:$0xff]
    %v3143 = vld [vmem:[%s3086 + $0x1c0] sm:$0xff]
    %v3144 = vld [vmem:[%s3086 + $0x1c8] sm:$0xff]
    %v3145 = vld [vmem:[%s3086 + $0x1d0] sm:$0xff]
    %v3146 = vld [vmem:[%s3086 + $0x1d8] sm:$0xff]
    %v3147 = vld [vmem:[%s3086 + $0x1e0] sm:$0xff]
    %v3148 = vld [vmem:[%s3086 + $0x1e8] sm:$0xff]
    %v3149 = vld [vmem:[%s3086 + $0x1f0] sm:$0xff]
    %v3150 = vld [vmem:[%s3086 + $0x1f8] sm:$0xff]
    %v3151 = vld [vmem:[%s3086 + $0x200] sm:$0xff]
    %v3152 = vld [vmem:[%s3086 + $0x208] sm:$0xff]
    %v3153 = vld [vmem:[%s3086 + $0x210] sm:$0xff]
    %v3154 = vld [vmem:[%s3086 + $0x218] sm:$0xff]
    %v3155 = vld [vmem:[%s3086 + $0x220] sm:$0xff]
    %v3156 = vld [vmem:[%s3086 + $0x228] sm:$0xff]
    %v3157 = vld [vmem:[%s3086 + $0x230] sm:$0xff]
    %v3158 = vld [vmem:[%s3086 + $0x238] sm:$0xff]
    %v3159 = vld [vmem:[%s3086 + $0x240] sm:$0xff]
    %v3160 = vld [vmem:[%s3086 + $0x248] sm:$0xff]
    %v3161 = vld [vmem:[%s3086 + $0x250] sm:$0xff]
    %v3162 = vld [vmem:[%s3086 + $0x258] sm:$0xff]
    %v3163 = vld [vmem:[%s3086 + $0x260] sm:$0xff]
    %v3164 = vld [vmem:[%s3086 + $0x268] sm:$0xff]
    %v3165 = vld [vmem:[%s3086 + $0x270] sm:$0xff]
    %v3166 = vld [vmem:[%s3086 + $0x278] sm:$0xff]
    %v3167 = vld [vmem:[%s3086 + $0x280] sm:$0xff]
    %v3168 = vld [vmem:[%s3086 + $0x288] sm:$0xff]
    %v3169 = vld [vmem:[%s3086 + $0x290] sm:$0xff]
    %v3170 = vld [vmem:[%s3086 + $0x298] sm:$0xff]
    %v3171 = vld [vmem:[%s3086 + $0x2a0] sm:$0xff]
    %v3172 = vld [vmem:[%s3086 + $0x2a8] sm:$0xff]
    %v3173 = vld [vmem:[%s3086 + $0x2b0] sm:$0xff]
    %v3174 = vld [vmem:[%s3086 + $0x2b8] sm:$0xff]
    %v3175 = vld [vmem:[%s3086 + $0x2c0] sm:$0xff]
    %v3176 = vld [vmem:[%s3086 + $0x2c8] sm:$0xff]
    %v3177 = vld [vmem:[%s3086 + $0x2d0] sm:$0xff]
    %v3178 = vld [vmem:[%s3086 + $0x2d8] sm:$0xff]
    %v3179 = vld [vmem:[%s3086 + $0x2e0] sm:$0xff]
    %v3180 = vld [vmem:[%s3086 + $0x2e8] sm:$0xff]
    %v3181 = vld [vmem:[%s3086 + $0x2f0] sm:$0xff]
    %v3182 = vld [vmem:[%s3086 + $0x2f8] sm:$0xff]
    %v3183 = vld [vmem:[%s3086 + $0x300] sm:$0xff]
    %v3184 = vld [vmem:[%s3086 + $0x308] sm:$0xff]
    %v3185 = vld [vmem:[%s3086 + $0x310] sm:$0xff]
    %v3186 = vld [vmem:[%s3086 + $0x318] sm:$0xff]
    %v3187 = vld [vmem:[%s3086 + $0x320] sm:$0xff]
    %v3188 = vld [vmem:[%s3086 + $0x328] sm:$0xff]
    %v3189 = vld [vmem:[%s3086 + $0x330] sm:$0xff]
    %v3190 = vld [vmem:[%s3086 + $0x338] sm:$0xff]
    %v3191 = vld [vmem:[%s3086 + $0x340] sm:$0xff]
    %v3192 = vld [vmem:[%s3086 + $0x348] sm:$0xff]
    %v3193 = vld [vmem:[%s3086 + $0x350] sm:$0xff]
    %v3194 = vld [vmem:[%s3086 + $0x358] sm:$0xff]
    %v3195 = vld [vmem:[%s3086 + $0x360] sm:$0xff]
    %v3196 = vld [vmem:[%s3086 + $0x368] sm:$0xff]
    %v3197 = vld [vmem:[%s3086 + $0x370] sm:$0xff]
    %v3198 = vld [vmem:[%s3086 + $0x378] sm:$0xff]
    %v3199 = vld [vmem:[%s3086 + $0x380] sm:$0xff]
    %v3200 = vld [vmem:[%s3086 + $0x388] sm:$0xff]
    %v3201 = vld [vmem:[%s3086 + $0x390] sm:$0xff]
    %v3202 = vld [vmem:[%s3086 + $0x398] sm:$0xff]
    %v3203 = vld [vmem:[%s3086 + $0x3a0] sm:$0xff]
    %v3204 = vld [vmem:[%s3086 + $0x3a8] sm:$0xff]
    %v3205 = vld [vmem:[%s3086 + $0x3b0] sm:$0xff]
    %v3206 = vld [vmem:[%s3086 + $0x3b8] sm:$0xff]
    %v3207 = vld [vmem:[%s3086 + $0x3c0] sm:$0xff]
    %v3208 = vld [vmem:[%s3086 + $0x3c8] sm:$0xff]
    %v3209 = vld [vmem:[%s3086 + $0x3d0] sm:$0xff]
    %v3210 = vld [vmem:[%s3086 + $0x3d8] sm:$0xff]
    %v3211 = vld [vmem:[%s3086 + $0x3e0] sm:$0xff]
    %v3212 = vld [vmem:[%s3086 + $0x3e8] sm:$0xff]
    %v3213 = vld [vmem:[%s3086 + $0x3f0] sm:$0xff]
    %v3214 = vld [vmem:[%s3086 + $0x3f8] sm:$0xff]
    %v3343 = vunpack.c.l.b16 %v3087
    %v3344 = vunpack.c.h.b16 %v3087
    %v3345 = vunpack.c.l.b16 %v3088
    %v3346 = vunpack.c.h.b16 %v3088
    %v3347 = vunpack.c.l.b16 %v3089
    %v3348 = vunpack.c.h.b16 %v3089
    %v3349 = vunpack.c.l.b16 %v3090
    %v3350 = vunpack.c.h.b16 %v3090
    %v3351 = vunpack.c.l.b16 %v3091
    %v3352 = vunpack.c.h.b16 %v3091
    %v3353 = vunpack.c.l.b16 %v3092
    %v3354 = vunpack.c.h.b16 %v3092
    %v3355 = vunpack.c.l.b16 %v3093
    %v3356 = vunpack.c.h.b16 %v3093
    %v3357 = vunpack.c.l.b16 %v3094
    %v3358 = vunpack.c.h.b16 %v3094
    %v3359 = vunpack.c.l.b16 %v3095
    %v3360 = vunpack.c.h.b16 %v3095
    %v3361 = vunpack.c.l.b16 %v3096
    %v3362 = vunpack.c.h.b16 %v3096
    %v3363 = vunpack.c.l.b16 %v3097
    %v3364 = vunpack.c.h.b16 %v3097
    %v3365 = vunpack.c.l.b16 %v3098
    %v3366 = vunpack.c.h.b16 %v3098
    %v3367 = vunpack.c.l.b16 %v3099
    %v3368 = vunpack.c.h.b16 %v3099
    %v3369 = vunpack.c.l.b16 %v3100
    %v3370 = vunpack.c.h.b16 %v3100
    %v3371 = vunpack.c.l.b16 %v3101
    %v3372 = vunpack.c.h.b16 %v3101
    %v3373 = vunpack.c.l.b16 %v3102
    %v3374 = vunpack.c.h.b16 %v3102
    %v3375 = vunpack.c.l.b16 %v3103
    %v3376 = vunpack.c.h.b16 %v3103
    %v3377 = vunpack.c.l.b16 %v3104
    %v3378 = vunpack.c.h.b16 %v3104
    %v3379 = vunpack.c.l.b16 %v3105
    %v3380 = vunpack.c.h.b16 %v3105
    %v3381 = vunpack.c.l.b16 %v3106
    %v3382 = vunpack.c.h.b16 %v3106
    %v3383 = vunpack.c.l.b16 %v3107
    %v3384 = vunpack.c.h.b16 %v3107
    %v3385 = vunpack.c.l.b16 %v3108
    %v3386 = vunpack.c.h.b16 %v3108
    %v3387 = vunpack.c.l.b16 %v3109
    %v3388 = vunpack.c.h.b16 %v3109
    %v3389 = vunpack.c.l.b16 %v3110
    %v3390 = vunpack.c.h.b16 %v3110
    %v3391 = vunpack.c.l.b16 %v3111
    %v3392 = vunpack.c.h.b16 %v3111
    %v3393 = vunpack.c.l.b16 %v3112
    %v3394 = vunpack.c.h.b16 %v3112
    %v3395 = vunpack.c.l.b16 %v3113
    %v3396 = vunpack.c.h.b16 %v3113
    %v3397 = vunpack.c.l.b16 %v3114
    %v3398 = vunpack.c.h.b16 %v3114
    %v3399 = vunpack.c.l.b16 %v3115
    %v3400 = vunpack.c.h.b16 %v3115
    %v3401 = vunpack.c.l.b16 %v3116
    %v3402 = vunpack.c.h.b16 %v3116
    %v3403 = vunpack.c.l.b16 %v3117
    %v3404 = vunpack.c.h.b16 %v3117
    %v3405 = vunpack.c.l.b16 %v3118
    %v3406 = vunpack.c.h.b16 %v3118
    %v3407 = vunpack.c.l.b16 %v3119
    %v3408 = vunpack.c.h.b16 %v3119
    %v3409 = vunpack.c.l.b16 %v3120
    %v3410 = vunpack.c.h.b16 %v3120
    %v3411 = vunpack.c.l.b16 %v3121
    %v3412 = vunpack.c.h.b16 %v3121
    %v3413 = vunpack.c.l.b16 %v3122
    %v3414 = vunpack.c.h.b16 %v3122
    %v3415 = vunpack.c.l.b16 %v3123
    %v3416 = vunpack.c.h.b16 %v3123
    %v3417 = vunpack.c.l.b16 %v3124
    %v3418 = vunpack.c.h.b16 %v3124
    %v3419 = vunpack.c.l.b16 %v3125
    %v3420 = vunpack.c.h.b16 %v3125
    %v3421 = vunpack.c.l.b16 %v3126
    %v3422 = vunpack.c.h.b16 %v3126
    %v3423 = vunpack.c.l.b16 %v3127
    %v3424 = vunpack.c.h.b16 %v3127
    %v3425 = vunpack.c.l.b16 %v3128
    %v3426 = vunpack.c.h.b16 %v3128
    %v3427 = vunpack.c.l.b16 %v3129
    %v3428 = vunpack.c.h.b16 %v3129
    %v3429 = vunpack.c.l.b16 %v3130
    %v3430 = vunpack.c.h.b16 %v3130
    %v3431 = vunpack.c.l.b16 %v3131
    %v3432 = vunpack.c.h.b16 %v3131
    %v3433 = vunpack.c.l.b16 %v3132
    %v3434 = vunpack.c.h.b16 %v3132
    %v3435 = vunpack.c.l.b16 %v3133
    %v3436 = vunpack.c.h.b16 %v3133
    %v3437 = vunpack.c.l.b16 %v3134
    %v3438 = vunpack.c.h.b16 %v3134
    %v3439 = vunpack.c.l.b16 %v3135
    %v3440 = vunpack.c.h.b16 %v3135
    %v3441 = vunpack.c.l.b16 %v3136
    %v3442 = vunpack.c.h.b16 %v3136
    %v3443 = vunpack.c.l.b16 %v3137
    %v3444 = vunpack.c.h.b16 %v3137
    %v3445 = vunpack.c.l.b16 %v3138
    %v3446 = vunpack.c.h.b16 %v3138
    %v3447 = vunpack.c.l.b16 %v3139
    %v3448 = vunpack.c.h.b16 %v3139
    %v3449 = vunpack.c.l.b16 %v3140
    %v3450 = vunpack.c.h.b16 %v3140
    %v3451 = vunpack.c.l.b16 %v3141
    %v3452 = vunpack.c.h.b16 %v3141
    %v3453 = vunpack.c.l.b16 %v3142
    %v3454 = vunpack.c.h.b16 %v3142
    %v3455 = vunpack.c.l.b16 %v3143
    %v3456 = vunpack.c.h.b16 %v3143
    %v3457 = vunpack.c.l.b16 %v3144
    %v3458 = vunpack.c.h.b16 %v3144
    %v3459 = vunpack.c.l.b16 %v3145
    %v3460 = vunpack.c.h.b16 %v3145
    %v3461 = vunpack.c.l.b16 %v3146
    %v3462 = vunpack.c.h.b16 %v3146
    %v3463 = vunpack.c.l.b16 %v3147
    %v3464 = vunpack.c.h.b16 %v3147
    %v3465 = vunpack.c.l.b16 %v3148
    %v3466 = vunpack.c.h.b16 %v3148
    %v3467 = vunpack.c.l.b16 %v3149
    %v3468 = vunpack.c.h.b16 %v3149
    %v3469 = vunpack.c.l.b16 %v3150
    %v3470 = vunpack.c.h.b16 %v3150
    %v3471 = vunpack.c.l.b16 %v3151
    %v3472 = vunpack.c.h.b16 %v3151
    %v3473 = vunpack.c.l.b16 %v3152
    %v3474 = vunpack.c.h.b16 %v3152
    %v3475 = vunpack.c.l.b16 %v3153
    %v3476 = vunpack.c.h.b16 %v3153
    %v3477 = vunpack.c.l.b16 %v3154
    %v3478 = vunpack.c.h.b16 %v3154
    %v3479 = vunpack.c.l.b16 %v3155
    %v3480 = vunpack.c.h.b16 %v3155
    %v3481 = vunpack.c.l.b16 %v3156
    %v3482 = vunpack.c.h.b16 %v3156
    %v3483 = vunpack.c.l.b16 %v3157
    %v3484 = vunpack.c.h.b16 %v3157
    %v3485 = vunpack.c.l.b16 %v3158
    %v3486 = vunpack.c.h.b16 %v3158
    %v3487 = vunpack.c.l.b16 %v3159
    %v3488 = vunpack.c.h.b16 %v3159
    %v3489 = vunpack.c.l.b16 %v3160
    %v3490 = vunpack.c.h.b16 %v3160
    %v3491 = vunpack.c.l.b16 %v3161
    %v3492 = vunpack.c.h.b16 %v3161
    %v3493 = vunpack.c.l.b16 %v3162
    %v3494 = vunpack.c.h.b16 %v3162
    %v3495 = vunpack.c.l.b16 %v3163
    %v3496 = vunpack.c.h.b16 %v3163
    %v3497 = vunpack.c.l.b16 %v3164
    %v3498 = vunpack.c.h.b16 %v3164
    %v3499 = vunpack.c.l.b16 %v3165
    %v3500 = vunpack.c.h.b16 %v3165
    %v3501 = vunpack.c.l.b16 %v3166
    %v3502 = vunpack.c.h.b16 %v3166
    %v3503 = vunpack.c.l.b16 %v3167
    %v3504 = vunpack.c.h.b16 %v3167
    %v3505 = vunpack.c.l.b16 %v3168
    %v3506 = vunpack.c.h.b16 %v3168
    %v3507 = vunpack.c.l.b16 %v3169
    %v3508 = vunpack.c.h.b16 %v3169
    %v3509 = vunpack.c.l.b16 %v3170
    %v3510 = vunpack.c.h.b16 %v3170
    %v3511 = vunpack.c.l.b16 %v3171
    %v3512 = vunpack.c.h.b16 %v3171
    %v3513 = vunpack.c.l.b16 %v3172
    %v3514 = vunpack.c.h.b16 %v3172
    %v3515 = vunpack.c.l.b16 %v3173
    %v3516 = vunpack.c.h.b16 %v3173
    %v3517 = vunpack.c.l.b16 %v3174
    %v3518 = vunpack.c.h.b16 %v3174
    %v3519 = vunpack.c.l.b16 %v3175
    %v3520 = vunpack.c.h.b16 %v3175
    %v3521 = vunpack.c.l.b16 %v3176
    %v3522 = vunpack.c.h.b16 %v3176
    %v3523 = vunpack.c.l.b16 %v3177
    %v3524 = vunpack.c.h.b16 %v3177
    %v3525 = vunpack.c.l.b16 %v3178
    %v3526 = vunpack.c.h.b16 %v3178
    %v3527 = vunpack.c.l.b16 %v3179
    %v3528 = vunpack.c.h.b16 %v3179
    %v3529 = vunpack.c.l.b16 %v3180
    %v3530 = vunpack.c.h.b16 %v3180
    %v3531 = vunpack.c.l.b16 %v3181
    %v3532 = vunpack.c.h.b16 %v3181
    %v3533 = vunpack.c.l.b16 %v3182
    %v3534 = vunpack.c.h.b16 %v3182
    %v3535 = vunpack.c.l.b16 %v3183
    %v3536 = vunpack.c.h.b16 %v3183
    %v3537 = vunpack.c.l.b16 %v3184
    %v3538 = vunpack.c.h.b16 %v3184
    %v3539 = vunpack.c.l.b16 %v3185
    %v3540 = vunpack.c.h.b16 %v3185
    %v3541 = vunpack.c.l.b16 %v3186
    %v3542 = vunpack.c.h.b16 %v3186
    %v3543 = vunpack.c.l.b16 %v3187
    %v3544 = vunpack.c.h.b16 %v3187
    %v3545 = vunpack.c.l.b16 %v3188
    %v3546 = vunpack.c.h.b16 %v3188
    %v3547 = vunpack.c.l.b16 %v3189
    %v3548 = vunpack.c.h.b16 %v3189
    %v3549 = vunpack.c.l.b16 %v3190
    %v3550 = vunpack.c.h.b16 %v3190
    %v3551 = vunpack.c.l.b16 %v3191
    %v3552 = vunpack.c.h.b16 %v3191
    %v3553 = vunpack.c.l.b16 %v3192
    %v3554 = vunpack.c.h.b16 %v3192
    %v3555 = vunpack.c.l.b16 %v3193
    %v3556 = vunpack.c.h.b16 %v3193
    %v3557 = vunpack.c.l.b16 %v3194
    %v3558 = vunpack.c.h.b16 %v3194
    %v3559 = vunpack.c.l.b16 %v3195
    %v3560 = vunpack.c.h.b16 %v3195
    %v3561 = vunpack.c.l.b16 %v3196
    %v3562 = vunpack.c.h.b16 %v3196
    %v3563 = vunpack.c.l.b16 %v3197
    %v3564 = vunpack.c.h.b16 %v3197
    %v3565 = vunpack.c.l.b16 %v3198
    %v3566 = vunpack.c.h.b16 %v3198
    %v3567 = vunpack.c.l.b16 %v3199
    %v3568 = vunpack.c.h.b16 %v3199
    %v3569 = vunpack.c.l.b16 %v3200
    %v3570 = vunpack.c.h.b16 %v3200
    %v3571 = vunpack.c.l.b16 %v3201
    %v3572 = vunpack.c.h.b16 %v3201
    %v3573 = vunpack.c.l.b16 %v3202
    %v3574 = vunpack.c.h.b16 %v3202
    %v3575 = vunpack.c.l.b16 %v3203
    %v3576 = vunpack.c.h.b16 %v3203
    %v3577 = vunpack.c.l.b16 %v3204
    %v3578 = vunpack.c.h.b16 %v3204
    %v3579 = vunpack.c.l.b16 %v3205
    %v3580 = vunpack.c.h.b16 %v3205
    %v3581 = vunpack.c.l.b16 %v3206
    %v3582 = vunpack.c.h.b16 %v3206
    %v3583 = vunpack.c.l.b16 %v3207
    %v3584 = vunpack.c.h.b16 %v3207
    %v3585 = vunpack.c.l.b16 %v3208
    %v3586 = vunpack.c.h.b16 %v3208
    %v3587 = vunpack.c.l.b16 %v3209
    %v3588 = vunpack.c.h.b16 %v3209
    %v3589 = vunpack.c.l.b16 %v3210
    %v3590 = vunpack.c.h.b16 %v3210
    %v3591 = vunpack.c.l.b16 %v3211
    %v3592 = vunpack.c.h.b16 %v3211
    %v3593 = vunpack.c.l.b16 %v3212
    %v3594 = vunpack.c.h.b16 %v3212
    %v3595 = vunpack.c.l.b16 %v3213
    %v3596 = vunpack.c.h.b16 %v3213
    %v3597 = vunpack.c.l.b16 %v3214
    %v3598 = vunpack.c.h.b16 %v3214
    %v3599 = vpack.c.b16 %v3347, %v3343
    %v3600 = vpack.c.b16 %v3348, %v3344
    %v3601 = vpack.c.b16 %v3349, %v3345
    %v3602 = vpack.c.b16 %v3350, %v3346
    %v3603 = vpack.c.b16 %v3355, %v3351
    %v3604 = vpack.c.b16 %v3356, %v3352
    %v3605 = vpack.c.b16 %v3357, %v3353
    %v3606 = vpack.c.b16 %v3358, %v3354
    %v3607 = vpack.c.b16 %v3363, %v3359
    %v3608 = vpack.c.b16 %v3364, %v3360
    %v3609 = vpack.c.b16 %v3365, %v3361
    %v3610 = vpack.c.b16 %v3366, %v3362
    %v3611 = vpack.c.b16 %v3371, %v3367
    %v3612 = vpack.c.b16 %v3372, %v3368
    %v3613 = vpack.c.b16 %v3373, %v3369
    %v3614 = vpack.c.b16 %v3374, %v3370
    %v3615 = vpack.c.b16 %v3379, %v3375
    %v3616 = vpack.c.b16 %v3380, %v3376
    %v3617 = vpack.c.b16 %v3381, %v3377
    %v3618 = vpack.c.b16 %v3382, %v3378
    %v3619 = vpack.c.b16 %v3387, %v3383
    %v3620 = vpack.c.b16 %v3388, %v3384
    %v3621 = vpack.c.b16 %v3389, %v3385
    %v3622 = vpack.c.b16 %v3390, %v3386
    %v3623 = vpack.c.b16 %v3395, %v3391
    %v3624 = vpack.c.b16 %v3396, %v3392
    %v3625 = vpack.c.b16 %v3397, %v3393
    %v3626 = vpack.c.b16 %v3398, %v3394
    %v3627 = vpack.c.b16 %v3403, %v3399
    %v3628 = vpack.c.b16 %v3404, %v3400
    %v3629 = vpack.c.b16 %v3405, %v3401
    %v3630 = vpack.c.b16 %v3406, %v3402
    %v3631 = vpack.c.b16 %v3411, %v3407
    %v3632 = vpack.c.b16 %v3412, %v3408
    %v3633 = vpack.c.b16 %v3413, %v3409
    %v3634 = vpack.c.b16 %v3414, %v3410
    %v3635 = vpack.c.b16 %v3419, %v3415
    %v3636 = vpack.c.b16 %v3420, %v3416
    %v3637 = vpack.c.b16 %v3421, %v3417
    %v3638 = vpack.c.b16 %v3422, %v3418
    %v3639 = vpack.c.b16 %v3427, %v3423
    %v3640 = vpack.c.b16 %v3428, %v3424
    %v3641 = vpack.c.b16 %v3429, %v3425
    %v3642 = vpack.c.b16 %v3430, %v3426
    %v3643 = vpack.c.b16 %v3435, %v3431
    %v3644 = vpack.c.b16 %v3436, %v3432
    %v3645 = vpack.c.b16 %v3437, %v3433
    %v3646 = vpack.c.b16 %v3438, %v3434
    %v3647 = vpack.c.b16 %v3443, %v3439
    %v3648 = vpack.c.b16 %v3444, %v3440
    %v3649 = vpack.c.b16 %v3445, %v3441
    %v3650 = vpack.c.b16 %v3446, %v3442
    %v3651 = vpack.c.b16 %v3451, %v3447
    %v3652 = vpack.c.b16 %v3452, %v3448
    %v3653 = vpack.c.b16 %v3453, %v3449
    %v3654 = vpack.c.b16 %v3454, %v3450
    %v3655 = vpack.c.b16 %v3459, %v3455
    %v3656 = vpack.c.b16 %v3460, %v3456
    %v3657 = vpack.c.b16 %v3461, %v3457
    %v3658 = vpack.c.b16 %v3462, %v3458
    %v3659 = vpack.c.b16 %v3467, %v3463
    %v3660 = vpack.c.b16 %v3468, %v3464
    %v3661 = vpack.c.b16 %v3469, %v3465
    %v3662 = vpack.c.b16 %v3470, %v3466
    %v3663 = vpack.c.b16 %v3475, %v3471
    %v3664 = vpack.c.b16 %v3476, %v3472
    %v3665 = vpack.c.b16 %v3477, %v3473
    %v3666 = vpack.c.b16 %v3478, %v3474
    %v3667 = vpack.c.b16 %v3483, %v3479
    %v3668 = vpack.c.b16 %v3484, %v3480
    %v3669 = vpack.c.b16 %v3485, %v3481
    %v3670 = vpack.c.b16 %v3486, %v3482
    %v3671 = vpack.c.b16 %v3491, %v3487
    %v3672 = vpack.c.b16 %v3492, %v3488
    %v3673 = vpack.c.b16 %v3493, %v3489
    %v3674 = vpack.c.b16 %v3494, %v3490
    %v3675 = vpack.c.b16 %v3499, %v3495
    %v3676 = vpack.c.b16 %v3500, %v3496
    %v3677 = vpack.c.b16 %v3501, %v3497
    %v3678 = vpack.c.b16 %v3502, %v3498
    %v3679 = vpack.c.b16 %v3507, %v3503
    %v3680 = vpack.c.b16 %v3508, %v3504
    %v3681 = vpack.c.b16 %v3509, %v3505
    %v3682 = vpack.c.b16 %v3510, %v3506
    %v3683 = vpack.c.b16 %v3515, %v3511
    %v3684 = vpack.c.b16 %v3516, %v3512
    %v3685 = vpack.c.b16 %v3517, %v3513
    %v3686 = vpack.c.b16 %v3518, %v3514
    %v3687 = vpack.c.b16 %v3523, %v3519
    %v3688 = vpack.c.b16 %v3524, %v3520
    %v3689 = vpack.c.b16 %v3525, %v3521
    %v3690 = vpack.c.b16 %v3526, %v3522
    %v3691 = vpack.c.b16 %v3531, %v3527
    %v3692 = vpack.c.b16 %v3532, %v3528
    %v3693 = vpack.c.b16 %v3533, %v3529
    %v3694 = vpack.c.b16 %v3534, %v3530
    %v3695 = vpack.c.b16 %v3539, %v3535
    %v3696 = vpack.c.b16 %v3540, %v3536
    %v3697 = vpack.c.b16 %v3541, %v3537
    %v3698 = vpack.c.b16 %v3542, %v3538
    %v3699 = vpack.c.b16 %v3547, %v3543
    %v3700 = vpack.c.b16 %v3548, %v3544
    %v3701 = vpack.c.b16 %v3549, %v3545
    %v3702 = vpack.c.b16 %v3550, %v3546
    %v3703 = vpack.c.b16 %v3555, %v3551
    %v3704 = vpack.c.b16 %v3556, %v3552
    %v3705 = vpack.c.b16 %v3557, %v3553
    %v3706 = vpack.c.b16 %v3558, %v3554
    %v3707 = vpack.c.b16 %v3563, %v3559
    %v3708 = vpack.c.b16 %v3564, %v3560
    %v3709 = vpack.c.b16 %v3565, %v3561
    %v3710 = vpack.c.b16 %v3566, %v3562
    %v3711 = vpack.c.b16 %v3571, %v3567
    %v3712 = vpack.c.b16 %v3572, %v3568
    %v3713 = vpack.c.b16 %v3573, %v3569
    %v3714 = vpack.c.b16 %v3574, %v3570
    %v3715 = vpack.c.b16 %v3579, %v3575
    %v3716 = vpack.c.b16 %v3580, %v3576
    %v3717 = vpack.c.b16 %v3581, %v3577
    %v3718 = vpack.c.b16 %v3582, %v3578
    %v3719 = vpack.c.b16 %v3587, %v3583
    %v3720 = vpack.c.b16 %v3588, %v3584
    %v3721 = vpack.c.b16 %v3589, %v3585
    %v3722 = vpack.c.b16 %v3590, %v3586
    %v3723 = vpack.c.b16 %v3595, %v3591
    %v3724 = vpack.c.b16 %v3596, %v3592
    %v3725 = vpack.c.b16 %v3597, %v3593
    %v3726 = vpack.c.b16 %v3598, %v3594
    %3855 = vmatprep.subr.bf16.mxu0 %v3628
    %3856 = vmatpush1.bf16.msra.mxu0 %v3627
    %3857 = vmatprep.subr.bf16.mxu0 %v3624
    %3858 = vmatpush1.bf16.msra.mxu0 %v3623
    %3859 = vmatprep.subr.bf16.mxu0 %v3620
    %3860 = vmatpush1.bf16.msra.mxu0 %v3619
    %3861 = vmatprep.subr.bf16.mxu0 %v3616
    %3862 = vmatpush1.bf16.msra.mxu0 %v3615
    %3863 = vmatprep.subr.bf16.mxu0 %v3612
    %3864 = vmatpush1.bf16.msra.mxu0 %v3611
    %3865 = vmatprep.subr.bf16.mxu0 %v3608
    %3866 = vmatpush1.bf16.msra.mxu0 %v3607
    %3867 = vmatprep.subr.bf16.mxu0 %v3604
    %3868 = vmatpush1.bf16.msra.mxu0 %v3603
    %3869 = vmatprep.subr.bf16.mxu0 %v3600
    %3870 = vmatpush1.bf16.msra.mxu0 %v3599
    %3871 = vmatprep.subr.bf16.mxu0 %v3660
    %3872 = vmatpush2.bf16.msra.mxu0 %v3659
    %3873 = vmatprep.subr.bf16.mxu0 %v3656
    %3874 = vmatpush2.bf16.msra.mxu0 %v3655
    %3875 = vmatprep.subr.bf16.mxu0 %v3652
    %3876 = vmatpush2.bf16.msra.mxu0 %v3651
    %3877 = vmatprep.subr.bf16.mxu0 %v3648
    %3878 = vmatpush2.bf16.msra.mxu0 %v3647
    %3879 = vmatprep.subr.bf16.mxu0 %v3644
    %3880 = vmatpush2.bf16.msra.mxu0 %v3643
    %3881 = vmatprep.subr.bf16.mxu0 %v3640
    %3882 = vmatpush2.bf16.msra.mxu0 %v3639
    %3883 = vmatprep.subr.bf16.mxu0 %v3636
    %3884 = vmatpush2.bf16.msra.mxu0 %v3635
    %3885 = vmatprep.subr.bf16.mxu0 %v3632
    %3886 = vmatpush2.bf16.msra.mxu0 %v3631
    %3887 = vmatprep.mubr.bf16.mxu0 %v3079
    %3888 = vmatmul.mubr.bf16.gmra.mxu0 %v3078
    %v3889 = vpop.f32.mrf.mxu0
    %v3890 = vadd.f32 0.0, %v3889
    %v3891 = vpop.f32.mrf.mxu0
    %v3892 = vadd.f32 0.0, %v3891
    %v3893 = vpop.f32.mrf.mxu0
    %v3894 = vadd.f32 0.0, %v3893
    %v3895 = vpop.f32.mrf.mxu0
    %v3896 = vadd.f32 0.0, %v3895
    %3897 = vmatprep.mubr.bf16.mxu0 %v3083
    %3898 = vmatmul.mubr.bf16.gmra.mxu0 %v3082
    %v3899 = vpop.f32.mrf.mxu0
    %v3900 = vadd.f32 0.0, %v3899
    %v3901 = vpop.f32.mrf.mxu0
    %v3902 = vadd.f32 0.0, %v3901
    %v3903 = vpop.f32.mrf.mxu0
    %v3904 = vadd.f32 0.0, %v3903
    %v3905 = vpop.f32.mrf.mxu0
    %v3906 = vadd.f32 0.0, %v3905
    %3907 = vdwg.mxu0
    %3908 = vmatprep.subr.bf16.mxu0 %v3692
    %3909 = vmatpush1.bf16.msra.mxu0 %v3691
    %3910 = vmatprep.subr.bf16.mxu0 %v3688
    %3911 = vmatpush1.bf16.msra.mxu0 %v3687
    %3912 = vmatprep.subr.bf16.mxu0 %v3684
    %3913 = vmatpush1.bf16.msra.mxu0 %v3683
    %3914 = vmatprep.subr.bf16.mxu0 %v3680
    %3915 = vmatpush1.bf16.msra.mxu0 %v3679
    %3916 = vmatprep.subr.bf16.mxu0 %v3676
    %3917 = vmatpush1.bf16.msra.mxu0 %v3675
    %3918 = vmatprep.subr.bf16.mxu0 %v3672
    %3919 = vmatpush1.bf16.msra.mxu0 %v3671
    %3920 = vmatprep.subr.bf16.mxu0 %v3668
    %3921 = vmatpush1.bf16.msra.mxu0 %v3667
    %3922 = vmatprep.subr.bf16.mxu0 %v3664
    %3923 = vmatpush1.bf16.msra.mxu0 %v3663
    %3924 = vmatprep.subr.bf16.mxu0 %v3724
    %3925 = vmatpush2.bf16.msra.mxu0 %v3723
    %3926 = vmatprep.subr.bf16.mxu0 %v3720
    %3927 = vmatpush2.bf16.msra.mxu0 %v3719
    %3928 = vmatprep.subr.bf16.mxu0 %v3716
    %3929 = vmatpush2.bf16.msra.mxu0 %v3715
    %3930 = vmatprep.subr.bf16.mxu0 %v3712
    %3931 = vmatpush2.bf16.msra.mxu0 %v3711
    %3932 = vmatprep.subr.bf16.mxu0 %v3708
    %3933 = vmatpush2.bf16.msra.mxu0 %v3707
    %3934 = vmatprep.subr.bf16.mxu0 %v3704
    %3935 = vmatpush2.bf16.msra.mxu0 %v3703
    %3936 = vmatprep.subr.bf16.mxu0 %v3700
    %3937 = vmatpush2.bf16.msra.mxu0 %v3699
    %3938 = vmatprep.subr.bf16.mxu0 %v3696
    %3939 = vmatpush2.bf16.msra.mxu0 %v3695
    %3940 = vmatprep.mubr.bf16.mxu0 %v3081
    %3941 = vmatmul.mubr.bf16.gmra.mxu0 %v3080
    %v3942 = vpop.f32.mrf.mxu0
    %v3943 = vadd.f32 %v3890, %v3942
    %v3944 = vpop.f32.mrf.mxu0
    %v3945 = vadd.f32 %v3892, %v3944
    %v3946 = vpop.f32.mrf.mxu0
    %v3947 = vadd.f32 %v3894, %v3946
    %v3948 = vpop.f32.mrf.mxu0
    %v3949 = vadd.f32 %v3896, %v3948
    %3950 = vmatprep.mubr.bf16.mxu0 %v3085
    %3951 = vmatmul.mubr.bf16.gmra.mxu0 %v3084
    %v3952 = vpop.f32.mrf.mxu0
    %v3953 = vadd.f32 %v3900, %v3952
    %v3954 = vpop.f32.mrf.mxu0
    %v3955 = vadd.f32 %v3902, %v3954
    %v3956 = vpop.f32.mrf.mxu0
    %v3957 = vadd.f32 %v3904, %v3956
    %v3958 = vpop.f32.mrf.mxu0
    %v3959 = vadd.f32 %v3906, %v3958
    %3960 = vdwg.mxu0
    %3961 = vmatprep.subr.bf16.mxu0 %v3630
    %3962 = vmatpush1.bf16.msra.mxu0 %v3629
    %3963 = vmatprep.subr.bf16.mxu0 %v3626
    %3964 = vmatpush1.bf16.msra.mxu0 %v3625
    %3965 = vmatprep.subr.bf16.mxu0 %v3622
    %3966 = vmatpush1.bf16.msra.mxu0 %v3621
    %3967 = vmatprep.subr.bf16.mxu0 %v3618
    %3968 = vmatpush1.bf16.msra.mxu0 %v3617
    %3969 = vmatprep.subr.bf16.mxu0 %v3614
    %3970 = vmatpush1.bf16.msra.mxu0 %v3613
    %3971 = vmatprep.subr.bf16.mxu0 %v3610
    %3972 = vmatpush1.bf16.msra.mxu0 %v3609
    %3973 = vmatprep.subr.bf16.mxu0 %v3606
    %3974 = vmatpush1.bf16.msra.mxu0 %v3605
    %3975 = vmatprep.subr.bf16.mxu0 %v3602
    %3976 = vmatpush1.bf16.msra.mxu0 %v3601
    %3977 = vmatprep.subr.bf16.mxu0 %v3662
    %3978 = vmatpush2.bf16.msra.mxu0 %v3661
    %3979 = vmatprep.subr.bf16.mxu0 %v3658
    %3980 = vmatpush2.bf16.msra.mxu0 %v3657
    %3981 = vmatprep.subr.bf16.mxu0 %v3654
    %3982 = vmatpush2.bf16.msra.mxu0 %v3653
    %3983 = vmatprep.subr.bf16.mxu0 %v3650
    %3984 = vmatpush2.bf16.msra.mxu0 %v3649
    %3985 = vmatprep.subr.bf16.mxu0 %v3646
    %3986 = vmatpush2.bf16.msra.mxu0 %v3645
    %3987 = vmatprep.subr.bf16.mxu0 %v3642
    %3988 = vmatpush2.bf16.msra.mxu0 %v3641
    %3989 = vmatprep.subr.bf16.mxu0 %v3638
    %3990 = vmatpush2.bf16.msra.mxu0 %v3637
    %3991 = vmatprep.subr.bf16.mxu0 %v3634
    %3992 = vmatpush2.bf16.msra.mxu0 %v3633
    %3993 = vmatprep.mubr.bf16.mxu0 %v3079
    %3994 = vmatmul.mubr.bf16.gmra.mxu0 %v3078
    %v3995 = vpop.f32.mrf.mxu0
    %v3996 = vadd.f32 0.0, %v3995
    %v3997 = vpop.f32.mrf.mxu0
    %v3998 = vadd.f32 0.0, %v3997
    %v3999 = vpop.f32.mrf.mxu0
    %v4000 = vadd.f32 0.0, %v3999
    %v4001 = vpop.f32.mrf.mxu0
    %v4002 = vadd.f32 0.0, %v4001
    %4003 = vmatprep.mubr.bf16.mxu0 %v3083
    %4004 = vmatmul.mubr.bf16.gmra.mxu0 %v3082
    %v4005 = vpop.f32.mrf.mxu0
    %v4006 = vadd.f32 0.0, %v4005
    %v4007 = vpop.f32.mrf.mxu0
    %v4008 = vadd.f32 0.0, %v4007
    %v4009 = vpop.f32.mrf.mxu0
    %v4010 = vadd.f32 0.0, %v4009
    %v4011 = vpop.f32.mrf.mxu0
    %v4012 = vadd.f32 0.0, %v4011
    %4013 = vdwg.mxu0
    %4014 = vmatprep.subr.bf16.mxu0 %v3694
    %4015 = vmatpush1.bf16.msra.mxu0 %v3693
    %4016 = vmatprep.subr.bf16.mxu0 %v3690
    %4017 = vmatpush1.bf16.msra.mxu0 %v3689
    %4018 = vmatprep.subr.bf16.mxu0 %v3686
    %4019 = vmatpush1.bf16.msra.mxu0 %v3685
    %4020 = vmatprep.subr.bf16.mxu0 %v3682
    %4021 = vmatpush1.bf16.msra.mxu0 %v3681
    %4022 = vmatprep.subr.bf16.mxu0 %v3678
    %4023 = vmatpush1.bf16.msra.mxu0 %v3677
    %4024 = vmatprep.subr.bf16.mxu0 %v3674
    %4025 = vmatpush1.bf16.msra.mxu0 %v3673
    %4026 = vmatprep.subr.bf16.mxu0 %v3670
    %4027 = vmatpush1.bf16.msra.mxu0 %v3669
    %4028 = vmatprep.subr.bf16.mxu0 %v3666
    %4029 = vmatpush1.bf16.msra.mxu0 %v3665
    %4030 = vmatprep.subr.bf16.mxu0 %v3726
    %4031 = vmatpush2.bf16.msra.mxu0 %v3725
    %4032 = vmatprep.subr.bf16.mxu0 %v3722
    %4033 = vmatpush2.bf16.msra.mxu0 %v3721
    %4034 = vmatprep.subr.bf16.mxu0 %v3718
    %4035 = vmatpush2.bf16.msra.mxu0 %v3717
    %4036 = vmatprep.subr.bf16.mxu0 %v3714
    %4037 = vmatpush2.bf16.msra.mxu0 %v3713
    %4038 = vmatprep.subr.bf16.mxu0 %v3710
    %4039 = vmatpush2.bf16.msra.mxu0 %v3709
    %4040 = vmatprep.subr.bf16.mxu0 %v3706
    %4041 = vmatpush2.bf16.msra.mxu0 %v3705
    %4042 = vmatprep.subr.bf16.mxu0 %v3702
    %4043 = vmatpush2.bf16.msra.mxu0 %v3701
    %4044 = vmatprep.subr.bf16.mxu0 %v3698
    %4045 = vmatpush2.bf16.msra.mxu0 %v3697
    %4046 = vmatprep.mubr.bf16.mxu0 %v3081
    %4047 = vmatmul.mubr.bf16.gmra.mxu0 %v3080
    %v4048 = vpop.f32.mrf.mxu0
    %v4049 = vadd.f32 %v3996, %v4048
    %v4050 = vpop.f32.mrf.mxu0
    %v4051 = vadd.f32 %v3998, %v4050
    %v4052 = vpop.f32.mrf.mxu0
    %v4053 = vadd.f32 %v4000, %v4052
    %v4054 = vpop.f32.mrf.mxu0
    %v4055 = vadd.f32 %v4002, %v4054
    %4056 = vmatprep.mubr.bf16.mxu0 %v3085
    %4057 = vmatmul.mubr.bf16.gmra.mxu0 %v3084
    %v4058 = vpop.f32.mrf.mxu0
    %v4059 = vadd.f32 %v4006, %v4058
    %v4060 = vpop.f32.mrf.mxu0
    %v4061 = vadd.f32 %v4008, %v4060
    %v4062 = vpop.f32.mrf.mxu0
    %v4063 = vadd.f32 %v4010, %v4062
    %v4064 = vpop.f32.mrf.mxu0
    %v4065 = vadd.f32 %v4012, %v4064
    %4066 = vdwg.mxu0
    %v4067 = vadd.f32 %v2848, %v3943
    %v4068 = vadd.f32 %v2850, %v3945
    %v4069 = vadd.f32 %v2954, %v4049
    %v4070 = vadd.f32 %v2956, %v4051
    %v4071 = vadd.f32 %v2852, %v3947
    %v4072 = vadd.f32 %v2854, %v3949
    %v4073 = vadd.f32 %v2958, %v4053
    %v4074 = vadd.f32 %v2960, %v4055
    %v4075 = vadd.f32 %v2858, %v3953
    %v4076 = vadd.f32 %v2860, %v3955
    %v4077 = vadd.f32 %v2964, %v4059
    %v4078 = vadd.f32 %v2966, %v4061
    %v4079 = vadd.f32 %v2862, %v3957
    %v4080 = vadd.f32 %v2864, %v3959
    %v4081 = vadd.f32 %v2968, %v4063
    %v4082 = vadd.f32 %v2970, %v4065
    %v4084 = vlaneseq
    %v4085 = vshrl.u32 %v4084, 7
    %v4086 = vsub.s32 0, %v4085
    %v4087 = vrot.slane %v896, %v4086
    %v4088 = vlaneseq
    %v4089 = vshrl.u32 %v4088, 7
    %v4090 = vsub.s32 1, %v4089
    %v4091 = vrot.slane %v896, %v4090
    %v4092 = vlaneseq
    %v4093 = vshrl.u32 %v4092, 7
    %v4094 = vsub.s32 2, %v4093
    %v4095 = vrot.slane %v896, %v4094
    %v4096 = vlaneseq
    %v4097 = vshrl.u32 %v4096, 7
    %v4098 = vsub.s32 3, %v4097
    %v4099 = vrot.slane %v896, %v4098
    %v4104 = vadd.f32 %v4067, %v4087
    %v4105 = vadd.f32 %v4068, %v4091
    %v4106 = vadd.f32 %v4069, %v4095
    %v4107 = vadd.f32 %v4070, %v4099
    %v4108 = vadd.f32 %v4071, %v4087
    %v4109 = vadd.f32 %v4072, %v4091
    %v4110 = vadd.f32 %v4073, %v4095
    %v4111 = vadd.f32 %v4074, %v4099
    %v4112 = vadd.f32 %v4075, %v4087
    %v4113 = vadd.f32 %v4076, %v4091
    %v4114 = vadd.f32 %v4077, %v4095
    %v4115 = vadd.f32 %v4078, %v4099
    %v4116 = vadd.f32 %v4079, %v4087
    %v4117 = vadd.f32 %v4080, %v4091
    %v4118 = vadd.f32 %v4081, %v4095
    %v4119 = vadd.f32 %v4082, %v4099
    %v4120 = vmax.f32 %v4104, 0.0
    %v4121 = vmax.f32 %v4105, 0.0
    %v4122 = vmax.f32 %v4106, 0.0
    %v4123 = vmax.f32 %v4107, 0.0
    %v4124 = vmax.f32 %v4108, 0.0
    %v4125 = vmax.f32 %v4109, 0.0
    %v4126 = vmax.f32 %v4110, 0.0
    %v4127 = vmax.f32 %v4111, 0.0
    %v4128 = vmax.f32 %v4112, 0.0
    %v4129 = vmax.f32 %v4113, 0.0
    %v4130 = vmax.f32 %v4114, 0.0
    %v4131 = vmax.f32 %v4115, 0.0
    %v4132 = vmax.f32 %v4116, 0.0
    %v4133 = vmax.f32 %v4117, 0.0
    %v4134 = vmax.f32 %v4118, 0.0
    %v4135 = vmax.f32 %v4119, 0.0
    %v4136 = vld [vmem:[%s6] sm:$0x3]
    %v4138 = vsel %vm62, %v4136, 0
    %4140 = vmatprep.subr.mxu0 0.0
    %4141 = vmatpush1.msra.mxu0 0.0
    %4142 = vmatprep.subr.mxu0 0.0
    %4143 = vmatpush1.msra.mxu0 0.0
    %4144 = vmatprep.subr.mxu0 0.0
    %4145 = vmatpush1.msra.mxu0 0.0
    %4146 = vmatprep.subr.mxu0 0.0
    %4147 = vmatpush1.msra.mxu0 0.0
    %4148 = vmatprep.subr.mxu0 0.0
    %4149 = vmatpush1.msra.mxu0 0.0
    %4150 = vmatprep.subr.mxu0 0.0
    %4151 = vmatpush1.msra.mxu0 0.0
    %4152 = vmatprep.subr.mxu0 0.0
    %4153 = vmatpush1.msra.mxu0 0.0
    %4154 = vmatprep.subr.mxu0 0.0
    %4155 = vmatpush1.msra.mxu0 0.0
    %4156 = vmatprep.subr.mxu0 0.0
    %4157 = vmatpush1.msra.mxu0 0.0
    %4158 = vmatprep.subr.mxu0 0.0
    %4159 = vmatpush1.msra.mxu0 0.0
    %4160 = vmatprep.subr.mxu0 0.0
    %4161 = vmatpush1.msra.mxu0 0.0
    %4162 = vmatprep.subr.mxu0 0.0
    %4163 = vmatpush1.msra.mxu0 0.0
    %4164 = vmatprep.subr.mxu0 %v4133
    %4165 = vmatpush1.msra.mxu0 %v4132
    %4166 = vmatprep.subr.mxu0 %v4129
    %4167 = vmatpush1.msra.mxu0 %v4128
    %4168 = vmatprep.subr.mxu0 %v4125
    %4169 = vmatpush1.msra.mxu0 %v4124
    %4170 = vmatprep.subr.mxu0 %v4121
    %4171 = vmatpush1.msra.mxu0 %v4120
    %4172 = vmatprep.subr.mxu0 0.0
    %4173 = vmatpush2.msra.mxu0 0.0
    %4174 = vmatprep.subr.mxu0 0.0
    %4175 = vmatpush2.msra.mxu0 0.0
    %4176 = vmatprep.subr.mxu0 0.0
    %4177 = vmatpush2.msra.mxu0 0.0
    %4178 = vmatprep.subr.mxu0 0.0
    %4179 = vmatpush2.msra.mxu0 0.0
    %4180 = vmatprep.subr.mxu0 0.0
    %4181 = vmatpush2.msra.mxu0 0.0
    %4182 = vmatprep.subr.mxu0 0.0
    %4183 = vmatpush2.msra.mxu0 0.0
    %4184 = vmatprep.subr.mxu0 0.0
    %4185 = vmatpush2.msra.mxu0 0.0
    %4186 = vmatprep.subr.mxu0 0.0
    %4187 = vmatpush2.msra.mxu0 0.0
    %4188 = vmatprep.subr.mxu0 0.0
    %4189 = vmatpush2.msra.mxu0 0.0
    %4190 = vmatprep.subr.mxu0 0.0
    %4191 = vmatpush2.msra.mxu0 0.0
    %4192 = vmatprep.subr.mxu0 0.0
    %4193 = vmatpush2.msra.mxu0 0.0
    %4194 = vmatprep.subr.mxu0 0.0
    %4195 = vmatpush2.msra.mxu0 0.0
    %4196 = vmatprep.subr.mxu0 0.0
    %4197 = vmatpush2.msra.mxu0 0.0
    %4198 = vmatprep.subr.mxu0 0.0
    %4199 = vmatpush2.msra.mxu0 0.0
    %4200 = vmatprep.subr.mxu0 0.0
    %4201 = vmatpush2.msra.mxu0 0.0
    %4202 = vmatprep.subr.mxu0 0.0
    %4203 = vmatpush2.msra.mxu0 0.0
    %4204 = vmatprep.mubr.f32.mxu0 0.0
    %4205 = vmatmul.mubr.f32.gmra.mxu0 %v4138
    %v4206 = vpop.f32.mrf.mxu0
    %v4207 = vadd.f32 0.0, %v4206
    %v4208 = vpop.f32.mrf.mxu0
    %v4209 = vadd.f32 0.0, %v4208
    %4210 = vdwg.mxu0
    %4211 = vmatprep.subr.mxu0 0.0
    %4212 = vmatpush1.msra.mxu0 0.0
    %4213 = vmatprep.subr.mxu0 0.0
    %4214 = vmatpush1.msra.mxu0 0.0
    %4215 = vmatprep.subr.mxu0 0.0
    %4216 = vmatpush1.msra.mxu0 0.0
    %4217 = vmatprep.subr.mxu0 0.0
    %4218 = vmatpush1.msra.mxu0 0.0
    %4219 = vmatprep.subr.mxu0 0.0
    %4220 = vmatpush1.msra.mxu0 0.0
    %4221 = vmatprep.subr.mxu0 0.0
    %4222 = vmatpush1.msra.mxu0 0.0
    %4223 = vmatprep.subr.mxu0 0.0
    %4224 = vmatpush1.msra.mxu0 0.0
    %4225 = vmatprep.subr.mxu0 0.0
    %4226 = vmatpush1.msra.mxu0 0.0
    %4227 = vmatprep.subr.mxu0 0.0
    %4228 = vmatpush1.msra.mxu0 0.0
    %4229 = vmatprep.subr.mxu0 0.0
    %4230 = vmatpush1.msra.mxu0 0.0
    %4231 = vmatprep.subr.mxu0 0.0
    %4232 = vmatpush1.msra.mxu0 0.0
    %4233 = vmatprep.subr.mxu0 0.0
    %4234 = vmatpush1.msra.mxu0 0.0
    %4235 = vmatprep.subr.mxu0 %v4135
    %4236 = vmatpush1.msra.mxu0 %v4134
    %4237 = vmatprep.subr.mxu0 %v4131
    %4238 = vmatpush1.msra.mxu0 %v4130
    %4239 = vmatprep.subr.mxu0 %v4127
    %4240 = vmatpush1.msra.mxu0 %v4126
    %4241 = vmatprep.subr.mxu0 %v4123
    %4242 = vmatpush1.msra.mxu0 %v4122
    %4243 = vmatprep.subr.mxu0 0.0
    %4244 = vmatpush2.msra.mxu0 0.0
    %4245 = vmatprep.subr.mxu0 0.0
    %4246 = vmatpush2.msra.mxu0 0.0
    %4247 = vmatprep.subr.mxu0 0.0
    %4248 = vmatpush2.msra.mxu0 0.0
    %4249 = vmatprep.subr.mxu0 0.0
    %4250 = vmatpush2.msra.mxu0 0.0
    %4251 = vmatprep.subr.mxu0 0.0
    %4252 = vmatpush2.msra.mxu0 0.0
    %4253 = vmatprep.subr.mxu0 0.0
    %4254 = vmatpush2.msra.mxu0 0.0
    %4255 = vmatprep.subr.mxu0 0.0
    %4256 = vmatpush2.msra.mxu0 0.0
    %4257 = vmatprep.subr.mxu0 0.0
    %4258 = vmatpush2.msra.mxu0 0.0
    %4259 = vmatprep.subr.mxu0 0.0
    %4260 = vmatpush2.msra.mxu0 0.0
    %4261 = vmatprep.subr.mxu0 0.0
    %4262 = vmatpush2.msra.mxu0 0.0
    %4263 = vmatprep.subr.mxu0 0.0
    %4264 = vmatpush2.msra.mxu0 0.0
    %4265 = vmatprep.subr.mxu0 0.0
    %4266 = vmatpush2.msra.mxu0 0.0
    %4267 = vmatprep.subr.mxu0 0.0
    %4268 = vmatpush2.msra.mxu0 0.0
    %4269 = vmatprep.subr.mxu0 0.0
    %4270 = vmatpush2.msra.mxu0 0.0
    %4271 = vmatprep.subr.mxu0 0.0
    %4272 = vmatpush2.msra.mxu0 0.0
    %4273 = vmatprep.subr.mxu0 0.0
    %4274 = vmatpush2.msra.mxu0 0.0
    %4275 = vmatprep.mubr.f32.mxu0 0.0
    %4276 = vmatmul.mubr.f32.gmra.mxu0 %v4138
    %v4277 = vpop.f32.mrf.mxu0
    %v4278 = vadd.f32 0.0, %v4277
    %v4279 = vpop.f32.mrf.mxu0
    %v4280 = vadd.f32 0.0, %v4279
    %4281 = vdwg.mxu0
    %v4282 = vld [vmem:[%s7] sm:$0xff]
    %v4283 = vld [vmem:[%s7 + $0x8] sm:$0xff]
    %v4284 = vld [vmem:[%s7 + $0x10] sm:$0xff]
    %v4285 = vld [vmem:[%s7 + $0x18] sm:$0xff]
    %v4286 = vld [vmem:[%s7 + $0x20] sm:$0xff]
    %v4287 = vld [vmem:[%s7 + $0x28] sm:$0xff]
    %v4288 = vld [vmem:[%s7 + $0x30] sm:$0xff]
    %v4289 = vld [vmem:[%s7 + $0x38] sm:$0xff]
    %v4290 = vld [vmem:[%s7 + $0x40] sm:$0xff]
    %v4291 = vld [vmem:[%s7 + $0x48] sm:$0xff]
    %v4292 = vld [vmem:[%s7 + $0x50] sm:$0xff]
    %v4293 = vld [vmem:[%s7 + $0x58] sm:$0xff]
    %v4294 = vld [vmem:[%s7 + $0x60] sm:$0xff]
    %v4295 = vld [vmem:[%s7 + $0x68] sm:$0xff]
    %v4296 = vld [vmem:[%s7 + $0x70] sm:$0xff]
    %v4297 = vld [vmem:[%s7 + $0x78] sm:$0xff]
    %v4298 = vld [vmem:[%s7 + $0x80] sm:$0xff]
    %v4299 = vld [vmem:[%s7 + $0x88] sm:$0xff]
    %v4300 = vld [vmem:[%s7 + $0x90] sm:$0xff]
    %v4301 = vld [vmem:[%s7 + $0x98] sm:$0xff]
    %v4302 = vld [vmem:[%s7 + $0xa0] sm:$0xff]
    %v4303 = vld [vmem:[%s7 + $0xa8] sm:$0xff]
    %v4304 = vld [vmem:[%s7 + $0xb0] sm:$0xff]
    %v4305 = vld [vmem:[%s7 + $0xb8] sm:$0xff]
    %v4306 = vld [vmem:[%s7 + $0xc0] sm:$0xff]
    %v4307 = vld [vmem:[%s7 + $0xc8] sm:$0xff]
    %v4308 = vld [vmem:[%s7 + $0xd0] sm:$0xff]
    %v4309 = vld [vmem:[%s7 + $0xd8] sm:$0xff]
    %v4310 = vld [vmem:[%s7 + $0xe0] sm:$0xff]
    %v4311 = vld [vmem:[%s7 + $0xe8] sm:$0xff]
    %v4312 = vld [vmem:[%s7 + $0xf0] sm:$0xff]
    %v4313 = vld [vmem:[%s7 + $0xf8] sm:$0xff]
    %v4314 = vld [vmem:[%s7 + $0x100] sm:$0xff]
    %v4315 = vld [vmem:[%s7 + $0x108] sm:$0xff]
    %v4316 = vld [vmem:[%s7 + $0x110] sm:$0xff]
    %v4317 = vld [vmem:[%s7 + $0x118] sm:$0xff]
    %v4318 = vld [vmem:[%s7 + $0x120] sm:$0xff]
    %v4319 = vld [vmem:[%s7 + $0x128] sm:$0xff]
    %v4320 = vld [vmem:[%s7 + $0x130] sm:$0xff]
    %v4321 = vld [vmem:[%s7 + $0x138] sm:$0xff]
    %v4322 = vld [vmem:[%s7 + $0x140] sm:$0xff]
    %v4323 = vld [vmem:[%s7 + $0x148] sm:$0xff]
    %v4324 = vld [vmem:[%s7 + $0x150] sm:$0xff]
    %v4325 = vld [vmem:[%s7 + $0x158] sm:$0xff]
    %v4326 = vld [vmem:[%s7 + $0x160] sm:$0xff]
    %v4327 = vld [vmem:[%s7 + $0x168] sm:$0xff]
    %v4328 = vld [vmem:[%s7 + $0x170] sm:$0xff]
    %v4329 = vld [vmem:[%s7 + $0x178] sm:$0xff]
    %v4330 = vld [vmem:[%s7 + $0x180] sm:$0xff]
    %v4331 = vld [vmem:[%s7 + $0x188] sm:$0xff]
    %v4332 = vld [vmem:[%s7 + $0x190] sm:$0xff]
    %v4333 = vld [vmem:[%s7 + $0x198] sm:$0xff]
    %v4334 = vld [vmem:[%s7 + $0x1a0] sm:$0xff]
    %v4335 = vld [vmem:[%s7 + $0x1a8] sm:$0xff]
    %v4336 = vld [vmem:[%s7 + $0x1b0] sm:$0xff]
    %v4337 = vld [vmem:[%s7 + $0x1b8] sm:$0xff]
    %v4338 = vld [vmem:[%s7 + $0x1c0] sm:$0xff]
    %v4339 = vld [vmem:[%s7 + $0x1c8] sm:$0xff]
    %v4340 = vld [vmem:[%s7 + $0x1d0] sm:$0xff]
    %v4341 = vld [vmem:[%s7 + $0x1d8] sm:$0xff]
    %v4342 = vld [vmem:[%s7 + $0x1e0] sm:$0xff]
    %v4343 = vld [vmem:[%s7 + $0x1e8] sm:$0xff]
    %v4344 = vld [vmem:[%s7 + $0x1f0] sm:$0xff]
    %v4345 = vld [vmem:[%s7 + $0x1f8] sm:$0xff]
    %4346 = vmatprep.subr.mxu0 0.0
    %4347 = vmatpush1.msra.mxu0 %v4297
    %4348 = vmatprep.subr.mxu0 0.0
    %4349 = vmatpush1.msra.mxu0 %v4296
    %4350 = vmatprep.subr.mxu0 0.0
    %4351 = vmatpush1.msra.mxu0 %v4295
    %4352 = vmatprep.subr.mxu0 0.0
    %4353 = vmatpush1.msra.mxu0 %v4294
    %4354 = vmatprep.subr.mxu0 0.0
    %4355 = vmatpush1.msra.mxu0 %v4293
    %4356 = vmatprep.subr.mxu0 0.0
    %4357 = vmatpush1.msra.mxu0 %v4292
    %4358 = vmatprep.subr.mxu0 0.0
    %4359 = vmatpush1.msra.mxu0 %v4291
    %4360 = vmatprep.subr.mxu0 0.0
    %4361 = vmatpush1.msra.mxu0 %v4290
    %4362 = vmatprep.subr.mxu0 0.0
    %4363 = vmatpush1.msra.mxu0 %v4289
    %4364 = vmatprep.subr.mxu0 0.0
    %4365 = vmatpush1.msra.mxu0 %v4288
    %4366 = vmatprep.subr.mxu0 0.0
    %4367 = vmatpush1.msra.mxu0 %v4287
    %4368 = vmatprep.subr.mxu0 0.0
    %4369 = vmatpush1.msra.mxu0 %v4286
    %4370 = vmatprep.subr.mxu0 0.0
    %4371 = vmatpush1.msra.mxu0 %v4285
    %4372 = vmatprep.subr.mxu0 0.0
    %4373 = vmatpush1.msra.mxu0 %v4284
    %4374 = vmatprep.subr.mxu0 0.0
    %4375 = vmatpush1.msra.mxu0 %v4283
    %4376 = vmatprep.subr.mxu0 0.0
    %4377 = vmatpush1.msra.mxu0 %v4282
    %4378 = vmatprep.subr.mxu0 0.0
    %4379 = vmatpush2.msra.mxu0 %v4313
    %4380 = vmatprep.subr.mxu0 0.0
    %4381 = vmatpush2.msra.mxu0 %v4312
    %4382 = vmatprep.subr.mxu0 0.0
    %4383 = vmatpush2.msra.mxu0 %v4311
    %4384 = vmatprep.subr.mxu0 0.0
    %4385 = vmatpush2.msra.mxu0 %v4310
    %4386 = vmatprep.subr.mxu0 0.0
    %4387 = vmatpush2.msra.mxu0 %v4309
    %4388 = vmatprep.subr.mxu0 0.0
    %4389 = vmatpush2.msra.mxu0 %v4308
    %4390 = vmatprep.subr.mxu0 0.0
    %4391 = vmatpush2.msra.mxu0 %v4307
    %4392 = vmatprep.subr.mxu0 0.0
    %4393 = vmatpush2.msra.mxu0 %v4306
    %4394 = vmatprep.subr.mxu0 0.0
    %4395 = vmatpush2.msra.mxu0 %v4305
    %4396 = vmatprep.subr.mxu0 0.0
    %4397 = vmatpush2.msra.mxu0 %v4304
    %4398 = vmatprep.subr.mxu0 0.0
    %4399 = vmatpush2.msra.mxu0 %v4303
    %4400 = vmatprep.subr.mxu0 0.0
    %4401 = vmatpush2.msra.mxu0 %v4302
    %4402 = vmatprep.subr.mxu0 0.0
    %4403 = vmatpush2.msra.mxu0 %v4301
    %4404 = vmatprep.subr.mxu0 0.0
    %4405 = vmatpush2.msra.mxu0 %v4300
    %4406 = vmatprep.subr.mxu0 0.0
    %4407 = vmatpush2.msra.mxu0 %v4299
    %4408 = vmatprep.subr.mxu0 0.0
    %4409 = vmatpush2.msra.mxu0 %v4298
    %4410 = vmatprep.mubr.f32.mxu0 %v4209
    %4411 = vmatmul.mubr.f32.gmra.mxu0 %v4207
    %v4412 = vpop.f32.mrf.mxu0
    %v4413 = vadd.f32 0.0, %v4412
    %v4414 = vpop.f32.mrf.mxu0
    %4415 = vdwg.mxu0
    %4416 = vmatprep.subr.mxu0 0.0
    %4417 = vmatpush1.msra.mxu0 %v4329
    %4418 = vmatprep.subr.mxu0 0.0
    %4419 = vmatpush1.msra.mxu0 %v4328
    %4420 = vmatprep.subr.mxu0 0.0
    %4421 = vmatpush1.msra.mxu0 %v4327
    %4422 = vmatprep.subr.mxu0 0.0
    %4423 = vmatpush1.msra.mxu0 %v4326
    %4424 = vmatprep.subr.mxu0 0.0
    %4425 = vmatpush1.msra.mxu0 %v4325
    %4426 = vmatprep.subr.mxu0 0.0
    %4427 = vmatpush1.msra.mxu0 %v4324
    %4428 = vmatprep.subr.mxu0 0.0
    %4429 = vmatpush1.msra.mxu0 %v4323
    %4430 = vmatprep.subr.mxu0 0.0
    %4431 = vmatpush1.msra.mxu0 %v4322
    %4432 = vmatprep.subr.mxu0 0.0
    %4433 = vmatpush1.msra.mxu0 %v4321
    %4434 = vmatprep.subr.mxu0 0.0
    %4435 = vmatpush1.msra.mxu0 %v4320
    %4436 = vmatprep.subr.mxu0 0.0
    %4437 = vmatpush1.msra.mxu0 %v4319
    %4438 = vmatprep.subr.mxu0 0.0
    %4439 = vmatpush1.msra.mxu0 %v4318
    %4440 = vmatprep.subr.mxu0 0.0
    %4441 = vmatpush1.msra.mxu0 %v4317
    %4442 = vmatprep.subr.mxu0 0.0
    %4443 = vmatpush1.msra.mxu0 %v4316
    %4444 = vmatprep.subr.mxu0 0.0
    %4445 = vmatpush1.msra.mxu0 %v4315
    %4446 = vmatprep.subr.mxu0 0.0
    %4447 = vmatpush1.msra.mxu0 %v4314
    %4448 = vmatprep.subr.mxu0 0.0
    %4449 = vmatpush2.msra.mxu0 %v4345
    %4450 = vmatprep.subr.mxu0 0.0
    %4451 = vmatpush2.msra.mxu0 %v4344
    %4452 = vmatprep.subr.mxu0 0.0
    %4453 = vmatpush2.msra.mxu0 %v4343
    %4454 = vmatprep.subr.mxu0 0.0
    %4455 = vmatpush2.msra.mxu0 %v4342
    %4456 = vmatprep.subr.mxu0 0.0
    %4457 = vmatpush2.msra.mxu0 %v4341
    %4458 = vmatprep.subr.mxu0 0.0
    %4459 = vmatpush2.msra.mxu0 %v4340
    %4460 = vmatprep.subr.mxu0 0.0
    %4461 = vmatpush2.msra.mxu0 %v4339
    %4462 = vmatprep.subr.mxu0 0.0
    %4463 = vmatpush2.msra.mxu0 %v4338
    %4464 = vmatprep.subr.mxu0 0.0
    %4465 = vmatpush2.msra.mxu0 %v4337
    %4466 = vmatprep.subr.mxu0 0.0
    %4467 = vmatpush2.msra.mxu0 %v4336
    %4468 = vmatprep.subr.mxu0 0.0
    %4469 = vmatpush2.msra.mxu0 %v4335
    %4470 = vmatprep.subr.mxu0 0.0
    %4471 = vmatpush2.msra.mxu0 %v4334
    %4472 = vmatprep.subr.mxu0 0.0
    %4473 = vmatpush2.msra.mxu0 %v4333
    %4474 = vmatprep.subr.mxu0 0.0
    %4475 = vmatpush2.msra.mxu0 %v4332
    %4476 = vmatprep.subr.mxu0 0.0
    %4477 = vmatpush2.msra.mxu0 %v4331
    %4478 = vmatprep.subr.mxu0 0.0
    %4479 = vmatpush2.msra.mxu0 %v4330
    %4480 = vmatprep.mubr.f32.mxu0 %v4280
    %4481 = vmatmul.mubr.f32.gmra.mxu0 %v4278
    %v4482 = vpop.f32.mrf.mxu0
    %v4483 = vadd.f32 %v4413, %v4482
    %v4484 = vpop.f32.mrf.mxu0
    %4485 = vdwg.mxu0
    %4486 = vst [vmem:[#allocation2] sm:$0x3] %v4483
    // Predicated region
    $region34: #{feature_extractor_forward.1} parent=1 // pred_check
      _
    $region35: #{feature_extractor_forward.1} parent=1 // pred_check_branch
      %4488 = sbr.rel (0) target = $region37
    $region36: #{feature_extractor_forward.1} parent=1 // pred_region
      %s4490 = ssub.s32 32, 32
      %4491 = vsyncadd [#allocation3], %s4490
      %s4493 = sshll.u32 [#allocation2], 4
      %s4494 = int_to_ptr.vmem [resolvable:$true] %s4493
      %4496 = dma.vmem_to_hbm [thread:$0]  %s4494, 32, %s8, [#allocation3]
    $region37: #{feature_extractor_forward.1} parent=1 // pred_fallthru
      _
    // Predicated region
    $region38: #{feature_extractor_forward.1} parent=1 // pred_check
      _
    $region39: #{feature_extractor_forward.1} parent=1 // pred_check_branch
      %4498 = sbr.rel (0) target = $region41
    $region40: #{feature_extractor_forward.1} parent=1 // pred_region
      %4499 = dma.done [#allocation3], 32
    $region41: #{feature_extractor_forward.1} parent=1 // pred_fallthru
      _
    %4500 = vsyncpa [#allocation3], 1

</llo_original>
